<compile_context>
chip_gen: v7x
topology: tpu7x:2x2x1
jax: 0.10.0
libtpu: 0.0.40
codegen_flags: <defaults>
</compile_context>

<pallas_src>
import functools
import math

import jax
import jax.numpy as jnp
from jax.experimental import pallas as pl
from jax.experimental.pallas import tpu as pltpu


_MXU_DTYPE = jnp.bfloat16   # MXU operand dtype (f32 accumulation everywhere)
_LANE = 128
_NEG = -1e30                # additive key-padding mask value


@functools.lru_cache(maxsize=None)
def _vmem_limit_bytes():
    """Per-generation scoped-VMEM limit (96 MiB on v5e/v6e, ~48 MiB on v7x)."""
    try:
        cap = int(pltpu.get_tpu_info().vmem_capacity_bytes)
    except Exception:
        cap = 64 * 1024 * 1024   # conservative fallback, safe on every generation
    return int(max(32 * 1024 * 1024, min(cap * 3 // 4, 96 * 1024 * 1024)))


def _cparams(sem):
    return pltpu.CompilerParams(dimension_semantics=sem,
                                vmem_limit_bytes=_vmem_limit_bytes())


def _round_up(x, m):
    return ((x + m - 1) // m) * m


def _row_tile(m, tm):
    """Row tile: full if it fits, else a multiple of 128 (MXU M), min 16 (bf16)."""
    if tm >= m:
        return m
    if tm >= _LANE:
        tm = (tm // _LANE) * _LANE
    else:
        tm = max(16, (tm // 16) * 16)
    return min(tm, m)


def _ln_f32(x, g_ref, b_ref):
    mean = jnp.mean(x, axis=-1, keepdims=True)
    var = jnp.mean(jnp.square(x - mean), axis=-1, keepdims=True)
    xn = (x - mean) * jax.lax.rsqrt(var + 1e-5)     # PyTorch LayerNorm eps
    return xn * g_ref[...] + b_ref[...]


# ----------------------------- generic linear -----------------------------

def _linear_kernel(x_ref, w_ref, b_ref, o_ref):
    o = jnp.dot(x_ref[...].astype(_MXU_DTYPE), w_ref[...],
                preferred_element_type=jnp.float32)
    o_ref[...] = (o + b_ref[...]).astype(o_ref.dtype)


def linear(x, w, b=None, tm=512, out_dtype=None):
    """y = x @ w + b, row-tiled over the flattened leading dims (bf16 weights)."""
    lead = x.shape[:-1]
    din, dout = w.shape
    m = int(math.prod(lead))
    x2 = x.reshape(m, din)
    if b is None:
        b = jnp.zeros((dout,), jnp.float32)
    out_dtype = out_dtype or x.dtype
    tm = _row_tile(m, tm)
    out = pl.pallas_call(
        _linear_kernel,
        grid=(pl.cdiv(m, tm),),
        in_specs=[
            pl.BlockSpec((tm, din), lambda i: (i, 0)),
            pl.BlockSpec((din, dout), lambda i: (0, 0)),
            pl.BlockSpec((1, dout), lambda i: (0, 0)),
        ],
        out_specs=pl.BlockSpec((tm, dout), lambda i: (i, 0)),
        out_shape=jax.ShapeDtypeStruct((m, dout), out_dtype),
        compiler_params=_cparams(("parallel",)),
    )(x2, w.astype(_MXU_DTYPE), b.astype(jnp.float32).reshape(1, dout))
    return out.reshape(*lead, dout)


# ------------------- fully fused transformer block -------------------------
# One kernel per (batch, row-tile):
#   x -> LN -> block-diagonal patch-local self-attn -> +res
#     -> LN -> cross-attn over the per-batch (padded, masked) K/V -> +res
#     -> LN -> GEGLU feed-forward -> +res
# Outputs: new x tile and the lane-dense cross-attention map tile.

def _block_kernel(x_ref, zkv_ref, kmask_ref,
                  g1_ref, b1_ref, wqkv_ref, wo1_ref, bo1_ref,
                  g2_ref, b2_ref, wq2_ref, wo2_ref, bo2_ref,
                  g3_ref, b3_ref, w1a_ref, b1a_ref, w1g_ref, b1g_ref,
                  w2_ref, bf2_ref,
                  xo_ref, a_ref, *, patch, hidden):
    f32 = jnp.float32
    x = x_ref[0].astype(f32)                                     # (TQ, H)
    tq = x.shape[0]

    # ---- patch-local self-attention (pre-LN, residual); scale folded in wq ----
    h = _ln_f32(x, g1_ref, b1_ref)
    qkv = jnp.dot(h.astype(_MXU_DTYPE), wqkv_ref[...],
                  preferred_element_type=f32)                    # (TQ, 3H)
    g = tq // patch
    q = qkv[:, :hidden].reshape(g, patch, hidden).astype(_MXU_DTYPE)
    k = qkv[:, hidden:2 * hidden].reshape(g, patch, hidden).astype(_MXU_DTYPE)
    v = qkv[:, 2 * hidden:].reshape(g, patch, hidden).astype(_MXU_DTYPE)
    s = jnp.einsum("gqd,gkd->gqk", q, k, preferred_element_type=f32)  # (G,P,P)
    s = s - jnp.max(s, axis=-1, keepdims=True)
    e = jnp.exp(s)
    p = e * pl.reciprocal(jnp.sum(e, axis=-1, keepdims=True), approx=True)
    o = jnp.einsum("gqk,gkd->gqd", p.astype(_MXU_DTYPE), v,
                   preferred_element_type=f32).reshape(tq, hidden)
    x = x + jnp.dot(o.astype(_MXU_DTYPE), wo1_ref[...],
                    preferred_element_type=f32) + bo1_ref[...]

    # ---- cross-attention to context (attention map is returned) ----
    h = _ln_f32(x, g2_ref, b2_ref)
    qc = jnp.dot(h.astype(_MXU_DTYPE), wq2_ref[...],
                 preferred_element_type=f32)                     # (TQ, H), scaled
    kv = zkv_ref[0]                                              # (Mp, 2H) bf16
    k2 = kv[:, :hidden]
    v2 = kv[:, hidden:]
    s = jnp.einsum("qd,kd->qk", qc.astype(_MXU_DTYPE), k2,
                   preferred_element_type=f32)                   # (TQ, Mp)
    s = s + kmask_ref[...]                                       # mask padded keys
    s = s - jnp.max(s, axis=-1, keepdims=True)
    e = jnp.exp(s)
    pr = e * pl.reciprocal(jnp.sum(e, axis=-1, keepdims=True), approx=True)
    a_ref[0] = pr.astype(a_ref.dtype)                            # lane-dense store
    o = jnp.dot(pr.astype(_MXU_DTYPE), v2, preferred_element_type=f32)
    x = x + jnp.dot(o.astype(_MXU_DTYPE), wo2_ref[...],
                    preferred_element_type=f32) + bo2_ref[...]

    # ---- GEGLU feed-forward (pre-LN, residual) ----
    h = _ln_f32(x, g3_ref, b3_ref)
    hb = h.astype(_MXU_DTYPE)
    a = jnp.dot(hb, w1a_ref[...], preferred_element_type=f32) + b1a_ref[...]
    gate = jnp.dot(hb, w1g_ref[...], preferred_element_type=f32) + b1g_ref[...]
    gelu = 0.5 * gate * (1.0 + jax.lax.erf(gate * (1.0 / math.sqrt(2.0))))
    y = (a * gelu).astype(_MXU_DTYPE)
    x = x + jnp.dot(y, w2_ref[...], preferred_element_type=f32) + bf2_ref[...]

    xo_ref[0] = x.astype(xo_ref.dtype)


def _prep_block(blk, H):
    """Fold softmax scale into q projections and pre-cast matmul weights to bf16."""
    scale = float(H) ** -0.5           # n_heads=1, d_head=H
    d_inner = blk["ff_w2"].shape[0]
    return dict(
        g1=blk["norm1_g"].reshape(1, H), b1=blk["norm1_b"].reshape(1, H),
        wqkv=jnp.concatenate([blk["attn1_wq"] * scale, blk["attn1_wk"],
                              blk["attn1_wv"]], axis=1).astype(_MXU_DTYPE),
        wo1=blk["attn1_wo"].astype(_MXU_DTYPE), bo1=blk["attn1_bo"].reshape(1, H),
        g2=blk["norm2_g"].reshape(1, H), b2=blk["norm2_b"].reshape(1, H),
        wq2=(blk["attn2_wq"] * scale).astype(_MXU_DTYPE),
        wo2=blk["attn2_wo"].astype(_MXU_DTYPE), bo2=blk["attn2_bo"].reshape(1, H),
        g3=blk["norm3_g"].reshape(1, H), b3=blk["norm3_b"].reshape(1, H),
        w1a=blk["ff_w1"][:, :d_inner].astype(_MXU_DTYPE),
        b1a=blk["ff_b1"][:d_inner].reshape(1, d_inner),
        w1g=blk["ff_w1"][:, d_inner:].astype(_MXU_DTYPE),
        b1g=blk["ff_b1"][d_inner:].reshape(1, d_inner),
        w2=blk["ff_w2"].astype(_MXU_DTYPE), bf2=blk["ff_b2"].reshape(1, H),
        d_inner=d_inner,
    )


def transformer_block(x, z_kv, kmask, bp, patch, tq):
    """x: (B, Np, H) padded so tq | Np and patch | tq; z_kv: (B, Mp, 2H) bf16."""
    B, Np, H = x.shape
    Mp = z_kv.shape[1]
    d_inner = bp["d_inner"]

    const = lambda b, q: (0, 0)
    xmap = lambda b, q: (b, q, 0)
    zmap = lambda b, q: (b, 0, 0)

    out, attn = pl.pallas_call(
        functools.partial(_block_kernel, patch=patch, hidden=H),
        grid=(B, Np // tq),
        in_specs=[
            pl.BlockSpec((1, tq, H), xmap),
            pl.BlockSpec((1, Mp, 2 * H), zmap),
            pl.BlockSpec((1, Mp), const),
            pl.BlockSpec((1, H), const), pl.BlockSpec((1, H), const),
            pl.BlockSpec((H, 3 * H), const),
            pl.BlockSpec((H, H), const), pl.BlockSpec((1, H), const),
            pl.BlockSpec((1, H), const), pl.BlockSpec((1, H), const),
            pl.BlockSpec((H, H), const),
            pl.BlockSpec((H, H), const), pl.BlockSpec((1, H), const),
            pl.BlockSpec((1, H), const), pl.BlockSpec((1, H), const),
            pl.BlockSpec((H, d_inner), const), pl.BlockSpec((1, d_inner), const),
            pl.BlockSpec((H, d_inner), const), pl.BlockSpec((1, d_inner), const),
            pl.BlockSpec((d_inner, H), const), pl.BlockSpec((1, H), const),
        ],
        out_specs=(
            pl.BlockSpec((1, tq, H), xmap),
            pl.BlockSpec((1, tq, Mp), xmap),
        ),
        out_shape=(
            jax.ShapeDtypeStruct((B, Np, H), x.dtype),
            jax.ShapeDtypeStruct((B, Np, Mp), jnp.float32),
        ),
        compiler_params=_cparams(("parallel", "parallel")),
    )(x, z_kv, kmask,
      bp["g1"], bp["b1"], bp["wqkv"], bp["wo1"], bp["bo1"],
      bp["g2"], bp["b2"], bp["wq2"], bp["wo2"], bp["bo2"],
      bp["g3"], bp["b3"], bp["w1a"], bp["b1a"], bp["w1g"], bp["b1g"],
      bp["w2"], bp["bf2"])
    return out, attn


# --------------------------- fused output heads ----------------------------
# shape/color heads fused: one (H,2H)+(3,2H) first layer (cat replaced by two
# dots), softplus, block-diagonal (2H, 4) second layer padded to 128 lanes.

def _head_kernel(x_ref, inp_ref, w1x_ref, w1i_ref, b1_ref, w2_ref, b2_ref, o_ref):
    f32 = jnp.float32
    h = (jnp.dot(x_ref[...].astype(_MXU_DTYPE), w1x_ref[...], preferred_element_type=f32)
         + jnp.dot(inp_ref[...].astype(_MXU_DTYPE), w1i_ref[...], preferred_element_type=f32)
         + b1_ref[...])
    # PyTorch Softplus (beta=1, threshold=20)
    h = jnp.where(h > 20.0, h, jnp.log1p(jnp.exp(jnp.minimum(h, 20.0))))
    o = jnp.dot(h.astype(_MXU_DTYPE), w2_ref[...], preferred_element_type=f32) + b2_ref[...]
    o_ref[...] = o.astype(o_ref.dtype)


def fused_head(x, inp, w1x, w1i, b1, w2, b2, tm=512):
    B, N, H = x.shape
    m = B * N
    din = inp.shape[-1]
    dh = w1x.shape[1]
    dout = w2.shape[1]
    dout_p = max(_LANE, _round_up(dout, _LANE))          # lane-dense output store
    w2p = jnp.zeros((w2.shape[0], dout_p), jnp.float32).at[:, :dout].set(w2)
    b2p = jnp.zeros((dout_p,), jnp.float32).at[:dout].set(b2)
    x2 = x.reshape(m, H)
    inp2 = inp.reshape(m, din)
    tm = _row_tile(m, tm)
    out = pl.pallas_call(
        _head_kernel,
        grid=(pl.cdiv(m, tm),),
        in_specs=[
            pl.BlockSpec((tm, H), lambda i: (i, 0)),
            pl.BlockSpec((tm, din), lambda i: (i, 0)),
            pl.BlockSpec((H, dh), lambda i: (0, 0)),
            pl.BlockSpec((din, dh), lambda i: (0, 0)),
            pl.BlockSpec((1, dh), lambda i: (0, 0)),
            pl.BlockSpec((dh, dout_p), lambda i: (0, 0)),
            pl.BlockSpec((1, dout_p), lambda i: (0, 0)),
        ],
        out_specs=pl.BlockSpec((tm, dout_p), lambda i: (i, 0)),
        out_shape=jax.ShapeDtypeStruct((m, dout_p), x.dtype),
        compiler_params=_cparams(("parallel",)),
    )(x2, inp2, w1x.astype(_MXU_DTYPE), w1i.astype(_MXU_DTYPE),
      b1.reshape(1, dh), w2p.astype(_MXU_DTYPE), b2p.reshape(1, dout_p))
    return out[:, :dout].reshape(B, N, dout)


# --------------------------- model composition ----------------------------

def generator_forward(params, inp, z, patch_size, tq=512):
    B, N, _ = inp.shape
    H = params["proj_in_w"].shape[1]
    assert N % patch_size == 0, "patch_size must divide the number of points"
    blocks = params["blocks"]

    x = linear(inp, params["proj_in_w"], params["proj_in_b"])

    # Hoisted context K/V projection for ALL blocks in one matmul over z.
    M = z.shape[1]
    Mp = max(_LANE, _round_up(M, _LANE))                 # lane-dense key axis
    z_p = jnp.pad(z, ((0, 0), (0, Mp - M), (0, 0))) if Mp != M else z
    wkv_all = jnp.concatenate(
        [jnp.concatenate([blk["attn2_wk"], blk["attn2_wv"]], axis=1)
         for blk in blocks], axis=1)                     # (Cctx, depth*2H)
    zkv_all = linear(z_p, wkv_all, out_dtype=_MXU_DTYPE)  # (B, Mp, depth*2H) bf16
    kmask = jnp.where(jnp.arange(Mp) < M, 0.0, _NEG).astype(jnp.float32).reshape(1, Mp)

    # Row tile: whole patches, sublane multiple, and a VMEM budget for the
    # (tq, Mp) f32 attention-map tile (double-buffered) — matters on v7x.
    unit = patch_size * 8 // math.gcd(patch_size, 8)
    budget_rows = max(unit, (8 * 1024 * 1024) // (Mp * 4))
    tq_eff = min(tq, budget_rows, _round_up(N, unit))
    tq_eff = max(unit, (tq_eff // unit) * unit)
    Np = _round_up(N, tq_eff)
    if Np != N:
        # zero-row padding: padded rows form whole patches and are sliced off
        x = jnp.pad(x, ((0, 0), (0, Np - N), (0, 0)))

    attns = []
    for d, blk in enumerate(blocks):
        bp = _prep_block(blk, H)
        z_kv = zkv_all[..., d * 2 * H:(d + 1) * 2 * H]
        x, attn = transformer_block(x, z_kv, kmask, bp, patch_size, tq_eff)
        attns.append(attn[:, :N, :M])
    x = x[:, :N]

    # fused shape/color heads (cat([x, inp]) replaced by two dots, block-diag W2)
    w1x = jnp.concatenate([params["shape_w1"][:H], params["color_w1"][:H]], axis=1)
    w1i = jnp.concatenate([params["shape_w1"][H:], params["color_w1"][H:]], axis=1)
    b1 = jnp.concatenate([params["shape_b1"], params["color_b1"]])
    w2 = jnp.zeros((2 * H, 4), jnp.float32)
    w2 = w2.at[:H, :1].set(params["shape_w2"]).at[H:, 1:].set(params["color_w2"])
    b2 = jnp.concatenate([params["shape_b2"], params["color_b2"]])
    out = fused_head(x, inp, w1x, w1i, b1, w2, b2)
    return out, attns


def init_params(key, hidden_dim, context_dim, depth):
    keys = iter(jax.random.split(key, 256))

    def nrm(shape, scale=0.02):
        return (scale * jax.random.normal(next(keys), shape)).astype(jnp.float32)

    p = {
        "proj_in_w": nrm((3, hidden_dim)),
        "proj_in_b": jnp.zeros((hidden_dim,), jnp.float32),
    }
    blocks = []
    for _ in range(depth):
        blocks.append({
            "norm1_g": jnp.ones((hidden_dim,), jnp.float32),
            "norm1_b": jnp.zeros((hidden_dim,), jnp.float32),
            "attn1_wq": nrm((hidden_dim, hidden_dim)),
            "attn1_wk": nrm((hidden_dim, hidden_dim)),
            "attn1_wv": nrm((hidden_dim, hidden_dim)),
            "attn1_wo": nrm((hidden_dim, hidden_dim)),
            "attn1_bo": jnp.zeros((hidden_dim,), jnp.float32),
            "norm2_g": jnp.ones((hidden_dim,), jnp.float32),
            "norm2_b": jnp.zeros((hidden_dim,), jnp.float32),
            "attn2_wq": nrm((hidden_dim, hidden_dim)),
            "attn2_wk": nrm((context_dim, hidden_dim)),
            "attn2_wv": nrm((context_dim, hidden_dim)),
            "attn2_wo": nrm((hidden_dim, hidden_dim)),
            "attn2_bo": jnp.zeros((hidden_dim,), jnp.float32),
            "norm3_g": jnp.ones((hidden_dim,), jnp.float32),
            "norm3_b": jnp.zeros((hidden_dim,), jnp.float32),
            "ff_w1": nrm((hidden_dim, hidden_dim * 8)),   # GEGLU proj (2 * 4*dim)
            "ff_b1": jnp.zeros((hidden_dim * 8,), jnp.float32),
            "ff_w2": nrm((hidden_dim * 4, hidden_dim)),
            "ff_b2": jnp.zeros((hidden_dim,), jnp.float32),
        })
    p["blocks"] = blocks
    p["shape_w1"] = nrm((hidden_dim + 3, hidden_dim))
    p["shape_b1"] = jnp.zeros((hidden_dim,), jnp.float32)
    p["shape_w2"] = nrm((hidden_dim, 1))
    p["shape_b2"] = jnp.array([-2.0], jnp.float32)  # shape_transform[-1].bias.data[0]
    p["color_w1"] = nrm((hidden_dim + 3, hidden_dim))
    p["color_b1"] = jnp.zeros((hidden_dim,), jnp.float32)
    p["color_w2"] = nrm((hidden_dim, 3))
    p["color_b2"] = jnp.zeros((3,), jnp.float32)
    return p


# ----------------------- pure-JAX f32 reference ----------------------------

def _reference_forward(params, inp, z, patch_size):
    def ln(x, g, b):
        mu = jnp.mean(x, -1, keepdims=True)
        var = jnp.mean(jnp.square(x - mu), -1, keepdims=True)
        return (x - mu) * jax.lax.rsqrt(var + 1e-5) * g + b

    def smax(s):
        s = s - jnp.max(s, -1, keepdims=True)
        e = jnp.exp(s)
        return e / jnp.sum(e, -1, keepdims=True)

    softplus = lambda t: jnp.where(t > 20.0, t, jnp.log1p(jnp.exp(jnp.minimum(t, 20.0))))

    x = inp @ params["proj_in_w"] + params["proj_in_b"]
    B, N, H = x.shape
    scale = float(H) ** -0.5
    attns = []
    for blk in params["blocks"]:
        h = ln(x, blk["norm1_g"], blk["norm1_b"])
        hp = h.reshape(B * N // patch_size, patch_size, H)
        q, k, v = hp @ blk["attn1_wq"], hp @ blk["attn1_wk"], hp @ blk["attn1_wv"]
        p = smax(jnp.einsum("gqd,gkd->gqk", q, k) * scale)
        o = jnp.einsum("gqk,gkd->gqd", p, v).reshape(B, N, H)
        x = x + o @ blk["attn1_wo"] + blk["attn1_bo"]

        h = ln(x, blk["norm2_g"], blk["norm2_b"])
        q, k, v = h @ blk["attn2_wq"], z @ blk["attn2_wk"], z @ blk["attn2_wv"]
        p = smax(jnp.einsum("bqd,bkd->bqk", q, k) * scale)
        attns.append(p)
        o = jnp.einsum("bqk,bkd->bqd", p, v)
        x = x + o @ blk["attn2_wo"] + blk["attn2_bo"]

        h = ln(x, blk["norm3_g"], blk["norm3_b"])
        t = h @ blk["ff_w1"] + blk["ff_b1"]
        a, gate = t[..., :4 * H], t[..., 4 * H:]
        gelu = 0.5 * gate * (1.0 + jax.lax.erf(gate * (1.0 / math.sqrt(2.0))))
        x = x + (a * gelu) @ blk["ff_w2"] + blk["ff_b2"]

    xi = jnp.concatenate([x, inp], -1)
    shape = softplus(xi @ params["shape_w1"] + params["shape_b1"]) @ params["shape_w2"] + params["shape_b2"]
    color = softplus(xi @ params["color_w1"] + params["color_b1"]) @ params["color_w2"] + params["color_b2"]
    return jnp.concatenate([shape, color], -1), attns


if __name__ == "__main__":
    B, N, PATCH = 2, 16, 4          # N divisible by patch_size
    HIDDEN, CTX_DIM, DEPTH, M_CTX = 32, 64, 2, 8   # small stand-ins for 128/4096/4

    key = jax.random.PRNGKey(0)
    kp, ki, kz = jax.random.split(key, 3)
    params = init_params(kp, HIDDEN, CTX_DIM, DEPTH)
    inp = jax.random.normal(ki, (B, N, 3), jnp.float32)          # point coordinates
    z = jax.random.normal(kz, (B, M_CTX, CTX_DIM), jnp.float32)  # context tokens

    fwd = jax.jit(lambda p, i, c: generator_forward(p, i, c, PATCH))
    out, attns = fwd(params, inp, z)
    out = jax.block_until_ready(out)
    attns = [jax.block_until_ready(a) for a in attns]

    assert out.shape == (B, N, 4), out.shape            # cat([shape(1), color(3)], -1)
    assert len(attns) == DEPTH
    assert all(a.shape == (B, N, M_CTX) for a in attns)
    assert bool(jnp.all(jnp.isfinite(out)))

    # validate bf16-MXU kernels against the f32 reference
    ref_out, ref_attns = _reference_forward(params, inp, z, PATCH)
    assert bool(jnp.allclose(out, ref_out, atol=3e-2, rtol=3e-2))
    for a, ra in zip(attns, ref_attns):
        assert bool(jnp.allclose(a, ra, atol=3e-2, rtol=3e-2))

    print("KERNEL_OK")
</pallas_src>

<mosaic_0001>
module attributes {stable_mosaic.version = 11 : i64} {
  func.func @_linear_kernel(%arg0: i32, %arg1: memref<256x64xf32, #tpu.memory_space<vmem>>, %arg2: memref<64x128xbf16, #tpu.memory_space<vmem>>, %arg3: memref<1x128xf32, #tpu.memory_space<vmem>>, %arg4: memref<256x128xbf16, #tpu.memory_space<vmem>>) attributes {dimension_semantics = [#tpu.dimension_semantics<parallel>], iteration_bounds = array<i64: 1>, scalar_prefetch = 0 : i64, scratch_operands = 0 : i64, tpu.core_type = #tpu.core_type<tc>, window_params = [{transform_indices = @transform_0, window_bounds = array<i64: 256, 64>}, {pipeline_mode = #tpu.pipeline_mode<synchronous>, transform_indices = @transform_1, window_bounds = array<i64: 64, 128>}, {pipeline_mode = #tpu.pipeline_mode<synchronous>, transform_indices = @transform_2, window_bounds = array<i64: 1, 128>}, {transform_indices = @transform_3, window_bounds = array<i64: 256, 128>}]} {
    %c0 = arith.constant 0 : index
    %c0_0 = arith.constant 0 : index
    %0 = vector.load %arg1[%c0, %c0_0] : memref<256x64xf32, #tpu.memory_space<vmem>>, vector<256x64xf32>
    %1 = arith.truncf %0 : vector<256x64xf32> to vector<256x64xbf16>
    %c0_1 = arith.constant 0 : index
    %c0_2 = arith.constant 0 : index
    %2 = vector.load %arg2[%c0_1, %c0_2] : memref<64x128xbf16, #tpu.memory_space<vmem>>, vector<64x128xbf16>
    %cst = arith.constant dense<0.000000e+00> : vector<256x128xf32>
    %3 = tpu.matmul %1, %2, %cst {dimension_numbers = #tpu.dot_dimension_numbers<[1], [0], [0], [1], [0, 0, 1, 1], [], []>} : vector<256x64xbf16>, vector<64x128xbf16>, vector<256x128xf32> -> vector<256x128xf32>
    %c0_3 = arith.constant 0 : index
    %c0_4 = arith.constant 0 : index
    %4 = vector.load %arg3[%c0_3, %c0_4] : memref<1x128xf32, #tpu.memory_space<vmem>>, vector<1x128xf32>
    %5 = vector.broadcast %4 : vector<1x128xf32> to vector<256x128xf32>
    %6 = arith.addf %3, %5 : vector<256x128xf32>
    %7 = arith.truncf %6 : vector<256x128xf32> to vector<256x128xbf16>
    %c0_5 = arith.constant 0 : index
    %c0_6 = arith.constant 0 : index
    %8 = vector.load %arg4[%c0_5, %c0_6] : memref<256x128xbf16, #tpu.memory_space<vmem>>, vector<256x128xbf16>
    tpu.vector_store %arg4[%c0_5, %c0_6], %7 {strides = array<i32>} : memref<256x128xbf16, #tpu.memory_space<vmem>>, vector<256x128xbf16>,
    return
  }
  func.func @transform_0(%arg0: i32) -> (i32, i32) {
    %c0_i32 = arith.constant 0 : i32
    %c0_i32_0 = arith.constant 0 : i32
    return %arg0, %c0_i32 : i32, i32
  }
  func.func @transform_1(%arg0: i32) -> (i32, i32) {
    %c0_i32 = arith.constant 0 : i32
    %c0_i32_0 = arith.constant 0 : i32
    %c0_i32_1 = arith.constant 0 : i32
    return %c0_i32, %c0_i32_0 : i32, i32
  }
  func.func @transform_2(%arg0: i32) -> (i32, i32) {
    %c0_i32 = arith.constant 0 : i32
    %c0_i32_0 = arith.constant 0 : i32
    %c0_i32_1 = arith.constant 0 : i32
    return %c0_i32, %c0_i32_0 : i32, i32
  }
  func.func @transform_3(%arg0: i32) -> (i32, i32) {
    %c0_i32 = arith.constant 0 : i32
    %c0_i32_0 = arith.constant 0 : i32
    return %arg0, %c0_i32 : i32, i32
  }
}

module attributes {stable_mosaic.version = 11 : i64} {
  func.func @_linear_kernel(%arg0: i32, %arg1: memref<32x3xf32, #tpu.memory_space<vmem>>, %arg2: memref<3x32xbf16, #tpu.memory_space<vmem>>, %arg3: memref<1x32xf32, #tpu.memory_space<vmem>>, %arg4: memref<32x32xf32, #tpu.memory_space<vmem>>) attributes {dimension_semantics = [#tpu.dimension_semantics<parallel>], iteration_bounds = array<i64: 1>, scalar_prefetch = 0 : i64, scratch_operands = 0 : i64, tpu.core_type = #tpu.core_type<tc>, window_params = [{transform_indices = @transform_0, window_bounds = array<i64: 32, 3>}, {pipeline_mode = #tpu.pipeline_mode<synchronous>, transform_indices = @transform_1, window_bounds = array<i64: 3, 32>}, {pipeline_mode = #tpu.pipeline_mode<synchronous>, transform_indices = @transform_2, window_bounds = array<i64: 1, 32>}, {transform_indices = @transform_3, window_bounds = array<i64: 32, 32>}]} {
    %c0 = arith.constant 0 : index
    %c0_0 = arith.constant 0 : index
    %0 = vector.load %arg1[%c0, %c0_0] : memref<32x3xf32, #tpu.memory_space<vmem>>, vector<32x3xf32>
    %1 = arith.truncf %0 : vector<32x3xf32> to vector<32x3xbf16>
    %c0_1 = arith.constant 0 : index
    %c0_2 = arith.constant 0 : index
    %2 = vector.load %arg2[%c0_1, %c0_2] : memref<3x32xbf16, #tpu.memory_space<vmem>>, vector<3x32xbf16>
    %cst = arith.constant dense<0.000000e+00> : vector<32x32xf32>
    %3 = tpu.matmul %1, %2, %cst {dimension_numbers = #tpu.dot_dimension_numbers<[1], [0], [0], [1], [0, 0, 1, 1], [], []>} : vector<32x3xbf16>, vector<3x32xbf16>, vector<32x32xf32> -> vector<32x32xf32>
    %c0_3 = arith.constant 0 : index
    %c0_4 = arith.constant 0 : index
    %4 = vector.load %arg3[%c0_3, %c0_4] : memref<1x32xf32, #tpu.memory_space<vmem>>, vector<1x32xf32>
    %5 = vector.broadcast %4 : vector<1x32xf32> to vector<32x32xf32>
    %6 = arith.addf %3, %5 : vector<32x32xf32>
    %c0_5 = arith.constant 0 : index
    %c0_6 = arith.constant 0 : index
    %7 = vector.load %arg4[%c0_5, %c0_6] : memref<32x32xf32, #tpu.memory_space<vmem>>, vector<32x32xf32>
    tpu.vector_store %arg4[%c0_5, %c0_6], %6 {strides = array<i32>} : memref<32x32xf32, #tpu.memory_space<vmem>>, vector<32x32xf32>,
    return
  }
  func.func @transform_0(%arg0: i32) -> (i32, i32) {
    %c0_i32 = arith.constant 0 : i32
    %c0_i32_0 = arith.constant 0 : i32
    return %arg0, %c0_i32 : i32, i32
  }
  func.func @transform_1(%arg0: i32) -> (i32, i32) {
    %c0_i32 = arith.constant 0 : i32
    %c0_i32_0 = arith.constant 0 : i32
    %c0_i32_1 = arith.constant 0 : i32
    return %c0_i32, %c0_i32_0 : i32, i32
  }
  func.func @transform_2(%arg0: i32) -> (i32, i32) {
    %c0_i32 = arith.constant 0 : i32
    %c0_i32_0 = arith.constant 0 : i32
    %c0_i32_1 = arith.constant 0 : i32
    return %c0_i32, %c0_i32_0 : i32, i32
  }
  func.func @transform_3(%arg0: i32) -> (i32, i32) {
    %c0_i32 = arith.constant 0 : i32
    %c0_i32_0 = arith.constant 0 : i32
    return %arg0, %c0_i32 : i32, i32
  }
}

module attributes {stable_mosaic.version = 11 : i64} {
  func.func @_block_kernel(%arg0: i32, %arg1: i32, %arg2: memref<1x16x32xf32, #tpu.memory_space<vmem>>, %arg3: memref<1x128x64xbf16, #tpu.memory_space<vmem>>, %arg4: memref<1x128xf32, #tpu.memory_space<vmem>>, %arg5: memref<1x32xf32, #tpu.memory_space<vmem>>, %arg6: memref<1x32xf32, #tpu.memory_space<vmem>>, %arg7: memref<32x96xbf16, #tpu.memory_space<vmem>>, %arg8: memref<32x32xbf16, #tpu.memory_space<vmem>>, %arg9: memref<1x32xf32, #tpu.memory_space<vmem>>, %arg10: memref<1x32xf32, #tpu.memory_space<vmem>>, %arg11: memref<1x32xf32, #tpu.memory_space<vmem>>, %arg12: memref<32x32xbf16, #tpu.memory_space<vmem>>, %arg13: memref<32x32xbf16, #tpu.memory_space<vmem>>, %arg14: memref<1x32xf32, #tpu.memory_space<vmem>>, %arg15: memref<1x32xf32, #tpu.memory_space<vmem>>, %arg16: memref<1x32xf32, #tpu.memory_space<vmem>>, %arg17: memref<32x128xbf16, #tpu.memory_space<vmem>>, %arg18: memref<1x128xf32, #tpu.memory_space<vmem>>, %arg19: memref<32x128xbf16, #tpu.memory_space<vmem>>, %arg20: memref<1x128xf32, #tpu.memory_space<vmem>>, %arg21: memref<128x32xbf16, #tpu.memory_space<vmem>>, %arg22: memref<1x32xf32, #tpu.memory_space<vmem>>, %arg23: memref<1x16x32xf32, #tpu.memory_space<vmem>>, %arg24: memref<1x16x128xf32, #tpu.memory_space<vmem>>) attributes {dimension_semantics = [#tpu.dimension_semantics<parallel>, #tpu.dimension_semantics<parallel>], iteration_bounds = array<i64: 2, 1>, scalar_prefetch = 0 : i64, scratch_operands = 0 : i64, tpu.core_type = #tpu.core_type<tc>, window_params = [{transform_indices = @transform_0, window_bounds = array<i64: 1, 16, 32>}, {transform_indices = @transform_1, window_bounds = array<i64: 1, 128, 64>}, {pipeline_mode = #tpu.pipeline_mode<synchronous>, transform_indices = @transform_2, window_bounds = array<i64: 1, 128>}, {pipeline_mode = #tpu.pipeline_mode<synchronous>, transform_indices = @transform_3, window_bounds = array<i64: 1, 32>}, {pipeline_mode = #tpu.pipeline_mode<synchronous>, transform_indices = @transform_4, window_bounds = array<i64: 1, 32>}, {pipeline_mode = #tpu.pipeline_mode<synchronous>, transform_indices = @transform_5, window_bounds = array<i64: 32, 96>}, {pipeline_mode = #tpu.pipeline_mode<synchronous>, transform_indices = @transform_6, window_bounds = array<i64: 32, 32>}, {pipeline_mode = #tpu.pipeline_mode<synchronous>, transform_indices = @transform_7, window_bounds = array<i64: 1, 32>}, {pipeline_mode = #tpu.pipeline_mode<synchronous>, transform_indices = @transform_8, window_bounds = array<i64: 1, 32>}, {pipeline_mode = #tpu.pipeline_mode<synchronous>, transform_indices = @transform_9, window_bounds = array<i64: 1, 32>}, {pipeline_mode = #tpu.pipeline_mode<synchronous>, transform_indices = @transform_10, window_bounds = array<i64: 32, 32>}, {pipeline_mode = #tpu.pipeline_mode<synchronous>, transform_indices = @transform_11, window_bounds = array<i64: 32, 32>}, {pipeline_mode = #tpu.pipeline_mode<synchronous>, transform_indices = @transform_12, window_bounds = array<i64: 1, 32>}, {pipeline_mode = #tpu.pipeline_mode<synchronous>, transform_indices = @transform_13, window_bounds = array<i64: 1, 32>}, {pipeline_mode = #tpu.pipeline_mode<synchronous>, transform_indices = @transform_14, window_bounds = array<i64: 1, 32>}, {pipeline_mode = #tpu.pipeline_mode<synchronous>, transform_indices = @transform_15, window_bounds = array<i64: 32, 128>}, {pipeline_mode = #tpu.pipeline_mode<synchronous>, transform_indices = @transform_16, window_bounds = array<i64: 1, 128>}, {pipeline_mode = #tpu.pipeline_mode<synchronous>, transform_indices = @transform_17, window_bounds = array<i64: 32, 128>}, {pipeline_mode = #tpu.pipeline_mode<synchronous>, transform_indices = @transform_18, window_bounds = array<i64: 1, 128>}, {pipeline_mode = #tpu.pipeline_mode<synchronous>, transform_indices = @transform_19, window_bounds = array<i64: 128, 32>}, {pipeline_mode = #tpu.pipeline_mode<synchronous>, transform_indices = @transform_20, window_bounds = array<i64: 1, 32>}, {transform_indices = @transform_21, window_bounds = array<i64: 1, 16, 32>}, {transform_indices = @transform_22, window_bounds = array<i64: 1, 16, 128>}]} {
    %c0 = arith.constant 0 : index
    %c0_0 = arith.constant 0 : index
    %c0_1 = arith.constant 0 : index
    %0 = vector.load %arg2[%c0, %c0_0, %c0_1] : memref<1x16x32xf32, #tpu.memory_space<vmem>>, vector<1x16x32xf32>
    %1 = vector.shape_cast %0 : vector<1x16x32xf32> to vector<16x32xf32>
    %cst = arith.constant dense<0.000000e+00> : vector<16xf32>
    %2 = vector.multi_reduction <add>, %1, %cst [1] : vector<16x32xf32> to vector<16xf32>
    %3 = vector.shape_cast %2 : vector<16xf32> to vector<16x1xf32>
    %cst_2 = arith.constant 3.200000e+01 : f32
    %4 = vector.broadcast %cst_2 : f32 to vector<16x1xf32>
    %5 = arith.divf %3, %4 : vector<16x1xf32>
    %6 = vector.broadcast %5 : vector<16x1xf32> to vector<16x32xf32>
    %7 = arith.subf %1, %6 : vector<16x32xf32>
    %8 = arith.mulf %7, %7 : vector<16x32xf32>
    %cst_3 = arith.constant dense<0.000000e+00> : vector<16xf32>
    %9 = vector.multi_reduction <add>, %8, %cst_3 [1] : vector<16x32xf32> to vector<16xf32>
    %10 = vector.shape_cast %9 : vector<16xf32> to vector<16x1xf32>
    %cst_4 = arith.constant 3.200000e+01 : f32
    %11 = vector.broadcast %cst_4 : f32 to vector<16x1xf32>
    %12 = arith.divf %10, %11 : vector<16x1xf32>
    %13 = vector.broadcast %5 : vector<16x1xf32> to vector<16x32xf32>
    %14 = arith.subf %1, %13 : vector<16x32xf32>
    %cst_5 = arith.constant 9.99999974E-6 : f32
    %15 = vector.broadcast %cst_5 : f32 to vector<16x1xf32>
    %16 = arith.addf %12, %15 : vector<16x1xf32>
    %17 = math.rsqrt %16 : vector<16x1xf32>
    %18 = vector.broadcast %17 : vector<16x1xf32> to vector<16x32xf32>
    %19 = arith.mulf %14, %18 : vector<16x32xf32>
    %c0_6 = arith.constant 0 : index
    %c0_7 = arith.constant 0 : index
    %20 = vector.load %arg5[%c0_6, %c0_7] : memref<1x32xf32, #tpu.memory_space<vmem>>, vector<1x32xf32>
    %21 = vector.broadcast %20 : vector<1x32xf32> to vector<16x32xf32>
    %22 = arith.mulf %19, %21 : vector<16x32xf32>
    %c0_8 = arith.constant 0 : index
    %c0_9 = arith.constant 0 : index
    %23 = vector.load %arg6[%c0_8, %c0_9] : memref<1x32xf32, #tpu.memory_space<vmem>>, vector<1x32xf32>
    %24 = vector.broadcast %23 : vector<1x32xf32> to vector<16x32xf32>
    %25 = arith.addf %22, %24 : vector<16x32xf32>
    %26 = arith.truncf %25 : vector<16x32xf32> to vector<16x32xbf16>
    %c0_10 = arith.constant 0 : index
    %c0_11 = arith.constant 0 : index
    %27 = vector.load %arg7[%c0_10, %c0_11] : memref<32x96xbf16, #tpu.memory_space<vmem>>, vector<32x96xbf16>
    %cst_12 = arith.constant dense<0.000000e+00> : vector<16x96xf32>
    %28 = tpu.matmul %26, %27, %cst_12 {dimension_numbers = #tpu.dot_dimension_numbers<[1], [0], [0], [1], [0, 0, 1, 1], [], []>} : vector<16x32xbf16>, vector<32x96xbf16>, vector<16x96xf32> -> vector<16x96xf32>
    %29 = vector.extract_strided_slice %28 {offsets = [0, 0], sizes = [16, 32], strides = [1, 1]} : vector<16x96xf32> to vector<16x32xf32>
    %30 = vector.shape_cast %29 : vector<16x32xf32> to vector<4x4x32xf32>
    %31 = arith.truncf %30 : vector<4x4x32xf32> to vector<4x4x32xbf16>
    %32 = vector.extract_strided_slice %28 {offsets = [0, 32], sizes = [16, 32], strides = [1, 1]} : vector<16x96xf32> to vector<16x32xf32>
    %33 = vector.shape_cast %32 : vector<16x32xf32> to vector<4x4x32xf32>
    %34 = arith.truncf %33 : vector<4x4x32xf32> to vector<4x4x32xbf16>
    %35 = vector.extract_strided_slice %28 {offsets = [0, 64], sizes = [16, 32], strides = [1, 1]} : vector<16x96xf32> to vector<16x32xf32>
    %36 = vector.shape_cast %35 : vector<16x32xf32> to vector<4x4x32xf32>
    %37 = arith.truncf %36 : vector<4x4x32xf32> to vector<4x4x32xbf16>
    "tpu.trace_start"() <{level = 10 : i32, message = "gqd,gkd->gqk"}> : () -> ()
    %cst_13 = arith.constant dense<0.000000e+00> : vector<4x4x4xf32>
    %38 = tpu.matmul %31, %34, %cst_13 {dimension_numbers = #tpu.dot_dimension_numbers<[2], [2], [1], [1], [0, 0, 0, 1, 1, 1], [0], [0]>} : vector<4x4x32xbf16>, vector<4x4x32xbf16>, vector<4x4x4xf32> -> vector<4x4x4xf32>
    "tpu.trace_stop"() : () -> ()
    %cst_14 = arith.constant dense<0xFF800000> : vector<4x4xf32>
    %39 = vector.multi_reduction <maximumf>, %38, %cst_14 [2] : vector<4x4x4xf32> to vector<4x4xf32>
    %40 = vector.shape_cast %39 : vector<4x4xf32> to vector<4x4x1xf32>
    %41 = vector.broadcast %40 : vector<4x4x1xf32> to vector<4x4x4xf32>
    %42 = arith.subf %38, %41 : vector<4x4x4xf32>
    %43 = math.exp %42 : vector<4x4x4xf32>
    %cst_15 = arith.constant dense<0.000000e+00> : vector<4x4xf32>
    %44 = vector.multi_reduction <add>, %43, %cst_15 [2] : vector<4x4x4xf32> to vector<4x4xf32>
    %45 = vector.shape_cast %44 : vector<4x4xf32> to vector<4x4x1xf32>
    %46 = tpu.reciprocal %45 {approx = true} : vector<4x4x1xf32> -> vector<4x4x1xf32>
    %47 = vector.broadcast %46 : vector<4x4x1xf32> to vector<4x4x4xf32>
    %48 = arith.mulf %43, %47 : vector<4x4x4xf32>
    %49 = arith.truncf %48 : vector<4x4x4xf32> to vector<4x4x4xbf16>
    "tpu.trace_start"() <{level = 10 : i32, message = "gqk,gkd->gqd"}> : () -> ()
    %cst_16 = arith.constant dense<0.000000e+00> : vector<4x4x32xf32>
    %50 = tpu.matmul %49, %37, %cst_16 {dimension_numbers = #tpu.dot_dimension_numbers<[2], [1], [1], [2], [0, 0, 0, 1, 1, 2], [0], [0]>} : vector<4x4x4xbf16>, vector<4x4x32xbf16>, vector<4x4x32xf32> -> vector<4x4x32xf32>
    "tpu.trace_stop"() : () -> ()
    %51 = vector.shape_cast %50 : vector<4x4x32xf32> to vector<16x32xf32>
    %52 = arith.truncf %51 : vector<16x32xf32> to vector<16x32xbf16>
    %c0_17 = arith.constant 0 : index
    %c0_18 = arith.constant 0 : index
    %53 = vector.load %arg8[%c0_17, %c0_18] : memref<32x32xbf16, #tpu.memory_space<vmem>>, vector<32x32xbf16>
    %cst_19 = arith.constant dense<0.000000e+00> : vector<16x32xf32>
    %54 = tpu.matmul %52, %53, %cst_19 {dimension_numbers = #tpu.dot_dimension_numbers<[1], [0], [0], [1], [0, 0, 1, 1], [], []>} : vector<16x32xbf16>, vector<32x32xbf16>, vector<16x32xf32> -> vector<16x32xf32>
    %55 = arith.addf %1, %54 : vector<16x32xf32>
    %c0_20 = arith.constant 0 : index
    %c0_21 = arith.constant 0 : index
    %56 = vector.load %arg9[%c0_20, %c0_21] : memref<1x32xf32, #tpu.memory_space<vmem>>, vector<1x32xf32>
    %57 = vector.broadcast %56 : vector<1x32xf32> to vector<16x32xf32>
    %58 = arith.addf %55, %57 : vector<16x32xf32>
    %cst_22 = arith.constant dense<0.000000e+00> : vector<16xf32>
    %59 = vector.multi_reduction <add>, %58, %cst_22 [1] : vector<16x32xf32> to vector<16xf32>
    %60 = vector.shape_cast %59 : vector<16xf32> to vector<16x1xf32>
    %cst_23 = arith.constant 3.200000e+01 : f32
    %61 = vector.broadcast %cst_23 : f32 to vector<16x1xf32>
    %62 = arith.divf %60, %61 : vector<16x1xf32>
    %63 = vector.broadcast %62 : vector<16x1xf32> to vector<16x32xf32>
    %64 = arith.subf %58, %63 : vector<16x32xf32>
    %65 = arith.mulf %64, %64 : vector<16x32xf32>
    %cst_24 = arith.constant dense<0.000000e+00> : vector<16xf32>
    %66 = vector.multi_reduction <add>, %65, %cst_24 [1] : vector<16x32xf32> to vector<16xf32>
    %67 = vector.shape_cast %66 : vector<16xf32> to vector<16x1xf32>
    %cst_25 = arith.constant 3.200000e+01 : f32
    %68 = vector.broadcast %cst_25 : f32 to vector<16x1xf32>
    %69 = arith.divf %67, %68 : vector<16x1xf32>
    %70 = vector.broadcast %62 : vector<16x1xf32> to vector<16x32xf32>
    %71 = arith.subf %58, %70 : vector<16x32xf32>
    %cst_26 = arith.constant 9.99999974E-6 : f32
    %72 = vector.broadcast %cst_26 : f32 to vector<16x1xf32>
    %73 = arith.addf %69, %72 : vector<16x1xf32>
    %74 = math.rsqrt %73 : vector<16x1xf32>
    %75 = vector.broadcast %74 : vector<16x1xf32> to vector<16x32xf32>
    %76 = arith.mulf %71, %75 : vector<16x32xf32>
    %c0_27 = arith.constant 0 : index
    %c0_28 = arith.constant 0 : index
    %77 = vector.load %arg10[%c0_27, %c0_28] : memref<1x32xf32, #tpu.memory_space<vmem>>, vector<1x32xf32>
    %78 = vector.broadcast %77 : vector<1x32xf32> to vector<16x32xf32>
    %79 = arith.mulf %76, %78 : vector<16x32xf32>
    %c0_29 = arith.constant 0 : index
    %c0_30 = arith.constant 0 : index
    %80 = vector.load %arg11[%c0_29, %c0_30] : memref<1x32xf32, #tpu.memory_space<vmem>>, vector<1x32xf32>
    %81 = vector.broadcast %80 : vector<1x32xf32> to vector<16x32xf32>
    %82 = arith.addf %79, %81 : vector<16x32xf32>
    %83 = arith.truncf %82 : vector<16x32xf32> to vector<16x32xbf16>
    %c0_31 = arith.constant 0 : index
    %c0_32 = arith.constant 0 : index
    %84 = vector.load %arg12[%c0_31, %c0_32] : memref<32x32xbf16, #tpu.memory_space<vmem>>, vector<32x32xbf16>
    %cst_33 = arith.constant dense<0.000000e+00> : vector<16x32xf32>
    %85 = tpu.matmul %83, %84, %cst_33 {dimension_numbers = #tpu.dot_dimension_numbers<[1], [0], [0], [1], [0, 0, 1, 1], [], []>} : vector<16x32xbf16>, vector<32x32xbf16>, vector<16x32xf32> -> vector<16x32xf32>
    %c0_34 = arith.constant 0 : index
    %c0_35 = arith.constant 0 : index
    %c0_36 = arith.constant 0 : index
    %86 = vector.load %arg3[%c0_34, %c0_35, %c0_36] : memref<1x128x64xbf16, #tpu.memory_space<vmem>>, vector<1x128x64xbf16>
    %87 = vector.shape_cast %86 : vector<1x128x64xbf16> to vector<128x64xbf16>
    %88 = vector.extract_strided_slice %87 {offsets = [0, 0], sizes = [128, 32], strides = [1, 1]} : vector<128x64xbf16> to vector<128x32xbf16>
    %89 = vector.extract_strided_slice %87 {offsets = [0, 32], sizes = [128, 32], strides = [1, 1]} : vector<128x64xbf16> to vector<128x32xbf16>
    %90 = arith.truncf %85 : vector<16x32xf32> to vector<16x32xbf16>
    "tpu.trace_start"() <{level = 10 : i32, message = "qd,kd->qk"}> : () -> ()
    %cst_37 = arith.constant dense<0.000000e+00> : vector<16x128xf32>
    %91 = tpu.matmul %90, %88, %cst_37 {dimension_numbers = #tpu.dot_dimension_numbers<[1], [1], [0], [0], [0, 0, 1, 0], [], []>} : vector<16x32xbf16>, vector<128x32xbf16>, vector<16x128xf32> -> vector<16x128xf32>
    "tpu.trace_stop"() : () -> ()
    %c0_38 = arith.constant 0 : index
    %c0_39 = arith.constant 0 : index
    %92 = vector.load %arg4[%c0_38, %c0_39] : memref<1x128xf32, #tpu.memory_space<vmem>>, vector<1x128xf32>
    %93 = vector.broadcast %92 : vector<1x128xf32> to vector<16x128xf32>
    %94 = arith.addf %91, %93 : vector<16x128xf32>
    %cst_40 = arith.constant dense<0xFF800000> : vector<16xf32>
    %95 = vector.multi_reduction <maximumf>, %94, %cst_40 [1] : vector<16x128xf32> to vector<16xf32>
    %96 = vector.shape_cast %95 : vector<16xf32> to vector<16x1xf32>
    %97 = vector.broadcast %96 : vector<16x1xf32> to vector<16x128xf32>
    %98 = arith.subf %94, %97 : vector<16x128xf32>
    %99 = math.exp %98 : vector<16x128xf32>
    %cst_41 = arith.constant dense<0.000000e+00> : vector<16xf32>
    %100 = vector.multi_reduction <add>, %99, %cst_41 [1] : vector<16x128xf32> to vector<16xf32>
    %101 = vector.shape_cast %100 : vector<16xf32> to vector<16x1xf32>
    %102 = tpu.reciprocal %101 {approx = true} : vector<16x1xf32> -> vector<16x1xf32>
    %103 = vector.broadcast %102 : vector<16x1xf32> to vector<16x128xf32>
    %104 = arith.mulf %99, %103 : vector<16x128xf32>
    %c0_42 = arith.constant 0 : index
    %c0_43 = arith.constant 0 : index
    %c0_44 = arith.constant 0 : index
    %105 = vector.load %arg24[%c0_42, %c0_43, %c0_44] : memref<1x16x128xf32, #tpu.memory_space<vmem>>, vector<1x16x128xf32>
    %106 = vector.shape_cast %105 : vector<1x16x128xf32> to vector<16x128xf32>
    %107 = vector.shape_cast %104 : vector<16x128xf32> to vector<1x16x128xf32>
    tpu.vector_store %arg24[%c0_42, %c0_43, %c0_44], %107 {strides = array<i32>} : memref<1x16x128xf32, #tpu.memory_space<vmem>>, vector<1x16x128xf32>,
    %108 = arith.truncf %104 : vector<16x128xf32> to vector<16x128xbf16>
    %cst_45 = arith.constant dense<0.000000e+00> : vector<16x32xf32>
    %109 = tpu.matmul %108, %89, %cst_45 {dimension_numbers = #tpu.dot_dimension_numbers<[1], [0], [0], [1], [0, 0, 1, 1], [], []>} : vector<16x128xbf16>, vector<128x32xbf16>, vector<16x32xf32> -> vector<16x32xf32>
    %110 = arith.truncf %109 : vector<16x32xf32> to vector<16x32xbf16>
    %c0_46 = arith.constant 0 : index
    %c0_47 = arith.constant 0 : index
    %111 = vector.load %arg13[%c0_46, %c0_47] : memref<32x32xbf16, #tpu.memory_space<vmem>>, vector<32x32xbf16>
    %cst_48 = arith.constant dense<0.000000e+00> : vector<16x32xf32>
    %112 = tpu.matmul %110, %111, %cst_48 {dimension_numbers = #tpu.dot_dimension_numbers<[1], [0], [0], [1], [0, 0, 1, 1], [], []>} : vector<16x32xbf16>, vector<32x32xbf16>, vector<16x32xf32> -> vector<16x32xf32>
    %113 = arith.addf %58, %112 : vector<16x32xf32>
    %c0_49 = arith.constant 0 : index
    %c0_50 = arith.constant 0 : index
    %114 = vector.load %arg14[%c0_49, %c0_50] : memref<1x32xf32, #tpu.memory_space<vmem>>, vector<1x32xf32>
    %115 = vector.broadcast %114 : vector<1x32xf32> to vector<16x32xf32>
    %116 = arith.addf %113, %115 : vector<16x32xf32>
    %cst_51 = arith.constant dense<0.000000e+00> : vector<16xf32>
    %117 = vector.multi_reduction <add>, %116, %cst_51 [1] : vector<16x32xf32> to vector<16xf32>
    %118 = vector.shape_cast %117 : vector<16xf32> to vector<16x1xf32>
    %cst_52 = arith.constant 3.200000e+01 : f32
    %119 = vector.broadcast %cst_52 : f32 to vector<16x1xf32>
    %120 = arith.divf %118, %119 : vector<16x1xf32>
    %121 = vector.broadcast %120 : vector<16x1xf32> to vector<16x32xf32>
    %122 = arith.subf %116, %121 : vector<16x32xf32>
    %123 = arith.mulf %122, %122 : vector<16x32xf32>
    %cst_53 = arith.constant dense<0.000000e+00> : vector<16xf32>
    %124 = vector.multi_reduction <add>, %123, %cst_53 [1] : vector<16x32xf32> to vector<16xf32>
    %125 = vector.shape_cast %124 : vector<16xf32> to vector<16x1xf32>
    %cst_54 = arith.constant 3.200000e+01 : f32
    %126 = vector.broadcast %cst_54 : f32 to vector<16x1xf32>
    %127 = arith.divf %125, %126 : vector<16x1xf32>
    %128 = vector.broadcast %120 : vector<16x1xf32> to vector<16x32xf32>
    %129 = arith.subf %116, %128 : vector<16x32xf32>
    %cst_55 = arith.constant 9.99999974E-6 : f32
    %130 = vector.broadcast %cst_55 : f32 to vector<16x1xf32>
    %131 = arith.addf %127, %130 : vector<16x1xf32>
    %132 = math.rsqrt %131 : vector<16x1xf32>
    %133 = vector.broadcast %132 : vector<16x1xf32> to vector<16x32xf32>
    %134 = arith.mulf %129, %133 : vector<16x32xf32>
    %c0_56 = arith.constant 0 : index
    %c0_57 = arith.constant 0 : index
    %135 = vector.load %arg15[%c0_56, %c0_57] : memref<1x32xf32, #tpu.memory_space<vmem>>, vector<1x32xf32>
    %136 = vector.broadcast %135 : vector<1x32xf32> to vector<16x32xf32>
    %137 = arith.mulf %134, %136 : vector<16x32xf32>
    %c0_58 = arith.constant 0 : index
    %c0_59 = arith.constant 0 : index
    %138 = vector.load %arg16[%c0_58, %c0_59] : memref<1x32xf32, #tpu.memory_space<vmem>>, vector<1x32xf32>
    %139 = vector.broadcast %138 : vector<1x32xf32> to vector<16x32xf32>
    %140 = arith.addf %137, %139 : vector<16x32xf32>
    %141 = arith.truncf %140 : vector<16x32xf32> to vector<16x32xbf16>
    %c0_60 = arith.constant 0 : index
    %c0_61 = arith.constant 0 : index
    %142 = vector.load %arg17[%c0_60, %c0_61] : memref<32x128xbf16, #tpu.memory_space<vmem>>, vector<32x128xbf16>
    %cst_62 = arith.constant dense<0.000000e+00> : vector<16x128xf32>
    %143 = tpu.matmul %141, %142, %cst_62 {dimension_numbers = #tpu.dot_dimension_numbers<[1], [0], [0], [1], [0, 0, 1, 1], [], []>} : vector<16x32xbf16>, vector<32x128xbf16>, vector<16x128xf32> -> vector<16x128xf32>
    %c0_63 = arith.constant 0 : index
    %c0_64 = arith.constant 0 : index
    %144 = vector.load %arg18[%c0_63, %c0_64] : memref<1x128xf32, #tpu.memory_space<vmem>>, vector<1x128xf32>
    %145 = vector.broadcast %144 : vector<1x128xf32> to vector<16x128xf32>
    %146 = arith.addf %143, %145 : vector<16x128xf32>
    %c0_65 = arith.constant 0 : index
    %c0_66 = arith.constant 0 : index
    %147 = vector.load %arg19[%c0_65, %c0_66] : memref<32x128xbf16, #tpu.memory_space<vmem>>, vector<32x128xbf16>
    %cst_67 = arith.constant dense<0.000000e+00> : vector<16x128xf32>
    %148 = tpu.matmul %141, %147, %cst_67 {dimension_numbers = #tpu.dot_dimension_numbers<[1], [0], [0], [1], [0, 0, 1, 1], [], []>} : vector<16x32xbf16>, vector<32x128xbf16>, vector<16x128xf32> -> vector<16x128xf32>
    %c0_68 = arith.constant 0 : index
    %c0_69 = arith.constant 0 : index
    %149 = vector.load %arg20[%c0_68, %c0_69] : memref<1x128xf32, #tpu.memory_space<vmem>>, vector<1x128xf32>
    %150 = vector.broadcast %149 : vector<1x128xf32> to vector<16x128xf32>
    %151 = arith.addf %148, %150 : vector<16x128xf32>
    %cst_70 = arith.constant 5.000000e-01 : f32
    %152 = vector.broadcast %cst_70 : f32 to vector<16x128xf32>
    %153 = arith.mulf %152, %151 : vector<16x128xf32>
    %cst_71 = arith.constant 0.707106769 : f32
    %154 = vector.broadcast %cst_71 : f32 to vector<16x128xf32>
    %155 = arith.mulf %151, %154 : vector<16x128xf32>
    %156 = math.erf %155 : vector<16x128xf32>
    %cst_72 = arith.constant 1.000000e+00 : f32
    %157 = vector.broadcast %cst_72 : f32 to vector<16x128xf32>
    %158 = arith.addf %157, %156 : vector<16x128xf32>
    %159 = arith.mulf %153, %158 : vector<16x128xf32>
    %160 = arith.mulf %146, %159 : vector<16x128xf32>
    %161 = arith.truncf %160 : vector<16x128xf32> to vector<16x128xbf16>
    %c0_73 = arith.constant 0 : index
    %c0_74 = arith.constant 0 : index
    %162 = vector.load %arg21[%c0_73, %c0_74] : memref<128x32xbf16, #tpu.memory_space<vmem>>, vector<128x32xbf16>
    %cst_75 = arith.constant dense<0.000000e+00> : vector<16x32xf32>
    %163 = tpu.matmul %161, %162, %cst_75 {dimension_numbers = #tpu.dot_dimension_numbers<[1], [0], [0], [1], [0, 0, 1, 1], [], []>} : vector<16x128xbf16>, vector<128x32xbf16>, vector<16x32xf32> -> vector<16x32xf32>
    %164 = arith.addf %116, %163 : vector<16x32xf32>
    %c0_76 = arith.constant 0 : index
    %c0_77 = arith.constant 0 : index
    %165 = vector.load %arg22[%c0_76, %c0_77] : memref<1x32xf32, #tpu.memory_space<vmem>>, vector<1x32xf32>
    %166 = vector.broadcast %165 : vector<1x32xf32> to vector<16x32xf32>
    %167 = arith.addf %164, %166 : vector<16x32xf32>
    %c0_78 = arith.constant 0 : index
    %c0_79 = arith.constant 0 : index
    %c0_80 = arith.constant 0 : index
    %168 = vector.load %arg23[%c0_78, %c0_79, %c0_80] : memref<1x16x32xf32, #tpu.memory_space<vmem>>, vector<1x16x32xf32>
    %169 = vector.shape_cast %168 : vector<1x16x32xf32> to vector<16x32xf32>
    %170 = vector.shape_cast %167 : vector<16x32xf32> to vector<1x16x32xf32>
    tpu.vector_store %arg23[%c0_78, %c0_79, %c0_80], %170 {strides = array<i32>} : memref<1x16x32xf32, #tpu.memory_space<vmem>>, vector<1x16x32xf32>,
    return
  }
  func.func @transform_0(%arg0: i32, %arg1: i32) -> (i32, i32, i32) {
    %c0_i32 = arith.constant 0 : i32
    %c0_i32_0 = arith.constant 0 : i32
    return %arg0, %arg1, %c0_i32 : i32, i32, i32
  }
  func.func @transform_1(%arg0: i32, %arg1: i32) -> (i32, i32, i32) {
    %c0_i32 = arith.constant 0 : i32
    %c0_i32_0 = arith.constant 0 : i32
    %c0_i32_1 = arith.constant 0 : i32
    return %arg0, %c0_i32, %c0_i32_0 : i32, i32, i32
  }
  func.func @transform_2(%arg0: i32, %arg1: i32) -> (i32, i32) {
    %c0_i32 = arith.constant 0 : i32
    %c0_i32_0 = arith.constant 0 : i32
    %c0_i32_1 = arith.constant 0 : i32
    return %c0_i32, %c0_i32_0 : i32, i32
  }
  func.func @transform_3(%arg0: i32, %arg1: i32) -> (i32, i32) {
    %c0_i32 = arith.constant 0 : i32
    %c0_i32_0 = arith.constant 0 : i32
    %c0_i32_1 = arith.constant 0 : i32
    return %c0_i32, %c0_i32_0 : i32, i32
  }
  func.func @transform_4(%arg0: i32, %arg1: i32) -> (i32, i32) {
    %c0_i32 = arith.constant 0 : i32
    %c0_i32_0 = arith.constant 0 : i32
    %c0_i32_1 = arith.constant 0 : i32
    return %c0_i32, %c0_i32_0 : i32, i32
  }
  func.func @transform_5(%arg0: i32, %arg1: i32) -> (i32, i32) {
    %c0_i32 = arith.constant 0 : i32
    %c0_i32_0 = arith.constant 0 : i32
    %c0_i32_1 = arith.constant 0 : i32
    return %c0_i32, %c0_i32_0 : i32, i32
  }
  func.func @transform_6(%arg0: i32, %arg1: i32) -> (i32, i32) {
    %c0_i32 = arith.constant 0 : i32
    %c0_i32_0 = arith.constant 0 : i32
    %c0_i32_1 = arith.constant 0 : i32
    return %c0_i32, %c0_i32_0 : i32, i32
  }
  func.func @transform_7(%arg0: i32, %arg1: i32) -> (i32, i32) {
    %c0_i32 = arith.constant 0 : i32
    %c0_i32_0 = arith.constant 0 : i32
    %c0_i32_1 = arith.constant 0 : i32
    return %c0_i32, %c0_i32_0 : i32, i32
  }
  func.func @transform_8(%arg0: i32, %arg1: i32) -> (i32, i32) {
    %c0_i32 = arith.constant 0 : i32
    %c0_i32_0 = arith.constant 0 : i32
    %c0_i32_1 = arith.constant 0 : i32
    return %c0_i32, %c0_i32_0 : i32, i32
  }
  func.func @transform_9(%arg0: i32, %arg1: i32) -> (i32, i32) {
    %c0_i32 = arith.constant 0 : i32
    %c0_i32_0 = arith.constant 0 : i32
    %c0_i32_1 = arith.constant 0 : i32
    return %c0_i32, %c0_i32_0 : i32, i32
  }
  func.func @transform_10(%arg0: i32, %arg1: i32) -> (i32, i32) {
    %c0_i32 = arith.constant 0 : i32
    %c0_i32_0 = arith.constant 0 : i32
    %c0_i32_1 = arith.constant 0 : i32
    return %c0_i32, %c0_i32_0 : i32, i32
  }
  func.func @transform_11(%arg0: i32, %arg1: i32) -> (i32, i32) {
    %c0_i32 = arith.constant 0 : i32
    %c0_i32_0 = arith.constant 0 : i32
    %c0_i32_1 = arith.constant 0 : i32
    return %c0_i32, %c0_i32_0 : i32, i32
  }
  func.func @transform_12(%arg0: i32, %arg1: i32) -> (i32, i32) {
    %c0_i32 = arith.constant 0 : i32
    %c0_i32_0 = arith.constant 0 : i32
    %c0_i32_1 = arith.constant 0 : i32
    return %c0_i32, %c0_i32_0 : i32, i32
  }
  func.func @transform_13(%arg0: i32, %arg1: i32) -> (i32, i32) {
    %c0_i32 = arith.constant 0 : i32
    %c0_i32_0 = arith.constant 0 : i32
    %c0_i32_1 = arith.constant 0 : i32
    return %c0_i32, %c0_i32_0 : i32, i32
  }
  func.func @transform_14(%arg0: i32, %arg1: i32) -> (i32, i32) {
    %c0_i32 = arith.constant 0 : i32
    %c0_i32_0 = arith.constant 0 : i32
    %c0_i32_1 = arith.constant 0 : i32
    return %c0_i32, %c0_i32_0 : i32, i32
  }
  func.func @transform_15(%arg0: i32, %arg1: i32) -> (i32, i32) {
    %c0_i32 = arith.constant 0 : i32
    %c0_i32_0 = arith.constant 0 : i32
    %c0_i32_1 = arith.constant 0 : i32
    return %c0_i32, %c0_i32_0 : i32, i32
  }
  func.func @transform_16(%arg0: i32, %arg1: i32) -> (i32, i32) {
    %c0_i32 = arith.constant 0 : i32
    %c0_i32_0 = arith.constant 0 : i32
    %c0_i32_1 = arith.constant 0 : i32
    return %c0_i32, %c0_i32_0 : i32, i32
  }
  func.func @transform_17(%arg0: i32, %arg1: i32) -> (i32, i32) {
    %c0_i32 = arith.constant 0 : i32
    %c0_i32_0 = arith.constant 0 : i32
    %c0_i32_1 = arith.constant 0 : i32
    return %c0_i32, %c0_i32_0 : i32, i32
  }
  func.func @transform_18(%arg0: i32, %arg1: i32) -> (i32, i32) {
    %c0_i32 = arith.constant 0 : i32
    %c0_i32_0 = arith.constant 0 : i32
    %c0_i32_1 = arith.constant 0 : i32
    return %c0_i32, %c0_i32_0 : i32, i32
  }
  func.func @transform_19(%arg0: i32, %arg1: i32) -> (i32, i32) {
    %c0_i32 = arith.constant 0 : i32
    %c0_i32_0 = arith.constant 0 : i32
    %c0_i32_1 = arith.constant 0 : i32
    return %c0_i32, %c0_i32_0 : i32, i32
  }
  func.func @transform_20(%arg0: i32, %arg1: i32) -> (i32, i32) {
    %c0_i32 = arith.constant 0 : i32
    %c0_i32_0 = arith.constant 0 : i32
    %c0_i32_1 = arith.constant 0 : i32
    return %c0_i32, %c0_i32_0 : i32, i32
  }
  func.func @transform_21(%arg0: i32, %arg1: i32) -> (i32, i32, i32) {
    %c0_i32 = arith.constant 0 : i32
    %c0_i32_0 = arith.constant 0 : i32
    return %arg0, %arg1, %c0_i32 : i32, i32, i32
  }
  func.func @transform_22(%arg0: i32, %arg1: i32) -> (i32, i32, i32) {
    %c0_i32 = arith.constant 0 : i32
    %c0_i32_0 = arith.constant 0 : i32
    return %arg0, %arg1, %c0_i32 : i32, i32, i32
  }
}

module attributes {stable_mosaic.version = 11 : i64} {
  func.func @_head_kernel(%arg0: i32, %arg1: memref<32x32xf32, #tpu.memory_space<vmem>>, %arg2: memref<32x3xf32, #tpu.memory_space<vmem>>, %arg3: memref<32x64xbf16, #tpu.memory_space<vmem>>, %arg4: memref<3x64xbf16, #tpu.memory_space<vmem>>, %arg5: memref<1x64xf32, #tpu.memory_space<vmem>>, %arg6: memref<64x128xbf16, #tpu.memory_space<vmem>>, %arg7: memref<1x128xf32, #tpu.memory_space<vmem>>, %arg8: memref<32x128xf32, #tpu.memory_space<vmem>>) attributes {dimension_semantics = [#tpu.dimension_semantics<parallel>], iteration_bounds = array<i64: 1>, scalar_prefetch = 0 : i64, scratch_operands = 0 : i64, tpu.core_type = #tpu.core_type<tc>, window_params = [{transform_indices = @transform_0, window_bounds = array<i64: 32, 32>}, {transform_indices = @transform_1, window_bounds = array<i64: 32, 3>}, {pipeline_mode = #tpu.pipeline_mode<synchronous>, transform_indices = @transform_2, window_bounds = array<i64: 32, 64>}, {pipeline_mode = #tpu.pipeline_mode<synchronous>, transform_indices = @transform_3, window_bounds = array<i64: 3, 64>}, {pipeline_mode = #tpu.pipeline_mode<synchronous>, transform_indices = @transform_4, window_bounds = array<i64: 1, 64>}, {pipeline_mode = #tpu.pipeline_mode<synchronous>, transform_indices = @transform_5, window_bounds = array<i64: 64, 128>}, {pipeline_mode = #tpu.pipeline_mode<synchronous>, transform_indices = @transform_6, window_bounds = array<i64: 1, 128>}, {transform_indices = @transform_7, window_bounds = array<i64: 32, 128>}]} {
    %c0 = arith.constant 0 : index
    %c0_0 = arith.constant 0 : index
    %0 = vector.load %arg1[%c0, %c0_0] : memref<32x32xf32, #tpu.memory_space<vmem>>, vector<32x32xf32>
    %1 = arith.truncf %0 : vector<32x32xf32> to vector<32x32xbf16>
    %c0_1 = arith.constant 0 : index
    %c0_2 = arith.constant 0 : index
    %2 = vector.load %arg3[%c0_1, %c0_2] : memref<32x64xbf16, #tpu.memory_space<vmem>>, vector<32x64xbf16>
    %cst = arith.constant dense<0.000000e+00> : vector<32x64xf32>
    %3 = tpu.matmul %1, %2, %cst {dimension_numbers = #tpu.dot_dimension_numbers<[1], [0], [0], [1], [0, 0, 1, 1], [], []>} : vector<32x32xbf16>, vector<32x64xbf16>, vector<32x64xf32> -> vector<32x64xf32>
    %c0_3 = arith.constant 0 : index
    %c0_4 = arith.constant 0 : index
    %4 = vector.load %arg2[%c0_3, %c0_4] : memref<32x3xf32, #tpu.memory_space<vmem>>, vector<32x3xf32>
    %5 = arith.truncf %4 : vector<32x3xf32> to vector<32x3xbf16>
    %c0_5 = arith.constant 0 : index
    %c0_6 = arith.constant 0 : index
    %6 = vector.load %arg4[%c0_5, %c0_6] : memref<3x64xbf16, #tpu.memory_space<vmem>>, vector<3x64xbf16>
    %cst_7 = arith.constant dense<0.000000e+00> : vector<32x64xf32>
    %7 = tpu.matmul %5, %6, %cst_7 {dimension_numbers = #tpu.dot_dimension_numbers<[1], [0], [0], [1], [0, 0, 1, 1], [], []>} : vector<32x3xbf16>, vector<3x64xbf16>, vector<32x64xf32> -> vector<32x64xf32>
    %8 = arith.addf %3, %7 : vector<32x64xf32>
    %c0_8 = arith.constant 0 : index
    %c0_9 = arith.constant 0 : index
    %9 = vector.load %arg5[%c0_8, %c0_9] : memref<1x64xf32, #tpu.memory_space<vmem>>, vector<1x64xf32>
    %10 = vector.broadcast %9 : vector<1x64xf32> to vector<32x64xf32>
    %11 = arith.addf %8, %10 : vector<32x64xf32>
    %cst_10 = arith.constant 2.000000e+01 : f32
    %12 = vector.broadcast %cst_10 : f32 to vector<32x64xf32>
    %13 = arith.cmpf ogt, %11, %12 : vector<32x64xf32>
    %cst_11 = arith.constant 2.000000e+01 : f32
    %14 = vector.broadcast %cst_11 : f32 to vector<32x64xf32>
    %15 = arith.minimumf %11, %14 : vector<32x64xf32>
    %16 = math.exp %15 : vector<32x64xf32>
    %17 = math.log1p %16 : vector<32x64xf32>
    %18 = arith.select %13, %11, %17 : vector<32x64xi1>, vector<32x64xf32>
    %19 = arith.truncf %18 : vector<32x64xf32> to vector<32x64xbf16>
    %c0_12 = arith.constant 0 : index
    %c0_13 = arith.constant 0 : index
    %20 = vector.load %arg6[%c0_12, %c0_13] : memref<64x128xbf16, #tpu.memory_space<vmem>>, vector<64x128xbf16>
    %cst_14 = arith.constant dense<0.000000e+00> : vector<32x128xf32>
    %21 = tpu.matmul %19, %20, %cst_14 {dimension_numbers = #tpu.dot_dimension_numbers<[1], [0], [0], [1], [0, 0, 1, 1], [], []>} : vector<32x64xbf16>, vector<64x128xbf16>, vector<32x128xf32> -> vector<32x128xf32>
    %c0_15 = arith.constant 0 : index
    %c0_16 = arith.constant 0 : index
    %22 = vector.load %arg7[%c0_15, %c0_16] : memref<1x128xf32, #tpu.memory_space<vmem>>, vector<1x128xf32>
    %23 = vector.broadcast %22 : vector<1x128xf32> to vector<32x128xf32>
    %24 = arith.addf %21, %23 : vector<32x128xf32>
    %c0_17 = arith.constant 0 : index
    %c0_18 = arith.constant 0 : index
    %25 = vector.load %arg8[%c0_17, %c0_18] : memref<32x128xf32, #tpu.memory_space<vmem>>, vector<32x128xf32>
    tpu.vector_store %arg8[%c0_17, %c0_18], %24 {strides = array<i32>} : memref<32x128xf32, #tpu.memory_space<vmem>>, vector<32x128xf32>,
    return
  }
  func.func @transform_0(%arg0: i32) -> (i32, i32) {
    %c0_i32 = arith.constant 0 : i32
    %c0_i32_0 = arith.constant 0 : i32
    return %arg0, %c0_i32 : i32, i32
  }
  func.func @transform_1(%arg0: i32) -> (i32, i32) {
    %c0_i32 = arith.constant 0 : i32
    %c0_i32_0 = arith.constant 0 : i32
    return %arg0, %c0_i32 : i32, i32
  }
  func.func @transform_2(%arg0: i32) -> (i32, i32) {
    %c0_i32 = arith.constant 0 : i32
    %c0_i32_0 = arith.constant 0 : i32
    %c0_i32_1 = arith.constant 0 : i32
    return %c0_i32, %c0_i32_0 : i32, i32
  }
  func.func @transform_3(%arg0: i32) -> (i32, i32) {
    %c0_i32 = arith.constant 0 : i32
    %c0_i32_0 = arith.constant 0 : i32
    %c0_i32_1 = arith.constant 0 : i32
    return %c0_i32, %c0_i32_0 : i32, i32
  }
  func.func @transform_4(%arg0: i32) -> (i32, i32) {
    %c0_i32 = arith.constant 0 : i32
    %c0_i32_0 = arith.constant 0 : i32
    %c0_i32_1 = arith.constant 0 : i32
    return %c0_i32, %c0_i32_0 : i32, i32
  }
  func.func @transform_5(%arg0: i32) -> (i32, i32) {
    %c0_i32 = arith.constant 0 : i32
    %c0_i32_0 = arith.constant 0 : i32
    %c0_i32_1 = arith.constant 0 : i32
    return %c0_i32, %c0_i32_0 : i32, i32
  }
  func.func @transform_6(%arg0: i32) -> (i32, i32) {
    %c0_i32 = arith.constant 0 : i32
    %c0_i32_0 = arith.constant 0 : i32
    %c0_i32_1 = arith.constant 0 : i32
    return %c0_i32, %c0_i32_0 : i32, i32
  }
  func.func @transform_7(%arg0: i32) -> (i32, i32) {
    %c0_i32 = arith.constant 0 : i32
    %c0_i32_0 = arith.constant 0 : i32
    return %arg0, %c0_i32 : i32, i32
  }
}

</mosaic_0001>

<llo_original>
// kernel: _lambda_.5
$region0: #{_lambda_.5}
  #allocation0 [shape = 'u32[]', space=smem, size = 0x4, offset = 0x4, fixed_abs, tag = 'smem constant byte address 0x4 - core index']
  #allocation1 [shape = 'u32[144,128]{1,0:T(1,128)}', space=vmem, size = 0x12000, scoped, tag = 'internal scratch']
  %s0 = inlined_call_operand.vmem [shape: f32[32,3], index: 0, kind: input, shape index: {}]
  %s1 = inlined_call_operand.vmem [shape: bf16[3,32], index: 1, kind: input, shape index: {}]
  %s2 = inlined_call_operand.vmem [shape: f32[1,32], index: 2, kind: input, shape index: {}]
  %s3 = inlined_call_operand.vmem [shape: f32[32,32], index: 3, kind: output, shape index: {}]
  %s4 = sld [smem:[#allocation0]]
  $region22: #{_lambda_.5} parent=0
    _
  %s6 = ssub.s32 1, %s4
  %s7 = scalar_select 0, %s6, %s4
  // Predicated region
  $region2: #{_lambda_.5} parent=0 // pred_check
    _
  $region3: #{_lambda_.5} parent=0 // pred_check_branch
    %9 = sbr.rel (0) target = $region5
  $region4: #{_lambda_.5} parent=0 // pred_region
    _
  $region5: #{_lambda_.5} parent=0 // pred_fallthru
    _
  // Predicated region
  $region6: #{_lambda_.5} parent=0 // pred_check
    _
  $region7: #{_lambda_.5} parent=0 // pred_check_branch
    %11 = sbr.rel (0) target = $region9
  $region8: #{_lambda_.5} parent=0 // pred_region
    _
  $region9: #{_lambda_.5} parent=0 // pred_fallthru
    _
  // Predicated region
  $region10: #{_lambda_.5} parent=0 // pred_check
    _
  $region11: #{_lambda_.5} parent=0 // pred_check_branch
    %13 = sbr.rel (0) target = $region13
  $region12: #{_lambda_.5} parent=0 // pred_region
    _
  $region13: #{_lambda_.5} parent=0 // pred_fallthru
    _
  %v15 = vld [vmem:[%s0] sm:$0xff]
  %v16 = vld [vmem:[%s0 + $0x8] sm:$0xff]
  %v17 = vld [vmem:[%s0 + $0x10] sm:$0xff]
  %v18 = vld [vmem:[%s0 + $0x18] sm:$0xff]
  %v19 = vpack.c.bf16 %v16, %v15
  %v20 = vpack.c.bf16 %v18, %v17
  %v21 = vld [vmem:[%s1] sm:$0x3]
  %v22 = vld [vmem:[%s2] sm:$0x1]
  %v24 = vlaneseq
  %v25 = vshrl.u32 %v24, 7
  %v26 = vsub.s32 0, %v25
  %v27 = vrot.slane %v22, %v26
  %vm29 = vcmask 23552
  %v31 = vsel %vm29, %v19, 0
  %v34 = vsel %vm29, %v20, 0
  %vm36 = vcmask 1040384
  %vm37 = vcmask 1041408
  %v38 = vsel %vm36, 4294967295, 65535
  %v39 = vsel %vm37, %v38, 0
  %v41 = vand.u32 %v21, %v39
  %43 = vmatprep.subr.bf16.mxu0 0
  %44 = vmatpush1.bf16.msra.mxu0 %v41
  %45 = vmatprep.subr.bf16.mxu0 0
  %46 = vmatpush1.bf16.msra.mxu0 0
  %47 = vmatprep.subr.bf16.mxu0 0
  %48 = vmatpush1.bf16.msra.mxu0 0
  %49 = vmatprep.subr.bf16.mxu0 0
  %50 = vmatpush1.bf16.msra.mxu0 0
  %51 = vmatprep.subr.bf16.mxu0 0
  %52 = vmatpush1.bf16.msra.mxu0 0
  %53 = vmatprep.subr.bf16.mxu0 0
  %54 = vmatpush1.bf16.msra.mxu0 0
  %55 = vmatprep.subr.bf16.mxu0 0
  %56 = vmatpush1.bf16.msra.mxu0 0
  %57 = vmatprep.subr.bf16.mxu0 0
  %58 = vmatpush1.bf16.msra.mxu0 0
  %59 = vmatprep.subr.bf16.mxu0 0
  %60 = vmatpush1.bf16.msra.mxu0 0
  %61 = vmatprep.subr.bf16.mxu0 0
  %62 = vmatpush1.bf16.msra.mxu0 0
  %63 = vmatprep.subr.bf16.mxu0 0
  %64 = vmatpush1.bf16.msra.mxu0 0
  %65 = vmatprep.subr.bf16.mxu0 0
  %66 = vmatpush1.bf16.msra.mxu0 0
  %67 = vmatprep.subr.bf16.mxu0 0
  %68 = vmatpush1.bf16.msra.mxu0 0
  %69 = vmatprep.subr.bf16.mxu0 0
  %70 = vmatpush1.bf16.msra.mxu0 0
  %71 = vmatprep.subr.bf16.mxu0 0
  %72 = vmatpush1.bf16.msra.mxu0 0
  %73 = vmatprep.subr.bf16.mxu0 0
  %74 = vmatpush1.bf16.msra.mxu0 0
  %75 = vmatprep.mubr.bf16.mxu0 0
  %76 = vmatmul.mubr.bf16.gmra.mrb[0].mxu0 %v31
  %v77 = vpop.f32.mrb[0].mxu0
  %v78 = vadd.f32 %v27, %v77
  %v79 = vpop.f32.mrb[0].mxu0
  %v80 = vpop.f32.mrb[0].mxu0
  %v81 = vadd.f32 %v27, %v80
  %v82 = vpop.f32.mrb[0].mxu0
  %83 = vmatprep.mubr.bf16.mxu0 0
  %84 = vmatmul.mubr.bf16.gmra.mrb[0].mxu0 %v34
  %v85 = vpop.f32.mrb[0].mxu0
  %v86 = vadd.f32 %v27, %v85
  %v87 = vpop.f32.mrb[0].mxu0
  %v88 = vpop.f32.mrb[0].mxu0
  %v89 = vadd.f32 %v27, %v88
  %v90 = vpop.f32.mrb[0].mxu0
  %91 = vdwg.mxu0
  %vm92 = vcmask 261120
  %93 = vst.msk [vmem:[%s3] sm:$0xff] %vm92, %v78
  %94 = vst.msk [vmem:[%s3 + $0x8] sm:$0xff] %vm92, %v81
  %95 = vst.msk [vmem:[%s3 + $0x10] sm:$0xff] %vm92, %v86
  %96 = vst.msk [vmem:[%s3 + $0x18] sm:$0xff] %vm92, %v89
  // Predicated region
  $region14: #{_lambda_.5} parent=0 // pred_check
    _
  $region15: #{_lambda_.5} parent=0 // pred_check_branch
    %98 = sbr.rel (0) target = $region17
  $region16: #{_lambda_.5} parent=0 // pred_region
    _
  $region17: #{_lambda_.5} parent=0 // pred_fallthru
    _
  // Predicated region
  $region18: #{_lambda_.5} parent=0 // pred_check
    _
  $region19: #{_lambda_.5} parent=0 // pred_check_branch
    %100 = sbr.rel (0) target = $region21
  $region20: #{_lambda_.5} parent=0 // pred_region
    _
  $region21: #{_lambda_.5} parent=0 // pred_fallthru
    _

// kernel: _lambda_.6
$region0: #{_lambda_.6}
  #allocation0 [shape = 'u32[]', space=smem, size = 0x4, offset = 0x4, fixed_abs, tag = 'smem constant byte address 0x4 - core index']
  #allocation1 [shape = 'u32[144,128]{1,0:T(1,128)}', space=vmem, size = 0x12000, scoped, tag = 'internal scratch']
  %s0 = inlined_call_operand.vmem [shape: f32[256,64], index: 0, kind: input, shape index: {}]
  %s1 = inlined_call_operand.vmem [shape: bf16[64,128], index: 1, kind: input, shape index: {}]
  %s2 = inlined_call_operand.vmem [shape: f32[1,128], index: 2, kind: input, shape index: {}]
  %s3 = inlined_call_operand.vmem [shape: bf16[256,128], index: 3, kind: output, shape index: {}]
  %s4 = sld [smem:[#allocation0]]
  $region22: #{_lambda_.6} parent=0
    _
  %s6 = ssub.s32 1, %s4
  %s7 = scalar_select 0, %s6, %s4
  // Predicated region
  $region2: #{_lambda_.6} parent=0 // pred_check
    _
  $region3: #{_lambda_.6} parent=0 // pred_check_branch
    %9 = sbr.rel (0) target = $region5
  $region4: #{_lambda_.6} parent=0 // pred_region
    _
  $region5: #{_lambda_.6} parent=0 // pred_fallthru
    _
  // Predicated region
  $region6: #{_lambda_.6} parent=0 // pred_check
    _
  $region7: #{_lambda_.6} parent=0 // pred_check_branch
    %11 = sbr.rel (0) target = $region9
  $region8: #{_lambda_.6} parent=0 // pred_region
    _
  $region9: #{_lambda_.6} parent=0 // pred_fallthru
    _
  // Predicated region
  $region10: #{_lambda_.6} parent=0 // pred_check
    _
  $region11: #{_lambda_.6} parent=0 // pred_check_branch
    %13 = sbr.rel (0) target = $region13
  $region12: #{_lambda_.6} parent=0 // pred_region
    _
  $region13: #{_lambda_.6} parent=0 // pred_fallthru
    _
  %v15 = vld [vmem:[%s0] sm:$0xff]
  %v16 = vld [vmem:[%s0 + $0x8] sm:$0xff]
  %v17 = vld [vmem:[%s0 + $0x10] sm:$0xff]
  %v18 = vld [vmem:[%s0 + $0x18] sm:$0xff]
  %v19 = vld [vmem:[%s0 + $0x20] sm:$0xff]
  %v20 = vld [vmem:[%s0 + $0x28] sm:$0xff]
  %v21 = vld [vmem:[%s0 + $0x30] sm:$0xff]
  %v22 = vld [vmem:[%s0 + $0x38] sm:$0xff]
  %v23 = vld [vmem:[%s0 + $0x40] sm:$0xff]
  %v24 = vld [vmem:[%s0 + $0x48] sm:$0xff]
  %v25 = vld [vmem:[%s0 + $0x50] sm:$0xff]
  %v26 = vld [vmem:[%s0 + $0x58] sm:$0xff]
  %v27 = vld [vmem:[%s0 + $0x60] sm:$0xff]
  %v28 = vld [vmem:[%s0 + $0x68] sm:$0xff]
  %v29 = vld [vmem:[%s0 + $0x70] sm:$0xff]
  %v30 = vld [vmem:[%s0 + $0x78] sm:$0xff]
  %v31 = vld [vmem:[%s0 + $0x80] sm:$0xff]
  %v32 = vld [vmem:[%s0 + $0x88] sm:$0xff]
  %v33 = vld [vmem:[%s0 + $0x90] sm:$0xff]
  %v34 = vld [vmem:[%s0 + $0x98] sm:$0xff]
  %v35 = vld [vmem:[%s0 + $0xa0] sm:$0xff]
  %v36 = vld [vmem:[%s0 + $0xa8] sm:$0xff]
  %v37 = vld [vmem:[%s0 + $0xb0] sm:$0xff]
  %v38 = vld [vmem:[%s0 + $0xb8] sm:$0xff]
  %v39 = vld [vmem:[%s0 + $0xc0] sm:$0xff]
  %v40 = vld [vmem:[%s0 + $0xc8] sm:$0xff]
  %v41 = vld [vmem:[%s0 + $0xd0] sm:$0xff]
  %v42 = vld [vmem:[%s0 + $0xd8] sm:$0xff]
  %v43 = vld [vmem:[%s0 + $0xe0] sm:$0xff]
  %v44 = vld [vmem:[%s0 + $0xe8] sm:$0xff]
  %v45 = vld [vmem:[%s0 + $0xf0] sm:$0xff]
  %v46 = vld [vmem:[%s0 + $0xf8] sm:$0xff]
  %v47 = vpack.c.bf16 %v16, %v15
  %v48 = vpack.c.bf16 %v18, %v17
  %v49 = vpack.c.bf16 %v20, %v19
  %v50 = vpack.c.bf16 %v22, %v21
  %v51 = vpack.c.bf16 %v24, %v23
  %v52 = vpack.c.bf16 %v26, %v25
  %v53 = vpack.c.bf16 %v28, %v27
  %v54 = vpack.c.bf16 %v30, %v29
  %v55 = vpack.c.bf16 %v32, %v31
  %v56 = vpack.c.bf16 %v34, %v33
  %v57 = vpack.c.bf16 %v36, %v35
  %v58 = vpack.c.bf16 %v38, %v37
  %v59 = vpack.c.bf16 %v40, %v39
  %v60 = vpack.c.bf16 %v42, %v41
  %v61 = vpack.c.bf16 %v44, %v43
  %v62 = vpack.c.bf16 %v46, %v45
  %v63 = vld [vmem:[%s1] sm:$0xf]
  %v64 = vld [vmem:[%s1 + $0x4] sm:$0xf]
  %v65 = vld [vmem:[%s1 + $0x8] sm:$0xf]
  %v66 = vld [vmem:[%s1 + $0xc] sm:$0xf]
  %v67 = vld [vmem:[%s1 + $0x10] sm:$0xf]
  %v68 = vld [vmem:[%s1 + $0x14] sm:$0xf]
  %v69 = vld [vmem:[%s1 + $0x18] sm:$0xf]
  %v70 = vld [vmem:[%s1 + $0x1c] sm:$0xf]
  %v71 = vld [vmem:[%s2] sm:$0x1]
  %v73 = vlaneseq
  %v74 = vshrl.u32 %v73, 7
  %v75 = vsub.s32 0, %v74
  %v76 = vrot.slane %v71, %v75
  %v86 = vunpack.c.l.b16 %v63
  %v87 = vunpack.c.l.b16 %v64
  %v88 = vunpack.c.l.b16 %v65
  %v89 = vunpack.c.l.b16 %v66
  %v90 = vunpack.c.l.b16 %v67
  %v91 = vunpack.c.l.b16 %v68
  %v92 = vunpack.c.l.b16 %v69
  %v93 = vunpack.c.l.b16 %v70
  %v94 = vpack.c.b16 %v87, %v86
  %v95 = vpack.c.b16 %v89, %v88
  %v96 = vpack.c.b16 %v91, %v90
  %v97 = vpack.c.b16 %v93, %v92
  %vm102 = vcmask 523264
  %v104 = vsel %vm102, %v47, 0
  %v107 = vsel %vm102, %v48, 0
  %v110 = vsel %vm102, %v49, 0
  %v113 = vsel %vm102, %v50, 0
  %v116 = vsel %vm102, %v51, 0
  %v119 = vsel %vm102, %v52, 0
  %v122 = vsel %vm102, %v53, 0
  %v125 = vsel %vm102, %v54, 0
  %v128 = vsel %vm102, %v55, 0
  %v131 = vsel %vm102, %v56, 0
  %v134 = vsel %vm102, %v57, 0
  %v137 = vsel %vm102, %v58, 0
  %v140 = vsel %vm102, %v59, 0
  %v143 = vsel %vm102, %v60, 0
  %v146 = vsel %vm102, %v61, 0
  %v149 = vsel %vm102, %v62, 0
  %151 = vmatprep.subr.bf16.mxu0 0
  %152 = vmatpush1.bf16.msra.mxu0 %v94
  %153 = vmatprep.subr.bf16.mxu0 0
  %154 = vmatpush1.bf16.msra.mxu0 %v95
  %155 = vmatprep.subr.bf16.mxu0 0
  %156 = vmatpush1.bf16.msra.mxu0 %v96
  %157 = vmatprep.subr.bf16.mxu0 0
  %158 = vmatpush1.bf16.msra.mxu0 %v97
  %159 = vmatprep.subr.bf16.mxu0 0
  %160 = vmatpush1.bf16.msra.mxu0 0
  %161 = vmatprep.subr.bf16.mxu0 0
  %162 = vmatpush1.bf16.msra.mxu0 0
  %163 = vmatprep.subr.bf16.mxu0 0
  %164 = vmatpush1.bf16.msra.mxu0 0
  %165 = vmatprep.subr.bf16.mxu0 0
  %166 = vmatpush1.bf16.msra.mxu0 0
  %167 = vmatprep.subr.bf16.mxu0 0
  %168 = vmatpush1.bf16.msra.mxu0 0
  %169 = vmatprep.subr.bf16.mxu0 0
  %170 = vmatpush1.bf16.msra.mxu0 0
  %171 = vmatprep.subr.bf16.mxu0 0
  %172 = vmatpush1.bf16.msra.mxu0 0
  %173 = vmatprep.subr.bf16.mxu0 0
  %174 = vmatpush1.bf16.msra.mxu0 0
  %175 = vmatprep.subr.bf16.mxu0 0
  %176 = vmatpush1.bf16.msra.mxu0 0
  %177 = vmatprep.subr.bf16.mxu0 0
  %178 = vmatpush1.bf16.msra.mxu0 0
  %179 = vmatprep.subr.bf16.mxu0 0
  %180 = vmatpush1.bf16.msra.mxu0 0
  %181 = vmatprep.subr.bf16.mxu0 0
  %182 = vmatpush1.bf16.msra.mxu0 0
  %183 = vmatprep.mubr.bf16.mxu0 0
  %184 = vmatmul.mubr.bf16.gmra.mrb[0].mxu0 %v104
  %v185 = vpop.f32.mrb[0].mxu0
  %v186 = vadd.f32 %v76, %v185
  %v187 = vpop.f32.mrb[0].mxu0
  %v188 = vpop.f32.mrb[0].mxu0
  %v189 = vadd.f32 %v76, %v188
  %v190 = vpop.f32.mrb[0].mxu0
  %191 = vmatprep.mubr.bf16.mxu0 0
  %192 = vmatmul.mubr.bf16.gmra.mrb[0].mxu0 %v107
  %v193 = vpop.f32.mrb[0].mxu0
  %v194 = vadd.f32 %v76, %v193
  %v195 = vpop.f32.mrb[0].mxu0
  %v196 = vpop.f32.mrb[0].mxu0
  %v197 = vadd.f32 %v76, %v196
  %v198 = vpop.f32.mrb[0].mxu0
  %199 = vmatprep.mubr.bf16.mxu0 0
  %200 = vmatmul.mubr.bf16.gmra.mrb[0].mxu0 %v110
  %v201 = vpop.f32.mrb[0].mxu0
  %v202 = vadd.f32 %v76, %v201
  %v203 = vpop.f32.mrb[0].mxu0
  %v204 = vpop.f32.mrb[0].mxu0
  %v205 = vadd.f32 %v76, %v204
  %v206 = vpop.f32.mrb[0].mxu0
  %207 = vmatprep.mubr.bf16.mxu0 0
  %208 = vmatmul.mubr.bf16.gmra.mrb[0].mxu0 %v113
  %v209 = vpop.f32.mrb[0].mxu0
  %v210 = vadd.f32 %v76, %v209
  %v211 = vpop.f32.mrb[0].mxu0
  %v212 = vpop.f32.mrb[0].mxu0
  %v213 = vadd.f32 %v76, %v212
  %v214 = vpop.f32.mrb[0].mxu0
  %215 = vmatprep.mubr.bf16.mxu0 0
  %216 = vmatmul.mubr.bf16.gmra.mrb[0].mxu0 %v116
  %v217 = vpop.f32.mrb[0].mxu0
  %v218 = vadd.f32 %v76, %v217
  %v219 = vpop.f32.mrb[0].mxu0
  %v220 = vpop.f32.mrb[0].mxu0
  %v221 = vadd.f32 %v76, %v220
  %v222 = vpop.f32.mrb[0].mxu0
  %223 = vmatprep.mubr.bf16.mxu0 0
  %224 = vmatmul.mubr.bf16.gmra.mrb[0].mxu0 %v119
  %v225 = vpop.f32.mrb[0].mxu0
  %v226 = vadd.f32 %v76, %v225
  %v227 = vpop.f32.mrb[0].mxu0
  %v228 = vpop.f32.mrb[0].mxu0
  %v229 = vadd.f32 %v76, %v228
  %v230 = vpop.f32.mrb[0].mxu0
  %231 = vmatprep.mubr.bf16.mxu0 0
  %232 = vmatmul.mubr.bf16.gmra.mrb[0].mxu0 %v122
  %v233 = vpop.f32.mrb[0].mxu0
  %v234 = vadd.f32 %v76, %v233
  %v235 = vpop.f32.mrb[0].mxu0
  %v236 = vpop.f32.mrb[0].mxu0
  %v237 = vadd.f32 %v76, %v236
  %v238 = vpop.f32.mrb[0].mxu0
  %239 = vmatprep.mubr.bf16.mxu0 0
  %240 = vmatmul.mubr.bf16.gmra.mrb[0].mxu0 %v125
  %v241 = vpop.f32.mrb[0].mxu0
  %v242 = vadd.f32 %v76, %v241
  %v243 = vpop.f32.mrb[0].mxu0
  %v244 = vpop.f32.mrb[0].mxu0
  %v245 = vadd.f32 %v76, %v244
  %v246 = vpop.f32.mrb[0].mxu0
  %247 = vmatprep.mubr.bf16.mxu0 0
  %248 = vmatmul.mubr.bf16.gmra.mrb[0].mxu0 %v128
  %v249 = vpop.f32.mrb[0].mxu0
  %v250 = vadd.f32 %v76, %v249
  %v251 = vpop.f32.mrb[0].mxu0
  %v252 = vpop.f32.mrb[0].mxu0
  %v253 = vadd.f32 %v76, %v252
  %v254 = vpop.f32.mrb[0].mxu0
  %255 = vmatprep.mubr.bf16.mxu0 0
  %256 = vmatmul.mubr.bf16.gmra.mrb[0].mxu0 %v131
  %v257 = vpop.f32.mrb[0].mxu0
  %v258 = vadd.f32 %v76, %v257
  %v259 = vpop.f32.mrb[0].mxu0
  %v260 = vpop.f32.mrb[0].mxu0
  %v261 = vadd.f32 %v76, %v260
  %v262 = vpop.f32.mrb[0].mxu0
  %263 = vmatprep.mubr.bf16.mxu0 0
  %264 = vmatmul.mubr.bf16.gmra.mrb[0].mxu0 %v134
  %v265 = vpop.f32.mrb[0].mxu0
  %v266 = vadd.f32 %v76, %v265
  %v267 = vpop.f32.mrb[0].mxu0
  %v268 = vpop.f32.mrb[0].mxu0
  %v269 = vadd.f32 %v76, %v268
  %v270 = vpop.f32.mrb[0].mxu0
  %271 = vmatprep.mubr.bf16.mxu0 0
  %272 = vmatmul.mubr.bf16.gmra.mrb[0].mxu0 %v137
  %v273 = vpop.f32.mrb[0].mxu0
  %v274 = vadd.f32 %v76, %v273
  %v275 = vpop.f32.mrb[0].mxu0
  %v276 = vpop.f32.mrb[0].mxu0
  %v277 = vadd.f32 %v76, %v276
  %v278 = vpop.f32.mrb[0].mxu0
  %279 = vmatprep.mubr.bf16.mxu0 0
  %280 = vmatmul.mubr.bf16.gmra.mrb[0].mxu0 %v140
  %v281 = vpop.f32.mrb[0].mxu0
  %v282 = vadd.f32 %v76, %v281
  %v283 = vpop.f32.mrb[0].mxu0
  %v284 = vpop.f32.mrb[0].mxu0
  %v285 = vadd.f32 %v76, %v284
  %v286 = vpop.f32.mrb[0].mxu0
  %287 = vmatprep.mubr.bf16.mxu0 0
  %288 = vmatmul.mubr.bf16.gmra.mrb[0].mxu0 %v143
  %v289 = vpop.f32.mrb[0].mxu0
  %v290 = vadd.f32 %v76, %v289
  %v291 = vpop.f32.mrb[0].mxu0
  %v292 = vpop.f32.mrb[0].mxu0
  %v293 = vadd.f32 %v76, %v292
  %v294 = vpop.f32.mrb[0].mxu0
  %295 = vmatprep.mubr.bf16.mxu0 0
  %296 = vmatmul.mubr.bf16.gmra.mrb[0].mxu0 %v146
  %v297 = vpop.f32.mrb[0].mxu0
  %v298 = vadd.f32 %v76, %v297
  %v299 = vpop.f32.mrb[0].mxu0
  %v300 = vpop.f32.mrb[0].mxu0
  %v301 = vadd.f32 %v76, %v300
  %v302 = vpop.f32.mrb[0].mxu0
  %303 = vmatprep.mubr.bf16.mxu0 0
  %304 = vmatmul.mubr.bf16.gmra.mrb[0].mxu0 %v149
  %v305 = vpop.f32.mrb[0].mxu0
  %v306 = vadd.f32 %v76, %v305
  %v307 = vpop.f32.mrb[0].mxu0
  %v308 = vpop.f32.mrb[0].mxu0
  %v309 = vadd.f32 %v76, %v308
  %v310 = vpop.f32.mrb[0].mxu0
  %311 = vdwg.mxu0
  %v312 = vpack.c.bf16 %v189, %v186
  %v313 = vpack.c.bf16 %v197, %v194
  %v314 = vpack.c.bf16 %v205, %v202
  %v315 = vpack.c.bf16 %v213, %v210
  %v316 = vpack.c.bf16 %v221, %v218
  %v317 = vpack.c.bf16 %v229, %v226
  %v318 = vpack.c.bf16 %v237, %v234
  %v319 = vpack.c.bf16 %v245, %v242
  %v320 = vpack.c.bf16 %v253, %v250
  %v321 = vpack.c.bf16 %v261, %v258
  %v322 = vpack.c.bf16 %v269, %v266
  %v323 = vpack.c.bf16 %v277, %v274
  %v324 = vpack.c.bf16 %v285, %v282
  %v325 = vpack.c.bf16 %v293, %v290
  %v326 = vpack.c.bf16 %v301, %v298
  %v327 = vpack.c.bf16 %v309, %v306
  %v344 = vunpack.c.l.b16 %v312
  %v345 = vunpack.c.h.b16 %v312
  %v346 = vunpack.c.l.b16 %v313
  %v347 = vunpack.c.h.b16 %v313
  %v348 = vunpack.c.l.b16 %v314
  %v349 = vunpack.c.h.b16 %v314
  %v350 = vunpack.c.l.b16 %v315
  %v351 = vunpack.c.h.b16 %v315
  %v352 = vunpack.c.l.b16 %v316
  %v353 = vunpack.c.h.b16 %v316
  %v354 = vunpack.c.l.b16 %v317
  %v355 = vunpack.c.h.b16 %v317
  %v356 = vunpack.c.l.b16 %v318
  %v357 = vunpack.c.h.b16 %v318
  %v358 = vunpack.c.l.b16 %v319
  %v359 = vunpack.c.h.b16 %v319
  %v360 = vunpack.c.l.b16 %v320
  %v361 = vunpack.c.h.b16 %v320
  %v362 = vunpack.c.l.b16 %v321
  %v363 = vunpack.c.h.b16 %v321
  %v364 = vunpack.c.l.b16 %v322
  %v365 = vunpack.c.h.b16 %v322
  %v366 = vunpack.c.l.b16 %v323
  %v367 = vunpack.c.h.b16 %v323
  %v368 = vunpack.c.l.b16 %v324
  %v369 = vunpack.c.h.b16 %v324
  %v370 = vunpack.c.l.b16 %v325
  %v371 = vunpack.c.h.b16 %v325
  %v372 = vunpack.c.l.b16 %v326
  %v373 = vunpack.c.h.b16 %v326
  %v374 = vunpack.c.l.b16 %v327
  %v375 = vunpack.c.h.b16 %v327
  %v376 = vpack.c.b16 %v344, %v344
  %v377 = vpack.c.b16 %v345, %v345
  %v378 = vpack.c.b16 %v346, %v346
  %v379 = vpack.c.b16 %v347, %v347
  %v380 = vpack.c.b16 %v348, %v348
  %v381 = vpack.c.b16 %v349, %v349
  %v382 = vpack.c.b16 %v350, %v350
  %v383 = vpack.c.b16 %v351, %v351
  %v384 = vpack.c.b16 %v352, %v352
  %v385 = vpack.c.b16 %v353, %v353
  %v386 = vpack.c.b16 %v354, %v354
  %v387 = vpack.c.b16 %v355, %v355
  %v388 = vpack.c.b16 %v356, %v356
  %v389 = vpack.c.b16 %v357, %v357
  %v390 = vpack.c.b16 %v358, %v358
  %v391 = vpack.c.b16 %v359, %v359
  %v392 = vpack.c.b16 %v360, %v360
  %v393 = vpack.c.b16 %v361, %v361
  %v394 = vpack.c.b16 %v362, %v362
  %v395 = vpack.c.b16 %v363, %v363
  %v396 = vpack.c.b16 %v364, %v364
  %v397 = vpack.c.b16 %v365, %v365
  %v398 = vpack.c.b16 %v366, %v366
  %v399 = vpack.c.b16 %v367, %v367
  %v400 = vpack.c.b16 %v368, %v368
  %v401 = vpack.c.b16 %v369, %v369
  %v402 = vpack.c.b16 %v370, %v370
  %v403 = vpack.c.b16 %v371, %v371
  %v404 = vpack.c.b16 %v372, %v372
  %v405 = vpack.c.b16 %v373, %v373
  %v406 = vpack.c.b16 %v374, %v374
  %v407 = vpack.c.b16 %v375, %v375
  %440 = vst [vmem:[%s3] sm:$0xf] %v376
  %441 = vst [vmem:[%s3 + $0x4] sm:$0xf] %v377
  %442 = vst [vmem:[%s3 + $0x8] sm:$0xf] %v378
  %443 = vst [vmem:[%s3 + $0xc] sm:$0xf] %v379
  %444 = vst [vmem:[%s3 + $0x10] sm:$0xf] %v380
  %445 = vst [vmem:[%s3 + $0x14] sm:$0xf] %v381
  %446 = vst [vmem:[%s3 + $0x18] sm:$0xf] %v382
  %447 = vst [vmem:[%s3 + $0x1c] sm:$0xf] %v383
  %448 = vst [vmem:[%s3 + $0x20] sm:$0xf] %v384
  %449 = vst [vmem:[%s3 + $0x24] sm:$0xf] %v385
  %450 = vst [vmem:[%s3 + $0x28] sm:$0xf] %v386
  %451 = vst [vmem:[%s3 + $0x2c] sm:$0xf] %v387
  %452 = vst [vmem:[%s3 + $0x30] sm:$0xf] %v388
  %453 = vst [vmem:[%s3 + $0x34] sm:$0xf] %v389
  %454 = vst [vmem:[%s3 + $0x38] sm:$0xf] %v390
  %455 = vst [vmem:[%s3 + $0x3c] sm:$0xf] %v391
  %456 = vst [vmem:[%s3 + $0x40] sm:$0xf] %v392
  %457 = vst [vmem:[%s3 + $0x44] sm:$0xf] %v393
  %458 = vst [vmem:[%s3 + $0x48] sm:$0xf] %v394
  %459 = vst [vmem:[%s3 + $0x4c] sm:$0xf] %v395
  %460 = vst [vmem:[%s3 + $0x50] sm:$0xf] %v396
  %461 = vst [vmem:[%s3 + $0x54] sm:$0xf] %v397
  %462 = vst [vmem:[%s3 + $0x58] sm:$0xf] %v398
  %463 = vst [vmem:[%s3 + $0x5c] sm:$0xf] %v399
  %464 = vst [vmem:[%s3 + $0x60] sm:$0xf] %v400
  %465 = vst [vmem:[%s3 + $0x64] sm:$0xf] %v401
  %466 = vst [vmem:[%s3 + $0x68] sm:$0xf] %v402
  %467 = vst [vmem:[%s3 + $0x6c] sm:$0xf] %v403
  %468 = vst [vmem:[%s3 + $0x70] sm:$0xf] %v404
  %469 = vst [vmem:[%s3 + $0x74] sm:$0xf] %v405
  %470 = vst [vmem:[%s3 + $0x78] sm:$0xf] %v406
  %471 = vst [vmem:[%s3 + $0x7c] sm:$0xf] %v407
  // Predicated region
  $region14: #{_lambda_.6} parent=0 // pred_check
    _
  $region15: #{_lambda_.6} parent=0 // pred_check_branch
    %473 = sbr.rel (0) target = $region17
  $region16: #{_lambda_.6} parent=0 // pred_region
    _
  $region17: #{_lambda_.6} parent=0 // pred_fallthru
    _
  // Predicated region
  $region18: #{_lambda_.6} parent=0 // pred_check
    _
  $region19: #{_lambda_.6} parent=0 // pred_check_branch
    %475 = sbr.rel (0) target = $region21
  $region20: #{_lambda_.6} parent=0 // pred_region
    _
  $region21: #{_lambda_.6} parent=0 // pred_fallthru
    _

// kernel: _lambda_.9
$region0: #{_lambda_.9}
  #allocation0 [shape = 'u32[]', space=smem, size = 0x4, offset = 0x4, fixed_abs, tag = 'smem constant byte address 0x4 - core index']
  #allocation1 [shape = 'u32[144,128]{1,0:T(1,128)}', space=vmem, size = 0x12000, scoped, tag = 'internal scratch']
  %s0 = inlined_call_operand.vmem [shape: f32[32,32], index: 0, kind: input, shape index: {}]
  %s1 = inlined_call_operand.vmem [shape: f32[32,3], index: 1, kind: input, shape index: {}]
  %s2 = inlined_call_operand.vmem [shape: bf16[32,64], index: 2, kind: input, shape index: {}]
  %s3 = inlined_call_operand.vmem [shape: bf16[3,64], index: 3, kind: input, shape index: {}]
  %s4 = inlined_call_operand.vmem [shape: f32[1,64], index: 4, kind: input, shape index: {}]
  %s5 = inlined_call_operand.vmem [shape: bf16[64,128], index: 5, kind: input, shape index: {}]
  %s6 = inlined_call_operand.vmem [shape: f32[1,128], index: 6, kind: input, shape index: {}]
  %s7 = inlined_call_operand.vmem [shape: f32[32,128], index: 7, kind: output, shape index: {}]
  %s8 = sld [smem:[#allocation0]]
  $region38: #{_lambda_.9} parent=0
    _
  %s10 = ssub.s32 1, %s8
  %s11 = scalar_select 0, %s10, %s8
  // Predicated region
  $region2: #{_lambda_.9} parent=0 // pred_check
    _
  $region3: #{_lambda_.9} parent=0 // pred_check_branch
    %13 = sbr.rel (0) target = $region5
  $region4: #{_lambda_.9} parent=0 // pred_region
    _
  $region5: #{_lambda_.9} parent=0 // pred_fallthru
    _
  // Predicated region
  $region6: #{_lambda_.9} parent=0 // pred_check
    _
  $region7: #{_lambda_.9} parent=0 // pred_check_branch
    %15 = sbr.rel (0) target = $region9
  $region8: #{_lambda_.9} parent=0 // pred_region
    _
  $region9: #{_lambda_.9} parent=0 // pred_fallthru
    _
  // Predicated region
  $region10: #{_lambda_.9} parent=0 // pred_check
    _
  $region11: #{_lambda_.9} parent=0 // pred_check_branch
    %17 = sbr.rel (0) target = $region13
  $region12: #{_lambda_.9} parent=0 // pred_region
    _
  $region13: #{_lambda_.9} parent=0 // pred_fallthru
    _
  // Predicated region
  $region14: #{_lambda_.9} parent=0 // pred_check
    _
  $region15: #{_lambda_.9} parent=0 // pred_check_branch
    %19 = sbr.rel (0) target = $region17
  $region16: #{_lambda_.9} parent=0 // pred_region
    _
  $region17: #{_lambda_.9} parent=0 // pred_fallthru
    _
  // Predicated region
  $region18: #{_lambda_.9} parent=0 // pred_check
    _
  $region19: #{_lambda_.9} parent=0 // pred_check_branch
    %21 = sbr.rel (0) target = $region21
  $region20: #{_lambda_.9} parent=0 // pred_region
    _
  $region21: #{_lambda_.9} parent=0 // pred_fallthru
    _
  // Predicated region
  $region22: #{_lambda_.9} parent=0 // pred_check
    _
  $region23: #{_lambda_.9} parent=0 // pred_check_branch
    %23 = sbr.rel (0) target = $region25
  $region24: #{_lambda_.9} parent=0 // pred_region
    _
  $region25: #{_lambda_.9} parent=0 // pred_fallthru
    _
  // Predicated region
  $region26: #{_lambda_.9} parent=0 // pred_check
    _
  $region27: #{_lambda_.9} parent=0 // pred_check_branch
    %25 = sbr.rel (0) target = $region29
  $region28: #{_lambda_.9} parent=0 // pred_region
    _
  $region29: #{_lambda_.9} parent=0 // pred_fallthru
    _
  %v27 = vld [vmem:[%s0] sm:$0xff]
  %v28 = vld [vmem:[%s0 + $0x8] sm:$0xff]
  %v29 = vld [vmem:[%s0 + $0x10] sm:$0xff]
  %v30 = vld [vmem:[%s0 + $0x18] sm:$0xff]
  %v31 = vpack.c.bf16 %v28, %v27
  %v32 = vpack.c.bf16 %v30, %v29
  %v33 = vld [vmem:[%s2] sm:$0xf]
  %v34 = vld [vmem:[%s2 + $0x4] sm:$0xf]
  %v35 = vld [vmem:[%s2 + $0x8] sm:$0xf]
  %v36 = vld [vmem:[%s2 + $0xc] sm:$0xf]
  %v37 = vld [vmem:[%s1] sm:$0xff]
  %v38 = vld [vmem:[%s1 + $0x8] sm:$0xff]
  %v39 = vld [vmem:[%s1 + $0x10] sm:$0xff]
  %v40 = vld [vmem:[%s1 + $0x18] sm:$0xff]
  %v41 = vpack.c.bf16 %v38, %v37
  %v42 = vpack.c.bf16 %v40, %v39
  %v43 = vld [vmem:[%s3] sm:$0x3]
  %vm44 = vcmask 23552
  %v46 = vsel %vm44, %v41, 0
  %v49 = vsel %vm44, %v42, 0
  %vm51 = vcmask 1040384
  %vm52 = vcmask 1041408
  %v53 = vsel %vm51, 4294967295, 65535
  %v54 = vsel %vm52, %v53, 0
  %v56 = vand.u32 %v43, %v54
  %58 = vmatprep.subr.bf16.mxu0 0
  %59 = vmatpush1.bf16.msra.mxu0 %v56
  %60 = vmatprep.subr.bf16.mxu0 0
  %61 = vmatpush1.bf16.msra.mxu0 0
  %62 = vmatprep.subr.bf16.mxu0 0
  %63 = vmatpush1.bf16.msra.mxu0 0
  %64 = vmatprep.subr.bf16.mxu0 0
  %65 = vmatpush1.bf16.msra.mxu0 0
  %66 = vmatprep.subr.bf16.mxu0 0
  %67 = vmatpush1.bf16.msra.mxu0 0
  %68 = vmatprep.subr.bf16.mxu0 0
  %69 = vmatpush1.bf16.msra.mxu0 0
  %70 = vmatprep.subr.bf16.mxu0 0
  %71 = vmatpush1.bf16.msra.mxu0 0
  %72 = vmatprep.subr.bf16.mxu0 0
  %73 = vmatpush1.bf16.msra.mxu0 0
  %74 = vmatprep.subr.bf16.mxu0 0
  %75 = vmatpush1.bf16.msra.mxu0 0
  %76 = vmatprep.subr.bf16.mxu0 0
  %77 = vmatpush1.bf16.msra.mxu0 0
  %78 = vmatprep.subr.bf16.mxu0 0
  %79 = vmatpush1.bf16.msra.mxu0 0
  %80 = vmatprep.subr.bf16.mxu0 0
  %81 = vmatpush1.bf16.msra.mxu0 0
  %82 = vmatprep.subr.bf16.mxu0 0
  %83 = vmatpush1.bf16.msra.mxu0 0
  %84 = vmatprep.subr.bf16.mxu0 0
  %85 = vmatpush1.bf16.msra.mxu0 0
  %86 = vmatprep.subr.bf16.mxu0 0
  %87 = vmatpush1.bf16.msra.mxu0 0
  %88 = vmatprep.subr.bf16.mxu0 0
  %89 = vmatpush1.bf16.msra.mxu0 0
  %90 = vmatprep.mubr.bf16.mxu0 0
  %91 = vmatmul.mubr.bf16.gmra.mrb[0].mxu0 %v46
  %v92 = vpop.f32.mrb[0].mxu0
  %v93 = vadd.f32 0.0, %v92
  %v94 = vpop.f32.mrb[0].mxu0
  %v95 = vpop.f32.mrb[0].mxu0
  %v96 = vadd.f32 0.0, %v95
  %v97 = vpop.f32.mrb[0].mxu0
  %98 = vmatprep.mubr.bf16.mxu0 0
  %99 = vmatmul.mubr.bf16.gmra.mrb[0].mxu0 %v49
  %v100 = vpop.f32.mrb[0].mxu0
  %v101 = vadd.f32 0.0, %v100
  %v102 = vpop.f32.mrb[0].mxu0
  %v103 = vpop.f32.mrb[0].mxu0
  %v104 = vadd.f32 0.0, %v103
  %v105 = vpop.f32.mrb[0].mxu0
  %106 = vdwg.mxu0
  %v111 = vunpack.c.l.b16 %v33
  %v112 = vunpack.c.l.b16 %v34
  %v113 = vunpack.c.l.b16 %v35
  %v114 = vunpack.c.l.b16 %v36
  %v115 = vpack.c.b16 %v112, %v111
  %v116 = vpack.c.b16 %v114, %v113
  %vm119 = vcmask 261120
  %v121 = vsel %vm119, %v31, 0
  %v124 = vsel %vm119, %v32, 0
  %126 = vmatprep.subr.bf16.mxu0 0
  %127 = vmatpush1.bf16.msra.mxu0 %v115
  %128 = vmatprep.subr.bf16.mxu0 0
  %129 = vmatpush1.bf16.msra.mxu0 %v116
  %130 = vmatprep.subr.bf16.mxu0 0
  %131 = vmatpush1.bf16.msra.mxu0 0
  %132 = vmatprep.subr.bf16.mxu0 0
  %133 = vmatpush1.bf16.msra.mxu0 0
  %134 = vmatprep.subr.bf16.mxu0 0
  %135 = vmatpush1.bf16.msra.mxu0 0
  %136 = vmatprep.subr.bf16.mxu0 0
  %137 = vmatpush1.bf16.msra.mxu0 0
  %138 = vmatprep.subr.bf16.mxu0 0
  %139 = vmatpush1.bf16.msra.mxu0 0
  %140 = vmatprep.subr.bf16.mxu0 0
  %141 = vmatpush1.bf16.msra.mxu0 0
  %142 = vmatprep.subr.bf16.mxu0 0
  %143 = vmatpush1.bf16.msra.mxu0 0
  %144 = vmatprep.subr.bf16.mxu0 0
  %145 = vmatpush1.bf16.msra.mxu0 0
  %146 = vmatprep.subr.bf16.mxu0 0
  %147 = vmatpush1.bf16.msra.mxu0 0
  %148 = vmatprep.subr.bf16.mxu0 0
  %149 = vmatpush1.bf16.msra.mxu0 0
  %150 = vmatprep.subr.bf16.mxu0 0
  %151 = vmatpush1.bf16.msra.mxu0 0
  %152 = vmatprep.subr.bf16.mxu0 0
  %153 = vmatpush1.bf16.msra.mxu0 0
  %154 = vmatprep.subr.bf16.mxu0 0
  %155 = vmatpush1.bf16.msra.mxu0 0
  %156 = vmatprep.subr.bf16.mxu0 0
  %157 = vmatpush1.bf16.msra.mxu0 0
  %158 = vmatprep.mubr.bf16.mxu0 0
  %159 = vmatmul.mubr.bf16.gmra.mrb[0].mxu0 %v121
  %v160 = vpop.f32.mrb[0].mxu0
  %v161 = vadd.f32 %v93, %v160
  %v162 = vpop.f32.mrb[0].mxu0
  %v163 = vpop.f32.mrb[0].mxu0
  %v164 = vadd.f32 %v96, %v163
  %v165 = vpop.f32.mrb[0].mxu0
  %166 = vmatprep.mubr.bf16.mxu0 0
  %167 = vmatmul.mubr.bf16.gmra.mrb[0].mxu0 %v124
  %v168 = vpop.f32.mrb[0].mxu0
  %v169 = vadd.f32 %v101, %v168
  %v170 = vpop.f32.mrb[0].mxu0
  %v171 = vpop.f32.mrb[0].mxu0
  %v172 = vadd.f32 %v104, %v171
  %v173 = vpop.f32.mrb[0].mxu0
  %174 = vdwg.mxu0
  %v175 = vld [vmem:[%s4] sm:$0x1]
  %v177 = vlaneseq
  %v178 = vshrl.u32 %v177, 7
  %v179 = vsub.s32 0, %v178
  %v180 = vrot.slane %v175, %v179
  %v182 = vadd.f32 %v161, %v180
  %v183 = vadd.f32 %v164, %v180
  %v184 = vadd.f32 %v169, %v180
  %v185 = vadd.f32 %v172, %v180
  %vm186 = vcmp.gt.f32.partialorder %v182, 20.0
  %vm187 = vcmp.gt.f32.partialorder %v183, 20.0
  %vm188 = vcmp.gt.f32.partialorder %v184, 20.0
  %vm189 = vcmp.gt.f32.partialorder %v185, 20.0
  %v190 = vmin.f32 %v182, 20.0
  %v191 = vmin.f32 %v183, 20.0
  %v192 = vmin.f32 %v184, 20.0
  %v193 = vmin.f32 %v185, 20.0
  %v194 = vmul.f32 %v190, 1.442695
  %v195 = vpow.pop %v194
  %v196 = vmul.f32 %v191, 1.442695
  %v197 = vpow.pop %v196
  %v198 = vmul.f32 %v192, 1.442695
  %v199 = vpow.pop %v198
  %v200 = vmul.f32 %v193, 1.442695
  %v201 = vpow.pop %v200
  %v202 = vadd.f32 %v195, 1.0
  %v203 = vlog2.pop %v202
  %v204 = vmul.f32 %v203, 0.6931472
  %v205 = vmul.f32 -0.5, %v195
  %v206 = vadd.f32 %v205, 1.0
  %v207 = vmul.f32 %v206, %v195
  %v208 = vand.u32 2147483647, %v195
  %vm209 = vcmp.lt.f32.partialorder %v208, 0.0004427343
  %v210 = vsel %vm209, %v207, %v204
  %v211 = vadd.f32 %v197, 1.0
  %v212 = vlog2.pop %v211
  %v213 = vmul.f32 %v212, 0.6931472
  %v214 = vmul.f32 -0.5, %v197
  %v215 = vadd.f32 %v214, 1.0
  %v216 = vmul.f32 %v215, %v197
  %v217 = vand.u32 2147483647, %v197
  %vm218 = vcmp.lt.f32.partialorder %v217, 0.0004427343
  %v219 = vsel %vm218, %v216, %v213
  %v220 = vadd.f32 %v199, 1.0
  %v221 = vlog2.pop %v220
  %v222 = vmul.f32 %v221, 0.6931472
  %v223 = vmul.f32 -0.5, %v199
  %v224 = vadd.f32 %v223, 1.0
  %v225 = vmul.f32 %v224, %v199
  %v226 = vand.u32 2147483647, %v199
  %vm227 = vcmp.lt.f32.partialorder %v226, 0.0004427343
  %v228 = vsel %vm227, %v225, %v222
  %v229 = vadd.f32 %v201, 1.0
  %v230 = vlog2.pop %v229
  %v231 = vmul.f32 %v230, 0.6931472
  %v232 = vmul.f32 -0.5, %v201
  %v233 = vadd.f32 %v232, 1.0
  %v234 = vmul.f32 %v233, %v201
  %v235 = vand.u32 2147483647, %v201
  %vm236 = vcmp.lt.f32.partialorder %v235, 0.0004427343
  %v237 = vsel %vm236, %v234, %v231
  %v238 = vsel %vm186, %v182, %v210
  %v239 = vsel %vm187, %v183, %v219
  %v240 = vsel %vm188, %v184, %v228
  %v241 = vsel %vm189, %v185, %v237
  %v242 = vpack.c.bf16 %v239, %v238
  %v243 = vpack.c.bf16 %v241, %v240
  %v244 = vld [vmem:[%s5] sm:$0xf]
  %v245 = vld [vmem:[%s5 + $0x4] sm:$0xf]
  %v246 = vld [vmem:[%s5 + $0x8] sm:$0xf]
  %v247 = vld [vmem:[%s5 + $0xc] sm:$0xf]
  %v248 = vld [vmem:[%s5 + $0x10] sm:$0xf]
  %v249 = vld [vmem:[%s5 + $0x14] sm:$0xf]
  %v250 = vld [vmem:[%s5 + $0x18] sm:$0xf]
  %v251 = vld [vmem:[%s5 + $0x1c] sm:$0xf]
  %v252 = vld [vmem:[%s6] sm:$0x1]
  %v254 = vlaneseq
  %v255 = vshrl.u32 %v254, 7
  %v256 = vsub.s32 0, %v255
  %v257 = vrot.slane %v252, %v256
  %v267 = vunpack.c.l.b16 %v244
  %v268 = vunpack.c.l.b16 %v245
  %v269 = vunpack.c.l.b16 %v246
  %v270 = vunpack.c.l.b16 %v247
  %v271 = vunpack.c.l.b16 %v248
  %v272 = vunpack.c.l.b16 %v249
  %v273 = vunpack.c.l.b16 %v250
  %v274 = vunpack.c.l.b16 %v251
  %v275 = vpack.c.b16 %v268, %v267
  %v276 = vpack.c.b16 %v270, %v269
  %v277 = vpack.c.b16 %v272, %v271
  %v278 = vpack.c.b16 %v274, %v273
  %vm283 = vcmask 523264
  %v285 = vsel %vm283, %v242, 0
  %v288 = vsel %vm283, %v243, 0
  %290 = vmatprep.subr.bf16.mxu0 0
  %291 = vmatpush1.bf16.msra.mxu0 %v275
  %292 = vmatprep.subr.bf16.mxu0 0
  %293 = vmatpush1.bf16.msra.mxu0 %v276
  %294 = vmatprep.subr.bf16.mxu0 0
  %295 = vmatpush1.bf16.msra.mxu0 %v277
  %296 = vmatprep.subr.bf16.mxu0 0
  %297 = vmatpush1.bf16.msra.mxu0 %v278
  %298 = vmatprep.subr.bf16.mxu0 0
  %299 = vmatpush1.bf16.msra.mxu0 0
  %300 = vmatprep.subr.bf16.mxu0 0
  %301 = vmatpush1.bf16.msra.mxu0 0
  %302 = vmatprep.subr.bf16.mxu0 0
  %303 = vmatpush1.bf16.msra.mxu0 0
  %304 = vmatprep.subr.bf16.mxu0 0
  %305 = vmatpush1.bf16.msra.mxu0 0
  %306 = vmatprep.subr.bf16.mxu0 0
  %307 = vmatpush1.bf16.msra.mxu0 0
  %308 = vmatprep.subr.bf16.mxu0 0
  %309 = vmatpush1.bf16.msra.mxu0 0
  %310 = vmatprep.subr.bf16.mxu0 0
  %311 = vmatpush1.bf16.msra.mxu0 0
  %312 = vmatprep.subr.bf16.mxu0 0
  %313 = vmatpush1.bf16.msra.mxu0 0
  %314 = vmatprep.subr.bf16.mxu0 0
  %315 = vmatpush1.bf16.msra.mxu0 0
  %316 = vmatprep.subr.bf16.mxu0 0
  %317 = vmatpush1.bf16.msra.mxu0 0
  %318 = vmatprep.subr.bf16.mxu0 0
  %319 = vmatpush1.bf16.msra.mxu0 0
  %320 = vmatprep.subr.bf16.mxu0 0
  %321 = vmatpush1.bf16.msra.mxu0 0
  %322 = vmatprep.mubr.bf16.mxu0 0
  %323 = vmatmul.mubr.bf16.gmra.mrb[0].mxu0 %v285
  %v324 = vpop.f32.mrb[0].mxu0
  %v325 = vadd.f32 %v257, %v324
  %v326 = vpop.f32.mrb[0].mxu0
  %v327 = vpop.f32.mrb[0].mxu0
  %v328 = vadd.f32 %v257, %v327
  %v329 = vpop.f32.mrb[0].mxu0
  %330 = vmatprep.mubr.bf16.mxu0 0
  %331 = vmatmul.mubr.bf16.gmra.mrb[0].mxu0 %v288
  %v332 = vpop.f32.mrb[0].mxu0
  %v333 = vadd.f32 %v257, %v332
  %v334 = vpop.f32.mrb[0].mxu0
  %v335 = vpop.f32.mrb[0].mxu0
  %v336 = vadd.f32 %v257, %v335
  %v337 = vpop.f32.mrb[0].mxu0
  %338 = vdwg.mxu0
  %339 = vst [vmem:[%s7] sm:$0xff] %v325
  %340 = vst [vmem:[%s7 + $0x8] sm:$0xff] %v328
  %341 = vst [vmem:[%s7 + $0x10] sm:$0xff] %v333
  %342 = vst [vmem:[%s7 + $0x18] sm:$0xff] %v336
  // Predicated region
  $region30: #{_lambda_.9} parent=0 // pred_check
    _
  $region31: #{_lambda_.9} parent=0 // pred_check_branch
    %344 = sbr.rel (0) target = $region33
  $region32: #{_lambda_.9} parent=0 // pred_region
    _
  $region33: #{_lambda_.9} parent=0 // pred_fallthru
    _
  // Predicated region
  $region34: #{_lambda_.9} parent=0 // pred_check
    _
  $region35: #{_lambda_.9} parent=0 // pred_check_branch
    %346 = sbr.rel (0) target = $region37
  $region36: #{_lambda_.9} parent=0 // pred_region
    _
  $region37: #{_lambda_.9} parent=0 // pred_fallthru
    _

// kernel: _lambda_.7
$region0: #{_lambda_.7}
  #allocation0 [shape = 'u32[]', space=smem, size = 0x4, offset = 0x4, fixed_abs, tag = 'smem constant byte address 0x4 - core index']
  #allocation1 [shape = 'u32[144,128]{1,0:T(1,128)}', space=vmem, size = 0x12000, scoped, tag = 'internal scratch']
  %s0 = inlined_call_operand.vmem [shape: f32[2,16,32], index: 0, kind: input, shape index: {}]
  %s1 = inlined_call_operand.vmem [shape: bf16[2,128,64], index: 1, kind: input, shape index: {}]
  %s2 = inlined_call_operand.vmem [shape: f32[1,128], index: 2, kind: input, shape index: {}]
  %s3 = inlined_call_operand.vmem [shape: f32[1,32], index: 3, kind: input, shape index: {}]
  %s4 = inlined_call_operand.vmem [shape: f32[1,32], index: 4, kind: input, shape index: {}]
  %s5 = inlined_call_operand.vmem [shape: bf16[32,96], index: 5, kind: input, shape index: {}]
  %s6 = inlined_call_operand.vmem [shape: bf16[32,32], index: 6, kind: input, shape index: {}]
  %s7 = inlined_call_operand.vmem [shape: f32[1,32], index: 7, kind: input, shape index: {}]
  %s8 = inlined_call_operand.vmem [shape: f32[1,32], index: 8, kind: input, shape index: {}]
  %s9 = inlined_call_operand.vmem [shape: f32[1,32], index: 9, kind: input, shape index: {}]
  %s10 = inlined_call_operand.vmem [shape: bf16[32,32], index: 10, kind: input, shape index: {}]
  %s11 = inlined_call_operand.vmem [shape: bf16[32,32], index: 11, kind: input, shape index: {}]
  %s12 = inlined_call_operand.vmem [shape: f32[1,32], index: 12, kind: input, shape index: {}]
  %s13 = inlined_call_operand.vmem [shape: f32[1,32], index: 13, kind: input, shape index: {}]
  %s14 = inlined_call_operand.vmem [shape: f32[1,32], index: 14, kind: input, shape index: {}]
  %s15 = inlined_call_operand.vmem [shape: bf16[32,128], index: 15, kind: input, shape index: {}]
  %s16 = inlined_call_operand.vmem [shape: f32[1,128], index: 16, kind: input, shape index: {}]
  %s17 = inlined_call_operand.vmem [shape: bf16[32,128], index: 17, kind: input, shape index: {}]
  %s18 = inlined_call_operand.vmem [shape: f32[1,128], index: 18, kind: input, shape index: {}]
  %s19 = inlined_call_operand.vmem [shape: bf16[128,32], index: 19, kind: input, shape index: {}]
  %s20 = inlined_call_operand.vmem [shape: f32[1,32], index: 20, kind: input, shape index: {}]
  %s21 = inlined_call_operand.vmem [shape: f32[2,16,32], index: 21, kind: output, shape index: {0}]
  %s22 = inlined_call_operand.vmem [shape: f32[2,16,128], index: 22, kind: output, shape index: {1}]
  %23 = xla_tuple %s21, %s22
  %s24 = sld [smem:[#allocation0]]
  $region125: #{_lambda_.7} parent=0
    _
  %s26 = ssub.s32 1, %s24
  %s27 = scalar_select 0, %s26, %s24
  loop: start=0, step=1, limit=4
  $region2: #{_lambda_.7} parent=0 // loop_pre_header
    _
  $region3: #{_lambda_.7} parent=0 // loop_header
    %s29 = sphi 0, %s33
    %p30 = scmp.ge.s32.totalorder %s29, 4
    %s36 = sphi 0, %s48
    %s37 = sphi 0, %s44
    %s38 = sphi 0, %s36
    %s39 = sphi 0, %s37
    %s40 = sphi 0, %s38
    %s41 = sphi 0, %s39
    %s53 = sphi 0, %s55
    %s56 = sphi 0, %s53
    %s57 = sphi 0, %s56
    %s73 = sphi 0, %s57
    %s79 = sphi 0, %s81
    %s82 = sphi 0, %s79
    %s83 = sphi 0, %s82
    %s99 = sphi 0, %s83
    %s103 = sphi 0, %s103
    %s105 = sphi 0, %s103
    %s106 = sphi 0, %s105
    %s120 = sphi 0, %s106
    %s124 = sphi 0, %s124
    %s126 = sphi 0, %s124
    %s127 = sphi 0, %s126
    %s141 = sphi 0, %s127
    %s145 = sphi 0, %s145
    %s147 = sphi 0, %s145
    %s148 = sphi 0, %s147
    %s162 = sphi 0, %s148
    %s166 = sphi 0, %s166
    %s168 = sphi 0, %s166
    %s169 = sphi 0, %s168
    %s183 = sphi 0, %s169
    %s187 = sphi 0, %s187
    %s189 = sphi 0, %s187
    %s190 = sphi 0, %s189
    %s204 = sphi 0, %s190
    %s208 = sphi 0, %s208
    %s210 = sphi 0, %s208
    %s211 = sphi 0, %s210
    %s225 = sphi 0, %s211
    %s229 = sphi 0, %s229
    %s231 = sphi 0, %s229
    %s232 = sphi 0, %s231
    %s246 = sphi 0, %s232
    %s250 = sphi 0, %s250
    %s252 = sphi 0, %s250
    %s253 = sphi 0, %s252
    %s267 = sphi 0, %s253
    %s271 = sphi 0, %s271
    %s273 = sphi 0, %s271
    %s274 = sphi 0, %s273
    %s288 = sphi 0, %s274
    %s292 = sphi 0, %s292
    %s294 = sphi 0, %s292
    %s295 = sphi 0, %s294
    %s309 = sphi 0, %s295
    %s313 = sphi 0, %s313
    %s315 = sphi 0, %s313
    %s316 = sphi 0, %s315
    %s330 = sphi 0, %s316
    %s334 = sphi 0, %s334
    %s336 = sphi 0, %s334
    %s337 = sphi 0, %s336
    %s351 = sphi 0, %s337
    %s355 = sphi 0, %s355
    %s357 = sphi 0, %s355
    %s358 = sphi 0, %s357
    %s372 = sphi 0, %s358
    %s376 = sphi 0, %s376
    %s378 = sphi 0, %s376
    %s379 = sphi 0, %s378
    %s393 = sphi 0, %s379
    %s397 = sphi 0, %s397
    %s399 = sphi 0, %s397
    %s400 = sphi 0, %s399
    %s414 = sphi 0, %s400
    %s418 = sphi 0, %s418
    %s420 = sphi 0, %s418
    %s421 = sphi 0, %s420
    %s435 = sphi 0, %s421
    %s439 = sphi 0, %s439
    %s441 = sphi 0, %s439
    %s442 = sphi 0, %s441
    %s456 = sphi 0, %s442
    %s460 = sphi 0, %s460
    %s462 = sphi 0, %s460
    %s463 = sphi 0, %s462
    %s477 = sphi 0, %s463
    %s481 = sphi 0, %s481
    %s483 = sphi 0, %s481
    %s484 = sphi 0, %s483
    %s498 = sphi 0, %s484
    %s506 = sphi 0, %s508
    %s509 = sphi 0, %s506
    %s510 = sphi 0, %s509
    %s526 = sphi 0, %s510
    %s534 = sphi 0, %s536
    %s537 = sphi 0, %s534
    %s538 = sphi 0, %s537
    %s554 = sphi 0, %s538
  $region4: #{_lambda_.7} parent=0 // loop_header_branch
    %32 = sbr.rel (%p30) target = $region8
  $region5: #{_lambda_.7} parent=0 // loop_body
    %s34 = ssub.s32 %s29, 1
    %s35 = ssub.s32 %s29, 2
    %s42 = sadd.s32 1, %s37
    %p43 = scmp.ge.s32.totalorder %s42, 1
    %s44 = scalar_select %p43, 0, %s42
    %s45 = sadd.s32 1, %s36
    %s46 = scalar_select %p43, %s45, %s36
    %p47 = scmp.ge.s32.totalorder %s46, 2
    %s48 = scalar_select %p47, 0, %s46
    %s49 = ssub.s32 %s36, %s48
    %s50 = ssub.s32 %s37, %s44
    %s51 = sor.u32 %s49, %s50
    %p52 = scmp.eq.s32.totalorder %s51, 0
    %s54 = sadd.s32 %s53, 1
    %s55 = scalar_select %p52, %s53, %s54
    %p58 = pneg %p52
    %p59 = scmp.eq.s32.totalorder %s29, 1
    %p60 = por %p58, %p59
    %p61 = scmp.ne.s32.totalorder %s53, %s56
    %p62 = scmp.eq.s32.totalorder %s29, 0
    %p63 = por %p61, %p62
    %p64 = scmp.ne.s32.totalorder %s53, %s56
    %p65 = scmp.eq.s32.totalorder %s34, 1
    %p66 = por %p64, %p65
    %p67 = scmp.ne.s32.totalorder %s56, %s57
    %p68 = scmp.eq.s32.totalorder %s34, 0
    %p69 = por %p67, %p68
    %p70 = scmp.ne.s32.totalorder %s56, %s57
    %p71 = scmp.eq.s32.totalorder %s35, 1
    %p72 = por %p70, %p71
    %p74 = scmp.ne.s32.totalorder %s57, %s73
    %p75 = scmp.eq.s32.totalorder %s35, 0
    %p76 = por %p74, %p75
    %s77 = ssub.s32 %s36, %s48
    %p78 = scmp.eq.s32.totalorder %s77, 0
    %s80 = sadd.s32 %s79, 1
    %s81 = scalar_select %p78, %s79, %s80
    %p84 = pneg %p78
    %p85 = scmp.eq.s32.totalorder %s29, 1
    %p86 = por %p84, %p85
    %p87 = scmp.ne.s32.totalorder %s79, %s82
    %p88 = scmp.eq.s32.totalorder %s29, 0
    %p89 = por %p87, %p88
    %p90 = scmp.ne.s32.totalorder %s79, %s82
    %p91 = scmp.eq.s32.totalorder %s34, 1
    %p92 = por %p90, %p91
    %p93 = scmp.ne.s32.totalorder %s82, %s83
    %p94 = scmp.eq.s32.totalorder %s34, 0
    %p95 = por %p93, %p94
    %p96 = scmp.ne.s32.totalorder %s82, %s83
    %p97 = scmp.eq.s32.totalorder %s35, 1
    %p98 = por %p96, %p97
    %p100 = scmp.ne.s32.totalorder %s83, %s99
    %p101 = scmp.eq.s32.totalorder %s35, 0
    %p102 = por %p100, %p101
    %s104 = sadd.s32 %s103, 1
    %p107 = scmp.eq.s32.totalorder %s29, 1
    %p108 = scmp.ne.s32.totalorder %s103, %s105
    %p109 = scmp.eq.s32.totalorder %s29, 0
    %p110 = por %p108, %p109
    %p111 = scmp.ne.s32.totalorder %s103, %s105
    %p112 = scmp.eq.s32.totalorder %s34, 1
    %p113 = por %p111, %p112
    %p114 = scmp.ne.s32.totalorder %s105, %s106
    %p115 = scmp.eq.s32.totalorder %s34, 0
    %p116 = por %p114, %p115
    %p117 = scmp.ne.s32.totalorder %s105, %s106
    %p118 = scmp.eq.s32.totalorder %s35, 1
    %p119 = por %p117, %p118
    %p121 = scmp.ne.s32.totalorder %s106, %s120
    %p122 = scmp.eq.s32.totalorder %s35, 0
    %p123 = por %p121, %p122
    %s125 = sadd.s32 %s124, 1
    %p128 = scmp.eq.s32.totalorder %s29, 1
    %p129 = scmp.ne.s32.totalorder %s124, %s126
    %p130 = scmp.eq.s32.totalorder %s29, 0
    %p131 = por %p129, %p130
    %p132 = scmp.ne.s32.totalorder %s124, %s126
    %p133 = scmp.eq.s32.totalorder %s34, 1
    %p134 = por %p132, %p133
    %p135 = scmp.ne.s32.totalorder %s126, %s127
    %p136 = scmp.eq.s32.totalorder %s34, 0
    %p137 = por %p135, %p136
    %p138 = scmp.ne.s32.totalorder %s126, %s127
    %p139 = scmp.eq.s32.totalorder %s35, 1
    %p140 = por %p138, %p139
    %p142 = scmp.ne.s32.totalorder %s127, %s141
    %p143 = scmp.eq.s32.totalorder %s35, 0
    %p144 = por %p142, %p143
    %s146 = sadd.s32 %s145, 1
    %p149 = scmp.eq.s32.totalorder %s29, 1
    %p150 = scmp.ne.s32.totalorder %s145, %s147
    %p151 = scmp.eq.s32.totalorder %s29, 0
    %p152 = por %p150, %p151
    %p153 = scmp.ne.s32.totalorder %s145, %s147
    %p154 = scmp.eq.s32.totalorder %s34, 1
    %p155 = por %p153, %p154
    %p156 = scmp.ne.s32.totalorder %s147, %s148
    %p157 = scmp.eq.s32.totalorder %s34, 0
    %p158 = por %p156, %p157
    %p159 = scmp.ne.s32.totalorder %s147, %s148
    %p160 = scmp.eq.s32.totalorder %s35, 1
    %p161 = por %p159, %p160
    %p163 = scmp.ne.s32.totalorder %s148, %s162
    %p164 = scmp.eq.s32.totalorder %s35, 0
    %p165 = por %p163, %p164
    %s167 = sadd.s32 %s166, 1
    %p170 = scmp.eq.s32.totalorder %s29, 1
    %p171 = scmp.ne.s32.totalorder %s166, %s168
    %p172 = scmp.eq.s32.totalorder %s29, 0
    %p173 = por %p171, %p172
    %p174 = scmp.ne.s32.totalorder %s166, %s168
    %p175 = scmp.eq.s32.totalorder %s34, 1
    %p176 = por %p174, %p175
    %p177 = scmp.ne.s32.totalorder %s168, %s169
    %p178 = scmp.eq.s32.totalorder %s34, 0
    %p179 = por %p177, %p178
    %p180 = scmp.ne.s32.totalorder %s168, %s169
    %p181 = scmp.eq.s32.totalorder %s35, 1
    %p182 = por %p180, %p181
    %p184 = scmp.ne.s32.totalorder %s169, %s183
    %p185 = scmp.eq.s32.totalorder %s35, 0
    %p186 = por %p184, %p185
    %s188 = sadd.s32 %s187, 1
    %p191 = scmp.eq.s32.totalorder %s29, 1
    %p192 = scmp.ne.s32.totalorder %s187, %s189
    %p193 = scmp.eq.s32.totalorder %s29, 0
    %p194 = por %p192, %p193
    %p195 = scmp.ne.s32.totalorder %s187, %s189
    %p196 = scmp.eq.s32.totalorder %s34, 1
    %p197 = por %p195, %p196
    %p198 = scmp.ne.s32.totalorder %s189, %s190
    %p199 = scmp.eq.s32.totalorder %s34, 0
    %p200 = por %p198, %p199
    %p201 = scmp.ne.s32.totalorder %s189, %s190
    %p202 = scmp.eq.s32.totalorder %s35, 1
    %p203 = por %p201, %p202
    %p205 = scmp.ne.s32.totalorder %s190, %s204
    %p206 = scmp.eq.s32.totalorder %s35, 0
    %p207 = por %p205, %p206
    %s209 = sadd.s32 %s208, 1
    %p212 = scmp.eq.s32.totalorder %s29, 1
    %p213 = scmp.ne.s32.totalorder %s208, %s210
    %p214 = scmp.eq.s32.totalorder %s29, 0
    %p215 = por %p213, %p214
    %p216 = scmp.ne.s32.totalorder %s208, %s210
    %p217 = scmp.eq.s32.totalorder %s34, 1
    %p218 = por %p216, %p217
    %p219 = scmp.ne.s32.totalorder %s210, %s211
    %p220 = scmp.eq.s32.totalorder %s34, 0
    %p221 = por %p219, %p220
    %p222 = scmp.ne.s32.totalorder %s210, %s211
    %p223 = scmp.eq.s32.totalorder %s35, 1
    %p224 = por %p222, %p223
    %p226 = scmp.ne.s32.totalorder %s211, %s225
    %p227 = scmp.eq.s32.totalorder %s35, 0
    %p228 = por %p226, %p227
    %s230 = sadd.s32 %s229, 1
    %p233 = scmp.eq.s32.totalorder %s29, 1
    %p234 = scmp.ne.s32.totalorder %s229, %s231
    %p235 = scmp.eq.s32.totalorder %s29, 0
    %p236 = por %p234, %p235
    %p237 = scmp.ne.s32.totalorder %s229, %s231
    %p238 = scmp.eq.s32.totalorder %s34, 1
    %p239 = por %p237, %p238
    %p240 = scmp.ne.s32.totalorder %s231, %s232
    %p241 = scmp.eq.s32.totalorder %s34, 0
    %p242 = por %p240, %p241
    %p243 = scmp.ne.s32.totalorder %s231, %s232
    %p244 = scmp.eq.s32.totalorder %s35, 1
    %p245 = por %p243, %p244
    %p247 = scmp.ne.s32.totalorder %s232, %s246
    %p248 = scmp.eq.s32.totalorder %s35, 0
    %p249 = por %p247, %p248
    %s251 = sadd.s32 %s250, 1
    %p254 = scmp.eq.s32.totalorder %s29, 1
    %p255 = scmp.ne.s32.totalorder %s250, %s252
    %p256 = scmp.eq.s32.totalorder %s29, 0
    %p257 = por %p255, %p256
    %p258 = scmp.ne.s32.totalorder %s250, %s252
    %p259 = scmp.eq.s32.totalorder %s34, 1
    %p260 = por %p258, %p259
    %p261 = scmp.ne.s32.totalorder %s252, %s253
    %p262 = scmp.eq.s32.totalorder %s34, 0
    %p263 = por %p261, %p262
    %p264 = scmp.ne.s32.totalorder %s252, %s253
    %p265 = scmp.eq.s32.totalorder %s35, 1
    %p266 = por %p264, %p265
    %p268 = scmp.ne.s32.totalorder %s253, %s267
    %p269 = scmp.eq.s32.totalorder %s35, 0
    %p270 = por %p268, %p269
    %s272 = sadd.s32 %s271, 1
    %p275 = scmp.eq.s32.totalorder %s29, 1
    %p276 = scmp.ne.s32.totalorder %s271, %s273
    %p277 = scmp.eq.s32.totalorder %s29, 0
    %p278 = por %p276, %p277
    %p279 = scmp.ne.s32.totalorder %s271, %s273
    %p280 = scmp.eq.s32.totalorder %s34, 1
    %p281 = por %p279, %p280
    %p282 = scmp.ne.s32.totalorder %s273, %s274
    %p283 = scmp.eq.s32.totalorder %s34, 0
    %p284 = por %p282, %p283
    %p285 = scmp.ne.s32.totalorder %s273, %s274
    %p286 = scmp.eq.s32.totalorder %s35, 1
    %p287 = por %p285, %p286
    %p289 = scmp.ne.s32.totalorder %s274, %s288
    %p290 = scmp.eq.s32.totalorder %s35, 0
    %p291 = por %p289, %p290
    %s293 = sadd.s32 %s292, 1
    %p296 = scmp.eq.s32.totalorder %s29, 1
    %p297 = scmp.ne.s32.totalorder %s292, %s294
    %p298 = scmp.eq.s32.totalorder %s29, 0
    %p299 = por %p297, %p298
    %p300 = scmp.ne.s32.totalorder %s292, %s294
    %p301 = scmp.eq.s32.totalorder %s34, 1
    %p302 = por %p300, %p301
    %p303 = scmp.ne.s32.totalorder %s294, %s295
    %p304 = scmp.eq.s32.totalorder %s34, 0
    %p305 = por %p303, %p304
    %p306 = scmp.ne.s32.totalorder %s294, %s295
    %p307 = scmp.eq.s32.totalorder %s35, 1
    %p308 = por %p306, %p307
    %p310 = scmp.ne.s32.totalorder %s295, %s309
    %p311 = scmp.eq.s32.totalorder %s35, 0
    %p312 = por %p310, %p311
    %s314 = sadd.s32 %s313, 1
    %p317 = scmp.eq.s32.totalorder %s29, 1
    %p318 = scmp.ne.s32.totalorder %s313, %s315
    %p319 = scmp.eq.s32.totalorder %s29, 0
    %p320 = por %p318, %p319
    %p321 = scmp.ne.s32.totalorder %s313, %s315
    %p322 = scmp.eq.s32.totalorder %s34, 1
    %p323 = por %p321, %p322
    %p324 = scmp.ne.s32.totalorder %s315, %s316
    %p325 = scmp.eq.s32.totalorder %s34, 0
    %p326 = por %p324, %p325
    %p327 = scmp.ne.s32.totalorder %s315, %s316
    %p328 = scmp.eq.s32.totalorder %s35, 1
    %p329 = por %p327, %p328
    %p331 = scmp.ne.s32.totalorder %s316, %s330
    %p332 = scmp.eq.s32.totalorder %s35, 0
    %p333 = por %p331, %p332
    %s335 = sadd.s32 %s334, 1
    %p338 = scmp.eq.s32.totalorder %s29, 1
    %p339 = scmp.ne.s32.totalorder %s334, %s336
    %p340 = scmp.eq.s32.totalorder %s29, 0
    %p341 = por %p339, %p340
    %p342 = scmp.ne.s32.totalorder %s334, %s336
    %p343 = scmp.eq.s32.totalorder %s34, 1
    %p344 = por %p342, %p343
    %p345 = scmp.ne.s32.totalorder %s336, %s337
    %p346 = scmp.eq.s32.totalorder %s34, 0
    %p347 = por %p345, %p346
    %p348 = scmp.ne.s32.totalorder %s336, %s337
    %p349 = scmp.eq.s32.totalorder %s35, 1
    %p350 = por %p348, %p349
    %p352 = scmp.ne.s32.totalorder %s337, %s351
    %p353 = scmp.eq.s32.totalorder %s35, 0
    %p354 = por %p352, %p353
    %s356 = sadd.s32 %s355, 1
    %p359 = scmp.eq.s32.totalorder %s29, 1
    %p360 = scmp.ne.s32.totalorder %s355, %s357
    %p361 = scmp.eq.s32.totalorder %s29, 0
    %p362 = por %p360, %p361
    %p363 = scmp.ne.s32.totalorder %s355, %s357
    %p364 = scmp.eq.s32.totalorder %s34, 1
    %p365 = por %p363, %p364
    %p366 = scmp.ne.s32.totalorder %s357, %s358
    %p367 = scmp.eq.s32.totalorder %s34, 0
    %p368 = por %p366, %p367
    %p369 = scmp.ne.s32.totalorder %s357, %s358
    %p370 = scmp.eq.s32.totalorder %s35, 1
    %p371 = por %p369, %p370
    %p373 = scmp.ne.s32.totalorder %s358, %s372
    %p374 = scmp.eq.s32.totalorder %s35, 0
    %p375 = por %p373, %p374
    %s377 = sadd.s32 %s376, 1
    %p380 = scmp.eq.s32.totalorder %s29, 1
    %p381 = scmp.ne.s32.totalorder %s376, %s378
    %p382 = scmp.eq.s32.totalorder %s29, 0
    %p383 = por %p381, %p382
    %p384 = scmp.ne.s32.totalorder %s376, %s378
    %p385 = scmp.eq.s32.totalorder %s34, 1
    %p386 = por %p384, %p385
    %p387 = scmp.ne.s32.totalorder %s378, %s379
    %p388 = scmp.eq.s32.totalorder %s34, 0
    %p389 = por %p387, %p388
    %p390 = scmp.ne.s32.totalorder %s378, %s379
    %p391 = scmp.eq.s32.totalorder %s35, 1
    %p392 = por %p390, %p391
    %p394 = scmp.ne.s32.totalorder %s379, %s393
    %p395 = scmp.eq.s32.totalorder %s35, 0
    %p396 = por %p394, %p395
    %s398 = sadd.s32 %s397, 1
    %p401 = scmp.eq.s32.totalorder %s29, 1
    %p402 = scmp.ne.s32.totalorder %s397, %s399
    %p403 = scmp.eq.s32.totalorder %s29, 0
    %p404 = por %p402, %p403
    %p405 = scmp.ne.s32.totalorder %s397, %s399
    %p406 = scmp.eq.s32.totalorder %s34, 1
    %p407 = por %p405, %p406
    %p408 = scmp.ne.s32.totalorder %s399, %s400
    %p409 = scmp.eq.s32.totalorder %s34, 0
    %p410 = por %p408, %p409
    %p411 = scmp.ne.s32.totalorder %s399, %s400
    %p412 = scmp.eq.s32.totalorder %s35, 1
    %p413 = por %p411, %p412
    %p415 = scmp.ne.s32.totalorder %s400, %s414
    %p416 = scmp.eq.s32.totalorder %s35, 0
    %p417 = por %p415, %p416
    %s419 = sadd.s32 %s418, 1
    %p422 = scmp.eq.s32.totalorder %s29, 1
    %p423 = scmp.ne.s32.totalorder %s418, %s420
    %p424 = scmp.eq.s32.totalorder %s29, 0
    %p425 = por %p423, %p424
    %p426 = scmp.ne.s32.totalorder %s418, %s420
    %p427 = scmp.eq.s32.totalorder %s34, 1
    %p428 = por %p426, %p427
    %p429 = scmp.ne.s32.totalorder %s420, %s421
    %p430 = scmp.eq.s32.totalorder %s34, 0
    %p431 = por %p429, %p430
    %p432 = scmp.ne.s32.totalorder %s420, %s421
    %p433 = scmp.eq.s32.totalorder %s35, 1
    %p434 = por %p432, %p433
    %p436 = scmp.ne.s32.totalorder %s421, %s435
    %p437 = scmp.eq.s32.totalorder %s35, 0
    %p438 = por %p436, %p437
    %s440 = sadd.s32 %s439, 1
    %p443 = scmp.eq.s32.totalorder %s29, 1
    %p444 = scmp.ne.s32.totalorder %s439, %s441
    %p445 = scmp.eq.s32.totalorder %s29, 0
    %p446 = por %p444, %p445
    %p447 = scmp.ne.s32.totalorder %s439, %s441
    %p448 = scmp.eq.s32.totalorder %s34, 1
    %p449 = por %p447, %p448
    %p450 = scmp.ne.s32.totalorder %s441, %s442
    %p451 = scmp.eq.s32.totalorder %s34, 0
    %p452 = por %p450, %p451
    %p453 = scmp.ne.s32.totalorder %s441, %s442
    %p454 = scmp.eq.s32.totalorder %s35, 1
    %p455 = por %p453, %p454
    %p457 = scmp.ne.s32.totalorder %s442, %s456
    %p458 = scmp.eq.s32.totalorder %s35, 0
    %p459 = por %p457, %p458
    %s461 = sadd.s32 %s460, 1
    %p464 = scmp.eq.s32.totalorder %s29, 1
    %p465 = scmp.ne.s32.totalorder %s460, %s462
    %p466 = scmp.eq.s32.totalorder %s29, 0
    %p467 = por %p465, %p466
    %p468 = scmp.ne.s32.totalorder %s460, %s462
    %p469 = scmp.eq.s32.totalorder %s34, 1
    %p470 = por %p468, %p469
    %p471 = scmp.ne.s32.totalorder %s462, %s463
    %p472 = scmp.eq.s32.totalorder %s34, 0
    %p473 = por %p471, %p472
    %p474 = scmp.ne.s32.totalorder %s462, %s463
    %p475 = scmp.eq.s32.totalorder %s35, 1
    %p476 = por %p474, %p475
    %p478 = scmp.ne.s32.totalorder %s463, %s477
    %p479 = scmp.eq.s32.totalorder %s35, 0
    %p480 = por %p478, %p479
    %s482 = sadd.s32 %s481, 1
    %p485 = scmp.eq.s32.totalorder %s29, 1
    %p486 = scmp.ne.s32.totalorder %s481, %s483
    %p487 = scmp.eq.s32.totalorder %s29, 0
    %p488 = por %p486, %p487
    %p489 = scmp.ne.s32.totalorder %s481, %s483
    %p490 = scmp.eq.s32.totalorder %s34, 1
    %p491 = por %p489, %p490
    %p492 = scmp.ne.s32.totalorder %s483, %s484
    %p493 = scmp.eq.s32.totalorder %s34, 0
    %p494 = por %p492, %p493
    %p495 = scmp.ne.s32.totalorder %s483, %s484
    %p496 = scmp.eq.s32.totalorder %s35, 1
    %p497 = por %p495, %p496
    %p499 = scmp.ne.s32.totalorder %s484, %s498
    %p500 = scmp.eq.s32.totalorder %s35, 0
    %p501 = por %p499, %p500
    %s502 = ssub.s32 %s36, %s48
    %s503 = ssub.s32 %s37, %s44
    %s504 = sor.u32 %s502, %s503
    %p505 = scmp.eq.s32.totalorder %s504, 0
    %s507 = sadd.s32 %s506, 1
    %s508 = scalar_select %p505, %s506, %s507
    %p511 = pneg %p505
    %p512 = scmp.eq.s32.totalorder %s29, 1
    %p513 = por %p511, %p512
    %p514 = scmp.ne.s32.totalorder %s506, %s509
    %p515 = scmp.eq.s32.totalorder %s29, 0
    %p516 = por %p514, %p515
    %p517 = scmp.ne.s32.totalorder %s506, %s509
    %p518 = scmp.eq.s32.totalorder %s34, 1
    %p519 = por %p517, %p518
    %p520 = scmp.ne.s32.totalorder %s509, %s510
    %p521 = scmp.eq.s32.totalorder %s34, 0
    %p522 = por %p520, %p521
    %p523 = scmp.ne.s32.totalorder %s509, %s510
    %p524 = scmp.eq.s32.totalorder %s35, 1
    %p525 = por %p523, %p524
    %p527 = scmp.ne.s32.totalorder %s510, %s526
    %p528 = scmp.eq.s32.totalorder %s35, 0
    %p529 = por %p527, %p528
    %s530 = ssub.s32 %s36, %s48
    %s531 = ssub.s32 %s37, %s44
    %s532 = sor.u32 %s530, %s531
    %p533 = scmp.eq.s32.totalorder %s532, 0
    %s535 = sadd.s32 %s534, 1
    %s536 = scalar_select %p533, %s534, %s535
    %p539 = pneg %p533
    %p540 = scmp.eq.s32.totalorder %s29, 1
    %p541 = por %p539, %p540
    %p542 = scmp.ne.s32.totalorder %s534, %s537
    %p543 = scmp.eq.s32.totalorder %s29, 0
    %p544 = por %p542, %p543
    %p545 = scmp.ne.s32.totalorder %s534, %s537
    %p546 = scmp.eq.s32.totalorder %s34, 1
    %p547 = por %p545, %p546
    %p548 = scmp.ne.s32.totalorder %s537, %s538
    %p549 = scmp.eq.s32.totalorder %s34, 0
    %p550 = por %p548, %p549
    %p551 = scmp.ne.s32.totalorder %s537, %s538
    %p552 = scmp.eq.s32.totalorder %s35, 1
    %p553 = por %p551, %p552
    %p555 = scmp.ne.s32.totalorder %s538, %s554
    %p556 = scmp.eq.s32.totalorder %s35, 0
    %p557 = por %p555, %p556
    %p558 = scmp.le.s32.totalorder 1, %s29
    %p559 = scmp.lt.s32.totalorder %s29, 3
    %p560 = pnand %p558, %p559
    %p561 = pneg %p560
    // Predicated region
    $region9: #{_lambda_.7} parent=5 // pred_check
      _
    $region10: #{_lambda_.7} parent=5 // pred_check_branch
      %563 = sbr.rel (%p560) target = $region12
    $region11: #{_lambda_.7} parent=5 // pred_region
      %s564 = ssub.s32 %s29, 1
      // Predicated region
      $region13: #{_lambda_.7} parent=11 // pred_check
        %p565 = pneg %p116
      $region14: #{_lambda_.7} parent=11 // pred_check_branch
        %567 = sbr.rel (%p565) target = $region16
      $region15: #{_lambda_.7} parent=11 // pred_region
        _
      $region16: #{_lambda_.7} parent=11 // pred_fallthru
        _
      // Predicated region
      $region17: #{_lambda_.7} parent=11 // pred_check
        %p568 = pneg %p137
      $region18: #{_lambda_.7} parent=11 // pred_check_branch
        %570 = sbr.rel (%p568) target = $region20
      $region19: #{_lambda_.7} parent=11 // pred_region
        _
      $region20: #{_lambda_.7} parent=11 // pred_fallthru
        _
      // Predicated region
      $region21: #{_lambda_.7} parent=11 // pred_check
        %p571 = pneg %p158
      $region22: #{_lambda_.7} parent=11 // pred_check_branch
        %573 = sbr.rel (%p571) target = $region24
      $region23: #{_lambda_.7} parent=11 // pred_region
        _
      $region24: #{_lambda_.7} parent=11 // pred_fallthru
        _
      // Predicated region
      $region25: #{_lambda_.7} parent=11 // pred_check
        %p574 = pneg %p179
      $region26: #{_lambda_.7} parent=11 // pred_check_branch
        %576 = sbr.rel (%p574) target = $region28
      $region27: #{_lambda_.7} parent=11 // pred_region
        _
      $region28: #{_lambda_.7} parent=11 // pred_fallthru
        _
      // Predicated region
      $region29: #{_lambda_.7} parent=11 // pred_check
        %p577 = pneg %p200
      $region30: #{_lambda_.7} parent=11 // pred_check_branch
        %579 = sbr.rel (%p577) target = $region32
      $region31: #{_lambda_.7} parent=11 // pred_region
        _
      $region32: #{_lambda_.7} parent=11 // pred_fallthru
        _
      // Predicated region
      $region33: #{_lambda_.7} parent=11 // pred_check
        %p580 = pneg %p221
      $region34: #{_lambda_.7} parent=11 // pred_check_branch
        %582 = sbr.rel (%p580) target = $region36
      $region35: #{_lambda_.7} parent=11 // pred_region
        _
      $region36: #{_lambda_.7} parent=11 // pred_fallthru
        _
      // Predicated region
      $region37: #{_lambda_.7} parent=11 // pred_check
        %p583 = pneg %p242
      $region38: #{_lambda_.7} parent=11 // pred_check_branch
        %585 = sbr.rel (%p583) target = $region40
      $region39: #{_lambda_.7} parent=11 // pred_region
        _
      $region40: #{_lambda_.7} parent=11 // pred_fallthru
        _
      // Predicated region
      $region41: #{_lambda_.7} parent=11 // pred_check
        %p586 = pneg %p263
      $region42: #{_lambda_.7} parent=11 // pred_check_branch
        %588 = sbr.rel (%p586) target = $region44
      $region43: #{_lambda_.7} parent=11 // pred_region
        _
      $region44: #{_lambda_.7} parent=11 // pred_fallthru
        _
      // Predicated region
      $region45: #{_lambda_.7} parent=11 // pred_check
        %p589 = pneg %p284
      $region46: #{_lambda_.7} parent=11 // pred_check_branch
        %591 = sbr.rel (%p589) target = $region48
      $region47: #{_lambda_.7} parent=11 // pred_region
        _
      $region48: #{_lambda_.7} parent=11 // pred_fallthru
        _
      // Predicated region
      $region49: #{_lambda_.7} parent=11 // pred_check
        %p592 = pneg %p305
      $region50: #{_lambda_.7} parent=11 // pred_check_branch
        %594 = sbr.rel (%p592) target = $region52
      $region51: #{_lambda_.7} parent=11 // pred_region
        _
      $region52: #{_lambda_.7} parent=11 // pred_fallthru
        _
      // Predicated region
      $region53: #{_lambda_.7} parent=11 // pred_check
        %p595 = pneg %p326
      $region54: #{_lambda_.7} parent=11 // pred_check_branch
        %597 = sbr.rel (%p595) target = $region56
      $region55: #{_lambda_.7} parent=11 // pred_region
        _
      $region56: #{_lambda_.7} parent=11 // pred_fallthru
        _
      // Predicated region
      $region57: #{_lambda_.7} parent=11 // pred_check
        %p598 = pneg %p347
      $region58: #{_lambda_.7} parent=11 // pred_check_branch
        %600 = sbr.rel (%p598) target = $region60
      $region59: #{_lambda_.7} parent=11 // pred_region
        _
      $region60: #{_lambda_.7} parent=11 // pred_fallthru
        _
      // Predicated region
      $region61: #{_lambda_.7} parent=11 // pred_check
        %p601 = pneg %p368
      $region62: #{_lambda_.7} parent=11 // pred_check_branch
        %603 = sbr.rel (%p601) target = $region64
      $region63: #{_lambda_.7} parent=11 // pred_region
        _
      $region64: #{_lambda_.7} parent=11 // pred_fallthru
        _
      // Predicated region
      $region65: #{_lambda_.7} parent=11 // pred_check
        %p604 = pneg %p389
      $region66: #{_lambda_.7} parent=11 // pred_check_branch
        %606 = sbr.rel (%p604) target = $region68
      $region67: #{_lambda_.7} parent=11 // pred_region
        _
      $region68: #{_lambda_.7} parent=11 // pred_fallthru
        _
      // Predicated region
      $region69: #{_lambda_.7} parent=11 // pred_check
        %p607 = pneg %p410
      $region70: #{_lambda_.7} parent=11 // pred_check_branch
        %609 = sbr.rel (%p607) target = $region72
      $region71: #{_lambda_.7} parent=11 // pred_region
        _
      $region72: #{_lambda_.7} parent=11 // pred_fallthru
        _
      // Predicated region
      $region73: #{_lambda_.7} parent=11 // pred_check
        %p610 = pneg %p431
      $region74: #{_lambda_.7} parent=11 // pred_check_branch
        %612 = sbr.rel (%p610) target = $region76
      $region75: #{_lambda_.7} parent=11 // pred_region
        _
      $region76: #{_lambda_.7} parent=11 // pred_fallthru
        _
      // Predicated region
      $region77: #{_lambda_.7} parent=11 // pred_check
        %p613 = pneg %p452
      $region78: #{_lambda_.7} parent=11 // pred_check_branch
        %615 = sbr.rel (%p613) target = $region80
      $region79: #{_lambda_.7} parent=11 // pred_region
        _
      $region80: #{_lambda_.7} parent=11 // pred_fallthru
        _
      // Predicated region
      $region81: #{_lambda_.7} parent=11 // pred_check
        %p616 = pneg %p473
      $region82: #{_lambda_.7} parent=11 // pred_check_branch
        %618 = sbr.rel (%p616) target = $region84
      $region83: #{_lambda_.7} parent=11 // pred_region
        _
      $region84: #{_lambda_.7} parent=11 // pred_fallthru
        _
      // Predicated region
      $region85: #{_lambda_.7} parent=11 // pred_check
        %p619 = pneg %p494
      $region86: #{_lambda_.7} parent=11 // pred_check_branch
        %621 = sbr.rel (%p619) target = $region88
      $region87: #{_lambda_.7} parent=11 // pred_region
        _
      $region88: #{_lambda_.7} parent=11 // pred_fallthru
        _
    $region12: #{_lambda_.7} parent=5 // pred_fallthru
      _
    %p622 = scmp.lt.s32.totalorder %s29, 2
    // Predicated region
    $region89: #{_lambda_.7} parent=5 // pred_check
      %p623 = pneg %p622
    $region90: #{_lambda_.7} parent=5 // pred_check_branch
      %625 = sbr.rel (%p623) target = $region92
    $region91: #{_lambda_.7} parent=5 // pred_region
      // Predicated region
      $region93: #{_lambda_.7} parent=91 // pred_check
        %p626 = pneg %p63
      $region94: #{_lambda_.7} parent=91 // pred_check_branch
        %628 = sbr.rel (%p626) target = $region96
      $region95: #{_lambda_.7} parent=91 // pred_region
        %s629 = smul.u32 2, %s37
        %p630 = scmp.lt.s32.totalorder %s36, 1
        %s631 = scalar_select %p630, %s36, 1
        %p632 = scmp.lt.s32.totalorder %s629, 1
        %s633 = scalar_select %p632, %s629, 1
        %s634 = smul.addr %s631, 2
        %s635 = sadd.s32 %s633, %s634
        %s636 = smul.addr %s635, 8
        %s637 = scalar_lea.vmem %s0, %s636
        %s638 = smul.u32 2, %s37
      $region96: #{_lambda_.7} parent=91 // pred_fallthru
        _
      // Predicated region
      $region97: #{_lambda_.7} parent=91 // pred_check
        %p639 = pneg %p89
      $region98: #{_lambda_.7} parent=91 // pred_check_branch
        %641 = sbr.rel (%p639) target = $region100
      $region99: #{_lambda_.7} parent=91 // pred_region
        %p642 = scmp.lt.s32.totalorder %s36, 1
        %s643 = scalar_select %p642, %s36, 1
        %s644 = smul.addr %s643, 16
        %s645 = smul.addr %s644, 4
        %s646 = scalar_lea.vmem %s1, %s645
      $region100: #{_lambda_.7} parent=91 // pred_fallthru
        _
    $region92: #{_lambda_.7} parent=5 // pred_fallthru
      _
    %p647 = scmp.le.s32.totalorder 1, %s29
    %p648 = scmp.lt.s32.totalorder %s29, 3
    %p649 = pnand %p647, %p648
    %p650 = pneg %p649
    // Predicated region
    $region101: #{_lambda_.7} parent=5 // pred_check
      _
    $region102: #{_lambda_.7} parent=5 // pred_check_branch
      %652 = sbr.rel (%p649) target = $region104
    $region103: #{_lambda_.7} parent=5 // pred_region
      %s653 = ssub.s32 %s29, 1
      %s654 = smul.u32 2, %s39
      %p655 = scmp.lt.s32.totalorder %s38, 1
      %s656 = scalar_select %p655, %s38, 1
      %p657 = scmp.lt.s32.totalorder %s654, 1
      %s658 = scalar_select %p657, %s654, 1
      %s659 = smul.addr %s656, 2
      %s660 = sadd.s32 %s658, %s659
      %s661 = smul.addr %s660, 8
      %s662 = scalar_lea.vmem %s0, %s661
      %p663 = pneg %p69
      %p664 = pneg %p66
      %p665 = scmp.lt.s32.totalorder %s38, 1
      %s666 = scalar_select %p665, %s38, 1
      %s667 = smul.addr %s666, 16
      %s668 = smul.addr %s667, 4
      %s669 = scalar_lea.vmem %s1, %s668
      %p670 = pneg %p95
      %p671 = pneg %p92
      %p672 = pneg %p116
      %p673 = pneg %p113
      %p674 = pneg %p137
      %p675 = pneg %p134
      %p676 = pneg %p158
      %p677 = pneg %p155
      %p678 = pneg %p179
      %p679 = pneg %p176
      %p680 = pneg %p200
      %p681 = pneg %p197
      %p682 = pneg %p221
      %p683 = pneg %p218
      %p684 = pneg %p242
      %p685 = pneg %p239
      %p686 = pneg %p263
      %p687 = pneg %p260
      %p688 = pneg %p284
      %p689 = pneg %p281
      %p690 = pneg %p305
      %p691 = pneg %p302
      %p692 = pneg %p326
      %p693 = pneg %p323
      %p694 = pneg %p347
      %p695 = pneg %p344
      %p696 = pneg %p368
      %p697 = pneg %p365
      %p698 = pneg %p389
      %p699 = pneg %p386
      %p700 = pneg %p410
      %p701 = pneg %p407
      %p702 = pneg %p431
      %p703 = pneg %p428
      %p704 = pneg %p452
      %p705 = pneg %p449
      %p706 = pneg %p473
      %p707 = pneg %p470
      %p708 = pneg %p494
      %p709 = pneg %p491
      %p710 = pneg %p522
      %p711 = pneg %p519
      %s712 = smul.u32 2, %s39
      %p713 = scmp.lt.s32.totalorder %s38, 1
      %s714 = scalar_select %p713, %s38, 1
      %p715 = scmp.lt.s32.totalorder %s712, 1
      %s716 = scalar_select %p715, %s712, 1
      %s717 = smul.addr %s714, 2
      %s718 = sadd.s32 %s716, %s717
      %s719 = smul.addr %s718, 8
      %s720 = scalar_lea.vmem %s21, %s719
      %p721 = pneg %p550
      %p722 = pneg %p547
      %s723 = smul.u32 2, %s39
      %p724 = scmp.lt.s32.totalorder %s38, 1
      %s725 = scalar_select %p724, %s38, 1
      %p726 = scmp.lt.s32.totalorder %s723, 1
      %s727 = scalar_select %p726, %s723, 1
      %s728 = smul.addr %s725, 2
      %s729 = sadd.s32 %s727, %s728
      %s730 = smul.addr %s729, 8
      %s731 = scalar_lea.vmem %s22, %s730
      %s732 = smul.u32 2, %s39
      %p733 = scmp.lt.s32.totalorder %s38, 1
      %s734 = scalar_select %p733, %s38, 1
      %p735 = scmp.lt.s32.totalorder %s732, 1
      %s736 = scalar_select %p735, %s732, 1
      %s737 = smul.addr %s734, 2
      %s738 = sadd.s32 %s736, %s737
      %s739 = smul.addr %s738, 8
      %s740 = scalar_lea.vmem %s0, %s739
      %s741 = smul.u32 2, %s39
      %p742 = scmp.lt.s32.totalorder %s38, 1
      %s743 = scalar_select %p742, %s38, 1
      %s744 = smul.addr %s743, 16
      %s745 = smul.addr %s744, 4
      %s746 = scalar_lea.vmem %s1, %s745
      %s747 = smul.u32 2, %s39
      %p748 = scmp.lt.s32.totalorder %s38, 1
      %s749 = scalar_select %p748, %s38, 1
      %p750 = scmp.lt.s32.totalorder %s747, 1
      %s751 = scalar_select %p750, %s747, 1
      %s752 = smul.addr %s749, 2
      %s753 = sadd.s32 %s751, %s752
      %s754 = smul.addr %s753, 8
      %s755 = scalar_lea.vmem %s21, %s754
      %s756 = smul.u32 2, %s39
      %s757 = smul.u32 2, %s39
      %p758 = scmp.lt.s32.totalorder %s38, 1
      %s759 = scalar_select %p758, %s38, 1
      %p760 = scmp.lt.s32.totalorder %s757, 1
      %s761 = scalar_select %p760, %s757, 1
      %s762 = smul.addr %s759, 2
      %s763 = sadd.s32 %s761, %s762
      %s764 = smul.addr %s763, 8
      %s765 = scalar_lea.vmem %s22, %s764
      %s766 = smul.u32 2, %s39
      %v768 = vld [vmem:[%s740] sm:$0xff]
      %v769 = vld [vmem:[%s740 + $0x8] sm:$0xff]
      %vm770 = vcmask 261120
      %v771 = vsel %vm770, %v768, 0.0
      %772 = vadd.xlane.f32.xlu0 %v771
      %v773 = vpop.xlane.xlu0 %772
      %v774 = vsel %vm770, %v769, 0.0
      %775 = vadd.xlane.f32.xlu0 %v774
      %v776 = vpop.xlane.xlu0 %775
      %v777 = vrcp.pop 32.0
      %v778 = vmul.f32 %v773, %v777
      %v779 = vmul.f32 %v776, %v777
      %v780 = vsub.f32 %v768, %v778
      %v781 = vsub.f32 %v769, %v779
      %v782 = vmul.f32 %v780, %v780
      %v783 = vmul.f32 %v781, %v781
      %v784 = vsel %vm770, %v782, 0.0
      %785 = vadd.xlane.f32.xlu0 %v784
      %v786 = vpop.xlane.xlu0 %785
      %v787 = vsel %vm770, %v783, 0.0
      %788 = vadd.xlane.f32.xlu0 %v787
      %v789 = vpop.xlane.xlu0 %788
      %v790 = vmul.f32 %v786, %v777
      %v791 = vmul.f32 %v789, %v777
      %v792 = vadd.f32 %v790, 1e-05
      %v793 = vadd.f32 %v791, 1e-05
      %v794 = vrsqrt.pop %v792
      %v795 = vrsqrt.pop %v793
      %v796 = vmul.f32 %v780, %v794
      %v797 = vmul.f32 %v781, %v795
      %v798 = vld [vmem:[%s3] sm:$0x1]
      %v800 = vlaneseq
      %v801 = vshrl.u32 %v800, 7
      %v802 = vsub.s32 0, %v801
      %v803 = vrot.slane %v798, %v802
      %v805 = vmul.f32 %v796, %v803
      %v806 = vmul.f32 %v797, %v803
      %v807 = vld [vmem:[%s4] sm:$0x1]
      %v809 = vlaneseq
      %v810 = vshrl.u32 %v809, 7
      %v811 = vsub.s32 0, %v810
      %v812 = vrot.slane %v807, %v811
      %v814 = vadd.f32 %v805, %v812
      %v815 = vadd.f32 %v806, %v812
      %v816 = vpack.c.bf16 %v815, %v814
      %v817 = vld [vmem:[%s5] sm:$0xf]
      %v818 = vld [vmem:[%s5 + $0x4] sm:$0xf]
      %v819 = vld [vmem:[%s5 + $0x8] sm:$0xf]
      %v820 = vld [vmem:[%s5 + $0xc] sm:$0xf]
      %v825 = vunpack.c.l.b16 %v817
      %v826 = vunpack.c.l.b16 %v818
      %v827 = vunpack.c.l.b16 %v819
      %v828 = vunpack.c.l.b16 %v820
      %v829 = vpack.c.b16 %v826, %v825
      %v830 = vpack.c.b16 %v828, %v827
      %v834 = vsel %vm770, %v816, 0
      %836 = vmatprep.subr.bf16.mxu0 0
      %837 = vmatpush1.bf16.msra.mxu0 %v829
      %838 = vmatprep.subr.bf16.mxu0 0
      %839 = vmatpush1.bf16.msra.mxu0 %v830
      %840 = vmatprep.subr.bf16.mxu0 0
      %841 = vmatpush1.bf16.msra.mxu0 0
      %842 = vmatprep.subr.bf16.mxu0 0
      %843 = vmatpush1.bf16.msra.mxu0 0
      %844 = vmatprep.subr.bf16.mxu0 0
      %845 = vmatpush1.bf16.msra.mxu0 0
      %846 = vmatprep.subr.bf16.mxu0 0
      %847 = vmatpush1.bf16.msra.mxu0 0
      %848 = vmatprep.subr.bf16.mxu0 0
      %849 = vmatpush1.bf16.msra.mxu0 0
      %850 = vmatprep.subr.bf16.mxu0 0
      %851 = vmatpush1.bf16.msra.mxu0 0
      %852 = vmatprep.subr.bf16.mxu0 0
      %853 = vmatpush1.bf16.msra.mxu0 0
      %854 = vmatprep.subr.bf16.mxu0 0
      %855 = vmatpush1.bf16.msra.mxu0 0
      %856 = vmatprep.subr.bf16.mxu0 0
      %857 = vmatpush1.bf16.msra.mxu0 0
      %858 = vmatprep.subr.bf16.mxu0 0
      %859 = vmatpush1.bf16.msra.mxu0 0
      %860 = vmatprep.subr.bf16.mxu0 0
      %861 = vmatpush1.bf16.msra.mxu0 0
      %862 = vmatprep.subr.bf16.mxu0 0
      %863 = vmatpush1.bf16.msra.mxu0 0
      %864 = vmatprep.subr.bf16.mxu0 0
      %865 = vmatpush1.bf16.msra.mxu0 0
      %866 = vmatprep.subr.bf16.mxu0 0
      %867 = vmatpush1.bf16.msra.mxu0 0
      %868 = vmatprep.mubr.bf16.mxu0 0
      %869 = vmatmul.mubr.bf16.gmra.mrb[0].mxu0 %v834
      %v870 = vpop.f32.mrb[0].mxu0
      %v871 = vadd.f32 0.0, %v870
      %v872 = vpop.f32.mrb[0].mxu0
      %v873 = vpop.f32.mrb[0].mxu0
      %v874 = vadd.f32 0.0, %v873
      %v875 = vpop.f32.mrb[0].mxu0
      %876 = vdwg.mxu0
      %v879 = vcombine.high %v871, %v871
      %v880 = vcombine.high %v874, %v874
      %v883 = vpack.c.bf16 %v871, %v871
      %v884 = vpack.c.bf16 %v879, %v879
      %v885 = vpack.c.bf16 %v874, %v874
      %v886 = vpack.c.bf16 %v880, %v880
      %888 = vrot.lane.b32.xlu0 %v883, 96
      %v889 = vpop.permute.xlu0 %888
      %v891 = vsel %vm770, %v883, 0
      %v894 = vsel %vm770, %v889, 0
      %896 = vmatprep.subr.bf16.mxu0 0
      %897 = vmatpush1.bf16.xpose.msra.mxu0 %v894
      %898 = vmatprep.subr.bf16.mxu0 0
      %899 = vmatpush1.bf16.xpose.msra.mxu0 0
      %900 = vmatprep.subr.bf16.mxu0 0
      %901 = vmatpush1.bf16.xpose.msra.mxu0 0
      %902 = vmatprep.subr.bf16.mxu0 0
      %903 = vmatpush1.bf16.xpose.msra.mxu0 0
      %904 = vmatprep.subr.bf16.mxu0 0
      %905 = vmatpush1.bf16.xpose.msra.mxu0 0
      %906 = vmatprep.subr.bf16.mxu0 0
      %907 = vmatpush1.bf16.xpose.msra.mxu0 0
      %908 = vmatprep.subr.bf16.mxu0 0
      %909 = vmatpush1.bf16.xpose.msra.mxu0 0
      %910 = vmatprep.subr.bf16.mxu0 0
      %911 = vmatpush1.bf16.xpose.msra.mxu0 0
      %912 = vmatprep.subr.bf16.mxu0 0
      %913 = vmatpush1.bf16.xpose.msra.mxu0 0
      %914 = vmatprep.subr.bf16.mxu0 0
      %915 = vmatpush1.bf16.xpose.msra.mxu0 0
      %916 = vmatprep.subr.bf16.mxu0 0
      %917 = vmatpush1.bf16.xpose.msra.mxu0 0
      %918 = vmatprep.subr.bf16.mxu0 0
      %919 = vmatpush1.bf16.xpose.msra.mxu0 0
      %920 = vmatprep.subr.bf16.mxu0 0
      %921 = vmatpush1.bf16.xpose.msra.mxu0 0
      %922 = vmatprep.subr.bf16.mxu0 0
      %923 = vmatpush1.bf16.xpose.msra.mxu0 0
      %924 = vmatprep.subr.bf16.mxu0 0
      %925 = vmatpush1.bf16.xpose.msra.mxu0 0
      %926 = vmatprep.subr.bf16.mxu0 0
      %927 = vmatpush1.bf16.xpose.msra.mxu0 0
      %928 = vmatprep.mubr.bf16.mxu0 0
      %929 = vmatmul.mubr.bf16.gmra.mrb[0].mxu0 %v891
      %v930 = vpop.f32.mrb[0].mxu0
      %v931 = vadd.f32 0.0, %v930
      %v932 = vpop.f32.mrb[0].mxu0
      %v933 = vpop.f32.mrb[0].mxu0
      %v934 = vpop.f32.mrb[0].mxu0
      %935 = vdwg.mxu0
      %937 = vrot.lane.b32.xlu0 %v884, 96
      %v938 = vpop.permute.xlu0 %937
      %v940 = vsel %vm770, %v884, 0
      %v943 = vsel %vm770, %v938, 0
      %945 = vmatprep.subr.bf16.mxu0 0
      %946 = vmatpush1.bf16.xpose.msra.mxu0 %v943
      %947 = vmatprep.subr.bf16.mxu0 0
      %948 = vmatpush1.bf16.xpose.msra.mxu0 0
      %949 = vmatprep.subr.bf16.mxu0 0
      %950 = vmatpush1.bf16.xpose.msra.mxu0 0
      %951 = vmatprep.subr.bf16.mxu0 0
      %952 = vmatpush1.bf16.xpose.msra.mxu0 0
      %953 = vmatprep.subr.bf16.mxu0 0
      %954 = vmatpush1.bf16.xpose.msra.mxu0 0
      %955 = vmatprep.subr.bf16.mxu0 0
      %956 = vmatpush1.bf16.xpose.msra.mxu0 0
      %957 = vmatprep.subr.bf16.mxu0 0
      %958 = vmatpush1.bf16.xpose.msra.mxu0 0
      %959 = vmatprep.subr.bf16.mxu0 0
      %960 = vmatpush1.bf16.xpose.msra.mxu0 0
      %961 = vmatprep.subr.bf16.mxu0 0
      %962 = vmatpush1.bf16.xpose.msra.mxu0 0
      %963 = vmatprep.subr.bf16.mxu0 0
      %964 = vmatpush1.bf16.xpose.msra.mxu0 0
      %965 = vmatprep.subr.bf16.mxu0 0
      %966 = vmatpush1.bf16.xpose.msra.mxu0 0
      %967 = vmatprep.subr.bf16.mxu0 0
      %968 = vmatpush1.bf16.xpose.msra.mxu0 0
      %969 = vmatprep.subr.bf16.mxu0 0
      %970 = vmatpush1.bf16.xpose.msra.mxu0 0
      %971 = vmatprep.subr.bf16.mxu0 0
      %972 = vmatpush1.bf16.xpose.msra.mxu0 0
      %973 = vmatprep.subr.bf16.mxu0 0
      %974 = vmatpush1.bf16.xpose.msra.mxu0 0
      %975 = vmatprep.subr.bf16.mxu0 0
      %976 = vmatpush1.bf16.xpose.msra.mxu0 0
      %977 = vmatprep.mubr.bf16.mxu0 0
      %978 = vmatmul.mubr.bf16.gmra.mrb[0].mxu0 %v940
      %v979 = vpop.f32.mrb[0].mxu0
      %v980 = vadd.f32 0.0, %v979
      %v981 = vpop.f32.mrb[0].mxu0
      %v982 = vpop.f32.mrb[0].mxu0
      %v983 = vpop.f32.mrb[0].mxu0
      %984 = vdwg.mxu0
      %986 = vrot.lane.b32.xlu0 %v885, 96
      %v987 = vpop.permute.xlu0 %986
      %v989 = vsel %vm770, %v885, 0
      %v992 = vsel %vm770, %v987, 0
      %994 = vmatprep.subr.bf16.mxu0 0
      %995 = vmatpush1.bf16.xpose.msra.mxu0 %v992
      %996 = vmatprep.subr.bf16.mxu0 0
      %997 = vmatpush1.bf16.xpose.msra.mxu0 0
      %998 = vmatprep.subr.bf16.mxu0 0
      %999 = vmatpush1.bf16.xpose.msra.mxu0 0
      %1000 = vmatprep.subr.bf16.mxu0 0
      %1001 = vmatpush1.bf16.xpose.msra.mxu0 0
      %1002 = vmatprep.subr.bf16.mxu0 0
      %1003 = vmatpush1.bf16.xpose.msra.mxu0 0
      %1004 = vmatprep.subr.bf16.mxu0 0
      %1005 = vmatpush1.bf16.xpose.msra.mxu0 0
      %1006 = vmatprep.subr.bf16.mxu0 0
      %1007 = vmatpush1.bf16.xpose.msra.mxu0 0
      %1008 = vmatprep.subr.bf16.mxu0 0
      %1009 = vmatpush1.bf16.xpose.msra.mxu0 0
      %1010 = vmatprep.subr.bf16.mxu0 0
      %1011 = vmatpush1.bf16.xpose.msra.mxu0 0
      %1012 = vmatprep.subr.bf16.mxu0 0
      %1013 = vmatpush1.bf16.xpose.msra.mxu0 0
      %1014 = vmatprep.subr.bf16.mxu0 0
      %1015 = vmatpush1.bf16.xpose.msra.mxu0 0
      %1016 = vmatprep.subr.bf16.mxu0 0
      %1017 = vmatpush1.bf16.xpose.msra.mxu0 0
      %1018 = vmatprep.subr.bf16.mxu0 0
      %1019 = vmatpush1.bf16.xpose.msra.mxu0 0
      %1020 = vmatprep.subr.bf16.mxu0 0
      %1021 = vmatpush1.bf16.xpose.msra.mxu0 0
      %1022 = vmatprep.subr.bf16.mxu0 0
      %1023 = vmatpush1.bf16.xpose.msra.mxu0 0
      %1024 = vmatprep.subr.bf16.mxu0 0
      %1025 = vmatpush1.bf16.xpose.msra.mxu0 0
      %1026 = vmatprep.mubr.bf16.mxu0 0
      %1027 = vmatmul.mubr.bf16.gmra.mrb[0].mxu0 %v989
      %v1028 = vpop.f32.mrb[0].mxu0
      %v1029 = vadd.f32 0.0, %v1028
      %v1030 = vpop.f32.mrb[0].mxu0
      %v1031 = vpop.f32.mrb[0].mxu0
      %v1032 = vpop.f32.mrb[0].mxu0
      %1033 = vdwg.mxu0
      %1035 = vrot.lane.b32.xlu0 %v886, 96
      %v1036 = vpop.permute.xlu0 %1035
      %v1038 = vsel %vm770, %v886, 0
      %v1041 = vsel %vm770, %v1036, 0
      %1043 = vmatprep.subr.bf16.mxu0 0
      %1044 = vmatpush1.bf16.xpose.msra.mxu0 %v1041
      %1045 = vmatprep.subr.bf16.mxu0 0
      %1046 = vmatpush1.bf16.xpose.msra.mxu0 0
      %1047 = vmatprep.subr.bf16.mxu0 0
      %1048 = vmatpush1.bf16.xpose.msra.mxu0 0
      %1049 = vmatprep.subr.bf16.mxu0 0
      %1050 = vmatpush1.bf16.xpose.msra.mxu0 0
      %1051 = vmatprep.subr.bf16.mxu0 0
      %1052 = vmatpush1.bf16.xpose.msra.mxu0 0
      %1053 = vmatprep.subr.bf16.mxu0 0
      %1054 = vmatpush1.bf16.xpose.msra.mxu0 0
      %1055 = vmatprep.subr.bf16.mxu0 0
      %1056 = vmatpush1.bf16.xpose.msra.mxu0 0
      %1057 = vmatprep.subr.bf16.mxu0 0
      %1058 = vmatpush1.bf16.xpose.msra.mxu0 0
      %1059 = vmatprep.subr.bf16.mxu0 0
      %1060 = vmatpush1.bf16.xpose.msra.mxu0 0
      %1061 = vmatprep.subr.bf16.mxu0 0
      %1062 = vmatpush1.bf16.xpose.msra.mxu0 0
      %1063 = vmatprep.subr.bf16.mxu0 0
      %1064 = vmatpush1.bf16.xpose.msra.mxu0 0
      %1065 = vmatprep.subr.bf16.mxu0 0
      %1066 = vmatpush1.bf16.xpose.msra.mxu0 0
      %1067 = vmatprep.subr.bf16.mxu0 0
      %1068 = vmatpush1.bf16.xpose.msra.mxu0 0
      %1069 = vmatprep.subr.bf16.mxu0 0
      %1070 = vmatpush1.bf16.xpose.msra.mxu0 0
      %1071 = vmatprep.subr.bf16.mxu0 0
      %1072 = vmatpush1.bf16.xpose.msra.mxu0 0
      %1073 = vmatprep.subr.bf16.mxu0 0
      %1074 = vmatpush1.bf16.xpose.msra.mxu0 0
      %1075 = vmatprep.mubr.bf16.mxu0 0
      %1076 = vmatmul.mubr.bf16.gmra.mrb[0].mxu0 %v1038
      %v1077 = vpop.f32.mrb[0].mxu0
      %v1078 = vadd.f32 0.0, %v1077
      %v1079 = vpop.f32.mrb[0].mxu0
      %v1080 = vpop.f32.mrb[0].mxu0
      %v1081 = vpop.f32.mrb[0].mxu0
      %1082 = vdwg.mxu0
      %vm1083 = vcmask 27648
      %v1084 = vsel %vm1083, %v931, -inf
      %1085 = vmax.xlane.f32.xlu0 %v1084
      %v1086 = vpop.xlane.xlu0 %1085
      %v1087 = vsel %vm1083, %v980, -inf
      %1088 = vmax.xlane.f32.xlu0 %v1087
      %v1089 = vpop.xlane.xlu0 %1088
      %v1090 = vsel %vm1083, %v1029, -inf
      %1091 = vmax.xlane.f32.xlu0 %v1090
      %v1092 = vpop.xlane.xlu0 %1091
      %v1093 = vsel %vm1083, %v1078, -inf
      %1094 = vmax.xlane.f32.xlu0 %v1093
      %v1095 = vpop.xlane.xlu0 %1094
      %v1096 = vsub.f32 %v931, %v1086
      %v1097 = vsub.f32 %v980, %v1089
      %v1098 = vsub.f32 %v1029, %v1092
      %v1099 = vsub.f32 %v1078, %v1095
      %v1100 = vmul.f32 %v1096, 1.442695
      %v1101 = vpow.pop %v1100
      %v1102 = vmul.f32 %v1097, 1.442695
      %v1103 = vpow.pop %v1102
      %v1104 = vmul.f32 %v1098, 1.442695
      %v1105 = vpow.pop %v1104
      %v1106 = vmul.f32 %v1099, 1.442695
      %v1107 = vpow.pop %v1106
      %v1108 = vsel %vm1083, %v1101, 0.0
      %1109 = vadd.xlane.f32.xlu0 %v1108
      %v1110 = vpop.xlane.xlu0 %1109
      %v1111 = vsel %vm1083, %v1103, 0.0
      %1112 = vadd.xlane.f32.xlu0 %v1111
      %v1113 = vpop.xlane.xlu0 %1112
      %v1114 = vsel %vm1083, %v1105, 0.0
      %1115 = vadd.xlane.f32.xlu0 %v1114
      %v1116 = vpop.xlane.xlu0 %1115
      %v1117 = vsel %vm1083, %v1107, 0.0
      %1118 = vadd.xlane.f32.xlu0 %v1117
      %v1119 = vpop.xlane.xlu0 %1118
      %v1120 = vrcp.pop %v1110
      %v1121 = vrcp.pop %v1113
      %v1122 = vrcp.pop %v1116
      %v1123 = vrcp.pop %v1119
      %v1124 = vmul.f32 %v1101, %v1120
      %v1125 = vmul.f32 %v1103, %v1121
      %v1126 = vmul.f32 %v1105, %v1122
      %v1127 = vmul.f32 %v1107, %v1123
      %v1128 = vpack.c.bf16 %v1124, %v1124
      %v1129 = vpack.c.bf16 %v1125, %v1125
      %v1130 = vpack.c.bf16 %v1126, %v1126
      %v1131 = vpack.c.bf16 %v1127, %v1127
      %1132 = vrot.lane.b32.xlu0 %v883, 64
      %v1133 = vpop.permute.xlu0 %1132
      %vm1134 = vcmask 31744
      %v1136 = vsel %vm1134, %v1128, 0
      %vm1138 = vcmask 1041408
      %v1140 = vsel %vm1138, %v1133, 0
      %1142 = vmatprep.subr.bf16.mxu0 0
      %1143 = vmatpush1.bf16.msra.mxu0 %v1140
      %1144 = vmatprep.subr.bf16.mxu0 0
      %1145 = vmatpush1.bf16.msra.mxu0 0
      %1146 = vmatprep.subr.bf16.mxu0 0
      %1147 = vmatpush1.bf16.msra.mxu0 0
      %1148 = vmatprep.subr.bf16.mxu0 0
      %1149 = vmatpush1.bf16.msra.mxu0 0
      %1150 = vmatprep.subr.bf16.mxu0 0
      %1151 = vmatpush1.bf16.msra.mxu0 0
      %1152 = vmatprep.subr.bf16.mxu0 0
      %1153 = vmatpush1.bf16.msra.mxu0 0
      %1154 = vmatprep.subr.bf16.mxu0 0
      %1155 = vmatpush1.bf16.msra.mxu0 0
      %1156 = vmatprep.subr.bf16.mxu0 0
      %1157 = vmatpush1.bf16.msra.mxu0 0
      %1158 = vmatprep.subr.bf16.mxu0 0
      %1159 = vmatpush1.bf16.msra.mxu0 0
      %1160 = vmatprep.subr.bf16.mxu0 0
      %1161 = vmatpush1.bf16.msra.mxu0 0
      %1162 = vmatprep.subr.bf16.mxu0 0
      %1163 = vmatpush1.bf16.msra.mxu0 0
      %1164 = vmatprep.subr.bf16.mxu0 0
      %1165 = vmatpush1.bf16.msra.mxu0 0
      %1166 = vmatprep.subr.bf16.mxu0 0
      %1167 = vmatpush1.bf16.msra.mxu0 0
      %1168 = vmatprep.subr.bf16.mxu0 0
      %1169 = vmatpush1.bf16.msra.mxu0 0
      %1170 = vmatprep.subr.bf16.mxu0 0
      %1171 = vmatpush1.bf16.msra.mxu0 0
      %1172 = vmatprep.subr.bf16.mxu0 0
      %1173 = vmatpush1.bf16.msra.mxu0 0
      %1174 = vmatprep.mubr.bf16.mxu0 0
      %1175 = vmatmul.mubr.bf16.gmra.mrb[0].mxu0 %v1136
      %v1176 = vpop.f32.mrb[0].mxu0
      %v1177 = vadd.f32 0.0, %v1176
      %v1178 = vpop.f32.mrb[0].mxu0
      %v1179 = vpop.f32.mrb[0].mxu0
      %v1180 = vpop.f32.mrb[0].mxu0
      %1181 = vdwg.mxu0
      %1182 = vrot.lane.b32.xlu0 %v884, 64
      %v1183 = vpop.permute.xlu0 %1182
      %v1185 = vsel %vm1134, %v1129, 0
      %v1188 = vsel %vm1138, %v1183, 0
      %1190 = vmatprep.subr.bf16.mxu0 0
      %1191 = vmatpush1.bf16.msra.mxu0 %v1188
      %1192 = vmatprep.subr.bf16.mxu0 0
      %1193 = vmatpush1.bf16.msra.mxu0 0
      %1194 = vmatprep.subr.bf16.mxu0 0
      %1195 = vmatpush1.bf16.msra.mxu0 0
      %1196 = vmatprep.subr.bf16.mxu0 0
      %1197 = vmatpush1.bf16.msra.mxu0 0
      %1198 = vmatprep.subr.bf16.mxu0 0
      %1199 = vmatpush1.bf16.msra.mxu0 0
      %1200 = vmatprep.subr.bf16.mxu0 0
      %1201 = vmatpush1.bf16.msra.mxu0 0
      %1202 = vmatprep.subr.bf16.mxu0 0
      %1203 = vmatpush1.bf16.msra.mxu0 0
      %1204 = vmatprep.subr.bf16.mxu0 0
      %1205 = vmatpush1.bf16.msra.mxu0 0
      %1206 = vmatprep.subr.bf16.mxu0 0
      %1207 = vmatpush1.bf16.msra.mxu0 0
      %1208 = vmatprep.subr.bf16.mxu0 0
      %1209 = vmatpush1.bf16.msra.mxu0 0
      %1210 = vmatprep.subr.bf16.mxu0 0
      %1211 = vmatpush1.bf16.msra.mxu0 0
      %1212 = vmatprep.subr.bf16.mxu0 0
      %1213 = vmatpush1.bf16.msra.mxu0 0
      %1214 = vmatprep.subr.bf16.mxu0 0
      %1215 = vmatpush1.bf16.msra.mxu0 0
      %1216 = vmatprep.subr.bf16.mxu0 0
      %1217 = vmatpush1.bf16.msra.mxu0 0
      %1218 = vmatprep.subr.bf16.mxu0 0
      %1219 = vmatpush1.bf16.msra.mxu0 0
      %1220 = vmatprep.subr.bf16.mxu0 0
      %1221 = vmatpush1.bf16.msra.mxu0 0
      %1222 = vmatprep.mubr.bf16.mxu0 0
      %1223 = vmatmul.mubr.bf16.gmra.mrb[0].mxu0 %v1185
      %v1224 = vpop.f32.mrb[0].mxu0
      %v1225 = vadd.f32 0.0, %v1224
      %v1226 = vpop.f32.mrb[0].mxu0
      %v1227 = vpop.f32.mrb[0].mxu0
      %v1228 = vpop.f32.mrb[0].mxu0
      %1229 = vdwg.mxu0
      %1230 = vrot.lane.b32.xlu0 %v885, 64
      %v1231 = vpop.permute.xlu0 %1230
      %v1233 = vsel %vm1134, %v1130, 0
      %v1236 = vsel %vm1138, %v1231, 0
      %1238 = vmatprep.subr.bf16.mxu0 0
      %1239 = vmatpush1.bf16.msra.mxu0 %v1236
      %1240 = vmatprep.subr.bf16.mxu0 0
      %1241 = vmatpush1.bf16.msra.mxu0 0
      %1242 = vmatprep.subr.bf16.mxu0 0
      %1243 = vmatpush1.bf16.msra.mxu0 0
      %1244 = vmatprep.subr.bf16.mxu0 0
      %1245 = vmatpush1.bf16.msra.mxu0 0
      %1246 = vmatprep.subr.bf16.mxu0 0
      %1247 = vmatpush1.bf16.msra.mxu0 0
      %1248 = vmatprep.subr.bf16.mxu0 0
      %1249 = vmatpush1.bf16.msra.mxu0 0
      %1250 = vmatprep.subr.bf16.mxu0 0
      %1251 = vmatpush1.bf16.msra.mxu0 0
      %1252 = vmatprep.subr.bf16.mxu0 0
      %1253 = vmatpush1.bf16.msra.mxu0 0
      %1254 = vmatprep.subr.bf16.mxu0 0
      %1255 = vmatpush1.bf16.msra.mxu0 0
      %1256 = vmatprep.subr.bf16.mxu0 0
      %1257 = vmatpush1.bf16.msra.mxu0 0
      %1258 = vmatprep.subr.bf16.mxu0 0
      %1259 = vmatpush1.bf16.msra.mxu0 0
      %1260 = vmatprep.subr.bf16.mxu0 0
      %1261 = vmatpush1.bf16.msra.mxu0 0
      %1262 = vmatprep.subr.bf16.mxu0 0
      %1263 = vmatpush1.bf16.msra.mxu0 0
      %1264 = vmatprep.subr.bf16.mxu0 0
      %1265 = vmatpush1.bf16.msra.mxu0 0
      %1266 = vmatprep.subr.bf16.mxu0 0
      %1267 = vmatpush1.bf16.msra.mxu0 0
      %1268 = vmatprep.subr.bf16.mxu0 0
      %1269 = vmatpush1.bf16.msra.mxu0 0
      %1270 = vmatprep.mubr.bf16.mxu0 0
      %1271 = vmatmul.mubr.bf16.gmra.mrb[0].mxu0 %v1233
      %v1272 = vpop.f32.mrb[0].mxu0
      %v1273 = vadd.f32 0.0, %v1272
      %v1274 = vpop.f32.mrb[0].mxu0
      %v1275 = vpop.f32.mrb[0].mxu0
      %v1276 = vpop.f32.mrb[0].mxu0
      %1277 = vdwg.mxu0
      %1278 = vrot.lane.b32.xlu0 %v886, 64
      %v1279 = vpop.permute.xlu0 %1278
      %v1281 = vsel %vm1134, %v1131, 0
      %v1284 = vsel %vm1138, %v1279, 0
      %1286 = vmatprep.subr.bf16.mxu0 0
      %1287 = vmatpush1.bf16.msra.mxu0 %v1284
      %1288 = vmatprep.subr.bf16.mxu0 0
      %1289 = vmatpush1.bf16.msra.mxu0 0
      %1290 = vmatprep.subr.bf16.mxu0 0
      %1291 = vmatpush1.bf16.msra.mxu0 0
      %1292 = vmatprep.subr.bf16.mxu0 0
      %1293 = vmatpush1.bf16.msra.mxu0 0
      %1294 = vmatprep.subr.bf16.mxu0 0
      %1295 = vmatpush1.bf16.msra.mxu0 0
      %1296 = vmatprep.subr.bf16.mxu0 0
      %1297 = vmatpush1.bf16.msra.mxu0 0
      %1298 = vmatprep.subr.bf16.mxu0 0
      %1299 = vmatpush1.bf16.msra.mxu0 0
      %1300 = vmatprep.subr.bf16.mxu0 0
      %1301 = vmatpush1.bf16.msra.mxu0 0
      %1302 = vmatprep.subr.bf16.mxu0 0
      %1303 = vmatpush1.bf16.msra.mxu0 0
      %1304 = vmatprep.subr.bf16.mxu0 0
      %1305 = vmatpush1.bf16.msra.mxu0 0
      %1306 = vmatprep.subr.bf16.mxu0 0
      %1307 = vmatpush1.bf16.msra.mxu0 0
      %1308 = vmatprep.subr.bf16.mxu0 0
      %1309 = vmatpush1.bf16.msra.mxu0 0
      %1310 = vmatprep.subr.bf16.mxu0 0
      %1311 = vmatpush1.bf16.msra.mxu0 0
      %1312 = vmatprep.subr.bf16.mxu0 0
      %1313 = vmatpush1.bf16.msra.mxu0 0
      %1314 = vmatprep.subr.bf16.mxu0 0
      %1315 = vmatpush1.bf16.msra.mxu0 0
      %1316 = vmatprep.subr.bf16.mxu0 0
      %1317 = vmatpush1.bf16.msra.mxu0 0
      %1318 = vmatprep.mubr.bf16.mxu0 0
      %1319 = vmatmul.mubr.bf16.gmra.mrb[0].mxu0 %v1281
      %v1320 = vpop.f32.mrb[0].mxu0
      %v1321 = vadd.f32 0.0, %v1320
      %v1322 = vpop.f32.mrb[0].mxu0
      %v1323 = vpop.f32.mrb[0].mxu0
      %v1324 = vpop.f32.mrb[0].mxu0
      %1325 = vdwg.mxu0
      %v1330 = vcombine.low %v1177, %v1225
      %v1331 = vcombine.low %v1273, %v1321
      %v1334 = vpack.c.bf16 %v1331, %v1330
      %v1335 = vld [vmem:[%s6] sm:$0xf]
      %v1336 = vld [vmem:[%s6 + $0x4] sm:$0xf]
      %v1337 = vld [vmem:[%s6 + $0x8] sm:$0xf]
      %v1338 = vld [vmem:[%s6 + $0xc] sm:$0xf]
      %v1343 = vunpack.c.l.b16 %v1335
      %v1344 = vunpack.c.l.b16 %v1336
      %v1345 = vunpack.c.l.b16 %v1337
      %v1346 = vunpack.c.l.b16 %v1338
      %v1347 = vpack.c.b16 %v1344, %v1343
      %v1348 = vpack.c.b16 %v1346, %v1345
      %v1352 = vsel %vm770, %v1334, 0
      %1354 = vmatprep.subr.bf16.mxu0 0
      %1355 = vmatpush1.bf16.msra.mxu0 %v1347
      %1356 = vmatprep.subr.bf16.mxu0 0
      %1357 = vmatpush1.bf16.msra.mxu0 %v1348
      %1358 = vmatprep.subr.bf16.mxu0 0
      %1359 = vmatpush1.bf16.msra.mxu0 0
      %1360 = vmatprep.subr.bf16.mxu0 0
      %1361 = vmatpush1.bf16.msra.mxu0 0
      %1362 = vmatprep.subr.bf16.mxu0 0
      %1363 = vmatpush1.bf16.msra.mxu0 0
      %1364 = vmatprep.subr.bf16.mxu0 0
      %1365 = vmatpush1.bf16.msra.mxu0 0
      %1366 = vmatprep.subr.bf16.mxu0 0
      %1367 = vmatpush1.bf16.msra.mxu0 0
      %1368 = vmatprep.subr.bf16.mxu0 0
      %1369 = vmatpush1.bf16.msra.mxu0 0
      %1370 = vmatprep.subr.bf16.mxu0 0
      %1371 = vmatpush1.bf16.msra.mxu0 0
      %1372 = vmatprep.subr.bf16.mxu0 0
      %1373 = vmatpush1.bf16.msra.mxu0 0
      %1374 = vmatprep.subr.bf16.mxu0 0
      %1375 = vmatpush1.bf16.msra.mxu0 0
      %1376 = vmatprep.subr.bf16.mxu0 0
      %1377 = vmatpush1.bf16.msra.mxu0 0
      %1378 = vmatprep.subr.bf16.mxu0 0
      %1379 = vmatpush1.bf16.msra.mxu0 0
      %1380 = vmatprep.subr.bf16.mxu0 0
      %1381 = vmatpush1.bf16.msra.mxu0 0
      %1382 = vmatprep.subr.bf16.mxu0 0
      %1383 = vmatpush1.bf16.msra.mxu0 0
      %1384 = vmatprep.subr.bf16.mxu0 0
      %1385 = vmatpush1.bf16.msra.mxu0 0
      %1386 = vmatprep.mubr.bf16.mxu0 0
      %1387 = vmatmul.mubr.bf16.gmra.mrb[0].mxu0 %v1352
      %v1388 = vpop.f32.mrb[0].mxu0
      %v1389 = vadd.f32 0.0, %v1388
      %v1390 = vpop.f32.mrb[0].mxu0
      %v1391 = vpop.f32.mrb[0].mxu0
      %v1392 = vadd.f32 0.0, %v1391
      %v1393 = vpop.f32.mrb[0].mxu0
      %1394 = vdwg.mxu0
      %v1395 = vadd.f32 %v768, %v1389
      %v1396 = vadd.f32 %v769, %v1392
      %v1397 = vld [vmem:[%s7] sm:$0x1]
      %v1399 = vlaneseq
      %v1400 = vshrl.u32 %v1399, 7
      %v1401 = vsub.s32 0, %v1400
      %v1402 = vrot.slane %v1397, %v1401
      %v1404 = vadd.f32 %v1395, %v1402
      %v1405 = vadd.f32 %v1396, %v1402
      %v1406 = vsel %vm770, %v1404, 0.0
      %1407 = vadd.xlane.f32.xlu0 %v1406
      %v1408 = vpop.xlane.xlu0 %1407
      %v1409 = vsel %vm770, %v1405, 0.0
      %1410 = vadd.xlane.f32.xlu0 %v1409
      %v1411 = vpop.xlane.xlu0 %1410
      %v1412 = vmul.f32 %v1408, %v777
      %v1413 = vmul.f32 %v1411, %v777
      %v1414 = vsub.f32 %v1404, %v1412
      %v1415 = vsub.f32 %v1405, %v1413
      %v1416 = vmul.f32 %v1414, %v1414
      %v1417 = vmul.f32 %v1415, %v1415
      %v1418 = vsel %vm770, %v1416, 0.0
      %1419 = vadd.xlane.f32.xlu0 %v1418
      %v1420 = vpop.xlane.xlu0 %1419
      %v1421 = vsel %vm770, %v1417, 0.0
      %1422 = vadd.xlane.f32.xlu0 %v1421
      %v1423 = vpop.xlane.xlu0 %1422
      %v1424 = vmul.f32 %v1420, %v777
      %v1425 = vmul.f32 %v1423, %v777
      %v1426 = vadd.f32 %v1424, 1e-05
      %v1427 = vadd.f32 %v1425, 1e-05
      %v1428 = vrsqrt.pop %v1426
      %v1429 = vrsqrt.pop %v1427
      %v1430 = vmul.f32 %v1414, %v1428
      %v1431 = vmul.f32 %v1415, %v1429
      %v1432 = vld [vmem:[%s8] sm:$0x1]
      %v1434 = vlaneseq
      %v1435 = vshrl.u32 %v1434, 7
      %v1436 = vsub.s32 0, %v1435
      %v1437 = vrot.slane %v1432, %v1436
      %v1439 = vmul.f32 %v1430, %v1437
      %v1440 = vmul.f32 %v1431, %v1437
      %v1441 = vld [vmem:[%s9] sm:$0x1]
      %v1443 = vlaneseq
      %v1444 = vshrl.u32 %v1443, 7
      %v1445 = vsub.s32 0, %v1444
      %v1446 = vrot.slane %v1441, %v1445
      %v1448 = vadd.f32 %v1439, %v1446
      %v1449 = vadd.f32 %v1440, %v1446
      %v1450 = vpack.c.bf16 %v1449, %v1448
      %v1451 = vld [vmem:[%s10] sm:$0xf]
      %v1452 = vld [vmem:[%s10 + $0x4] sm:$0xf]
      %v1453 = vld [vmem:[%s10 + $0x8] sm:$0xf]
      %v1454 = vld [vmem:[%s10 + $0xc] sm:$0xf]
      %v1459 = vunpack.c.l.b16 %v1451
      %v1460 = vunpack.c.l.b16 %v1452
      %v1461 = vunpack.c.l.b16 %v1453
      %v1462 = vunpack.c.l.b16 %v1454
      %v1463 = vpack.c.b16 %v1460, %v1459
      %v1464 = vpack.c.b16 %v1462, %v1461
      %v1468 = vsel %vm770, %v1450, 0
      %1470 = vmatprep.subr.bf16.mxu0 0
      %1471 = vmatpush1.bf16.msra.mxu0 %v1463
      %1472 = vmatprep.subr.bf16.mxu0 0
      %1473 = vmatpush1.bf16.msra.mxu0 %v1464
      %1474 = vmatprep.subr.bf16.mxu0 0
      %1475 = vmatpush1.bf16.msra.mxu0 0
      %1476 = vmatprep.subr.bf16.mxu0 0
      %1477 = vmatpush1.bf16.msra.mxu0 0
      %1478 = vmatprep.subr.bf16.mxu0 0
      %1479 = vmatpush1.bf16.msra.mxu0 0
      %1480 = vmatprep.subr.bf16.mxu0 0
      %1481 = vmatpush1.bf16.msra.mxu0 0
      %1482 = vmatprep.subr.bf16.mxu0 0
      %1483 = vmatpush1.bf16.msra.mxu0 0
      %1484 = vmatprep.subr.bf16.mxu0 0
      %1485 = vmatpush1.bf16.msra.mxu0 0
      %1486 = vmatprep.subr.bf16.mxu0 0
      %1487 = vmatpush1.bf16.msra.mxu0 0
      %1488 = vmatprep.subr.bf16.mxu0 0
      %1489 = vmatpush1.bf16.msra.mxu0 0
      %1490 = vmatprep.subr.bf16.mxu0 0
      %1491 = vmatpush1.bf16.msra.mxu0 0
      %1492 = vmatprep.subr.bf16.mxu0 0
      %1493 = vmatpush1.bf16.msra.mxu0 0
      %1494 = vmatprep.subr.bf16.mxu0 0
      %1495 = vmatpush1.bf16.msra.mxu0 0
      %1496 = vmatprep.subr.bf16.mxu0 0
      %1497 = vmatpush1.bf16.msra.mxu0 0
      %1498 = vmatprep.subr.bf16.mxu0 0
      %1499 = vmatpush1.bf16.msra.mxu0 0
      %1500 = vmatprep.subr.bf16.mxu0 0
      %1501 = vmatpush1.bf16.msra.mxu0 0
      %1502 = vmatprep.mubr.bf16.mxu0 0
      %1503 = vmatmul.mubr.bf16.gmra.mrb[0].mxu0 %v1468
      %v1504 = vpop.f32.mrb[0].mxu0
      %v1505 = vadd.f32 0.0, %v1504
      %v1506 = vpop.f32.mrb[0].mxu0
      %v1507 = vpop.f32.mrb[0].mxu0
      %v1508 = vadd.f32 0.0, %v1507
      %v1509 = vpop.f32.mrb[0].mxu0
      %1510 = vdwg.mxu0
      %v1511 = vld [vmem:[%s746] sm:$0xf]
      %v1512 = vld [vmem:[%s746 + $0x4] sm:$0xf]
      %v1513 = vld [vmem:[%s746 + $0x8] sm:$0xf]
      %v1514 = vld [vmem:[%s746 + $0xc] sm:$0xf]
      %v1515 = vld [vmem:[%s746 + $0x10] sm:$0xf]
      %v1516 = vld [vmem:[%s746 + $0x14] sm:$0xf]
      %v1517 = vld [vmem:[%s746 + $0x18] sm:$0xf]
      %v1518 = vld [vmem:[%s746 + $0x1c] sm:$0xf]
      %v1519 = vld [vmem:[%s746 + $0x20] sm:$0xf]
      %v1520 = vld [vmem:[%s746 + $0x24] sm:$0xf]
      %v1521 = vld [vmem:[%s746 + $0x28] sm:$0xf]
      %v1522 = vld [vmem:[%s746 + $0x2c] sm:$0xf]
      %v1523 = vld [vmem:[%s746 + $0x30] sm:$0xf]
      %v1524 = vld [vmem:[%s746 + $0x34] sm:$0xf]
      %v1525 = vld [vmem:[%s746 + $0x38] sm:$0xf]
      %v1526 = vld [vmem:[%s746 + $0x3c] sm:$0xf]
      %v1527 = vpack.c.bf16 %v1508, %v1505
      %v1528 = vld [vmem:[%s2] sm:$0x1]
      %v1530 = vlaneseq
      %v1531 = vshrl.u32 %v1530, 7
      %v1532 = vsub.s32 0, %v1531
      %v1533 = vrot.slane %v1528, %v1532
      %v1551 = vunpack.c.l.b16 %v1511
      %v1552 = vunpack.c.l.b16 %v1512
      %v1553 = vunpack.c.l.b16 %v1513
      %v1554 = vunpack.c.l.b16 %v1514
      %v1555 = vunpack.c.l.b16 %v1515
      %v1556 = vunpack.c.l.b16 %v1516
      %v1557 = vunpack.c.l.b16 %v1517
      %v1558 = vunpack.c.l.b16 %v1518
      %v1559 = vunpack.c.l.b16 %v1519
      %v1560 = vunpack.c.l.b16 %v1520
      %v1561 = vunpack.c.l.b16 %v1521
      %v1562 = vunpack.c.l.b16 %v1522
      %v1563 = vunpack.c.l.b16 %v1523
      %v1564 = vunpack.c.l.b16 %v1524
      %v1565 = vunpack.c.l.b16 %v1525
      %v1566 = vunpack.c.l.b16 %v1526
      %v1567 = vpack.c.b16 %v1552, %v1551
      %v1568 = vpack.c.b16 %v1554, %v1553
      %v1569 = vpack.c.b16 %v1556, %v1555
      %v1570 = vpack.c.b16 %v1558, %v1557
      %v1571 = vpack.c.b16 %v1560, %v1559
      %v1572 = vpack.c.b16 %v1562, %v1561
      %v1573 = vpack.c.b16 %v1564, %v1563
      %v1574 = vpack.c.b16 %v1566, %v1565
      %v1576 = vsel %vm770, %v1527, 0
      %v1579 = vsel %vm770, %v1567, 0
      %v1582 = vsel %vm770, %v1568, 0
      %v1585 = vsel %vm770, %v1569, 0
      %v1588 = vsel %vm770, %v1570, 0
      %v1591 = vsel %vm770, %v1571, 0
      %v1594 = vsel %vm770, %v1572, 0
      %v1597 = vsel %vm770, %v1573, 0
      %v1600 = vsel %vm770, %v1574, 0
      %1602 = vmatprep.subr.bf16.mxu0 0
      %1603 = vmatpush1.bf16.xpose.msra.mxu0 %v1579
      %1604 = vmatprep.subr.bf16.mxu0 0
      %1605 = vmatpush1.bf16.xpose.msra.mxu0 %v1582
      %1606 = vmatprep.subr.bf16.mxu0 0
      %1607 = vmatpush1.bf16.xpose.msra.mxu0 %v1585
      %1608 = vmatprep.subr.bf16.mxu0 0
      %1609 = vmatpush1.bf16.xpose.msra.mxu0 %v1588
      %1610 = vmatprep.subr.bf16.mxu0 0
      %1611 = vmatpush1.bf16.xpose.msra.mxu0 %v1591
      %1612 = vmatprep.subr.bf16.mxu0 0
      %1613 = vmatpush1.bf16.xpose.msra.mxu0 %v1594
      %1614 = vmatprep.subr.bf16.mxu0 0
      %1615 = vmatpush1.bf16.xpose.msra.mxu0 %v1597
      %1616 = vmatprep.subr.bf16.mxu0 0
      %1617 = vmatpush1.bf16.xpose.msra.mxu0 %v1600
      %1618 = vmatprep.subr.bf16.mxu0 0
      %1619 = vmatpush1.bf16.xpose.msra.mxu0 0
      %1620 = vmatprep.subr.bf16.mxu0 0
      %1621 = vmatpush1.bf16.xpose.msra.mxu0 0
      %1622 = vmatprep.subr.bf16.mxu0 0
      %1623 = vmatpush1.bf16.xpose.msra.mxu0 0
      %1624 = vmatprep.subr.bf16.mxu0 0
      %1625 = vmatpush1.bf16.xpose.msra.mxu0 0
      %1626 = vmatprep.subr.bf16.mxu0 0
      %1627 = vmatpush1.bf16.xpose.msra.mxu0 0
      %1628 = vmatprep.subr.bf16.mxu0 0
      %1629 = vmatpush1.bf16.xpose.msra.mxu0 0
      %1630 = vmatprep.subr.bf16.mxu0 0
      %1631 = vmatpush1.bf16.xpose.msra.mxu0 0
      %1632 = vmatprep.subr.bf16.mxu0 0
      %1633 = vmatpush1.bf16.xpose.msra.mxu0 0
      %1634 = vmatprep.mubr.bf16.mxu0 0
      %1635 = vmatmul.mubr.bf16.gmra.mrb[0].mxu0 %v1576
      %v1636 = vpop.f32.mrb[0].mxu0
      %v1637 = vadd.f32 %v1533, %v1636
      %v1638 = vpop.f32.mrb[0].mxu0
      %v1639 = vpop.f32.mrb[0].mxu0
      %v1640 = vadd.f32 %v1533, %v1639
      %v1641 = vpop.f32.mrb[0].mxu0
      %1642 = vdwg.mxu0
      %1643 = vmax.xlane.f32.xlu0 %v1637
      %v1644 = vpop.xlane.xlu0 %1643
      %1645 = vmax.xlane.f32.xlu0 %v1640
      %v1646 = vpop.xlane.xlu0 %1645
      %v1647 = vsub.f32 %v1637, %v1644
      %v1648 = vsub.f32 %v1640, %v1646
      %v1649 = vmul.f32 %v1647, 1.442695
      %v1650 = vpow.pop %v1649
      %v1651 = vmul.f32 %v1648, 1.442695
      %v1652 = vpow.pop %v1651
      %1653 = vadd.xlane.f32.xlu0 %v1650
      %v1654 = vpop.xlane.xlu0 %1653
      %1655 = vadd.xlane.f32.xlu0 %v1652
      %v1656 = vpop.xlane.xlu0 %1655
      %v1657 = vrcp.pop %v1654
      %v1658 = vrcp.pop %v1656
      %v1659 = vmul.f32 %v1650, %v1657
      %v1660 = vmul.f32 %v1652, %v1658
      %1661 = vst [vmem:[%s765] sm:$0xff] %v1659
      %1662 = vst [vmem:[%s765 + $0x8] sm:$0xff] %v1660
      %v1663 = vpack.c.bf16 %v1660, %v1659
      %1664 = vrot.lane.b32.xlu0 %v1567, 96
      %v1665 = vpop.permute.xlu0 %1664
      %1666 = vrot.lane.b32.xlu0 %v1568, 96
      %v1667 = vpop.permute.xlu0 %1666
      %1668 = vrot.lane.b32.xlu0 %v1569, 96
      %v1669 = vpop.permute.xlu0 %1668
      %1670 = vrot.lane.b32.xlu0 %v1570, 96
      %v1671 = vpop.permute.xlu0 %1670
      %1672 = vrot.lane.b32.xlu0 %v1571, 96
      %v1673 = vpop.permute.xlu0 %1672
      %1674 = vrot.lane.b32.xlu0 %v1572, 96
      %v1675 = vpop.permute.xlu0 %1674
      %1676 = vrot.lane.b32.xlu0 %v1573, 96
      %v1677 = vpop.permute.xlu0 %1676
      %1678 = vrot.lane.b32.xlu0 %v1574, 96
      %v1679 = vpop.permute.xlu0 %1678
      %1688 = vmatprep.subr.bf16.mxu0 0
      %1689 = vmatpush1.bf16.msra.mxu0 %v1665
      %1690 = vmatprep.subr.bf16.mxu0 0
      %1691 = vmatpush1.bf16.msra.mxu0 %v1667
      %1692 = vmatprep.subr.bf16.mxu0 0
      %1693 = vmatpush1.bf16.msra.mxu0 %v1669
      %1694 = vmatprep.subr.bf16.mxu0 0
      %1695 = vmatpush1.bf16.msra.mxu0 %v1671
      %1696 = vmatprep.subr.bf16.mxu0 0
      %1697 = vmatpush1.bf16.msra.mxu0 %v1673
      %1698 = vmatprep.subr.bf16.mxu0 0
      %1699 = vmatpush1.bf16.msra.mxu0 %v1675
      %1700 = vmatprep.subr.bf16.mxu0 0
      %1701 = vmatpush1.bf16.msra.mxu0 %v1677
      %1702 = vmatprep.subr.bf16.mxu0 0
      %1703 = vmatpush1.bf16.msra.mxu0 %v1679
      %1704 = vmatprep.subr.bf16.mxu0 0
      %1705 = vmatpush1.bf16.msra.mxu0 0
      %1706 = vmatprep.subr.bf16.mxu0 0
      %1707 = vmatpush1.bf16.msra.mxu0 0
      %1708 = vmatprep.subr.bf16.mxu0 0
      %1709 = vmatpush1.bf16.msra.mxu0 0
      %1710 = vmatprep.subr.bf16.mxu0 0
      %1711 = vmatpush1.bf16.msra.mxu0 0
      %1712 = vmatprep.subr.bf16.mxu0 0
      %1713 = vmatpush1.bf16.msra.mxu0 0
      %1714 = vmatprep.subr.bf16.mxu0 0
      %1715 = vmatpush1.bf16.msra.mxu0 0
      %1716 = vmatprep.subr.bf16.mxu0 0
      %1717 = vmatpush1.bf16.msra.mxu0 0
      %1718 = vmatprep.subr.bf16.mxu0 0
      %1719 = vmatpush1.bf16.msra.mxu0 0
      %1720 = vmatprep.mubr.bf16.mxu0 0
      %1721 = vmatmul.mubr.bf16.gmra.mrb[0].mxu0 %v1663
      %v1722 = vpop.f32.mrb[0].mxu0
      %v1723 = vadd.f32 0.0, %v1722
      %v1724 = vpop.f32.mrb[0].mxu0
      %v1725 = vpop.f32.mrb[0].mxu0
      %v1726 = vadd.f32 0.0, %v1725
      %v1727 = vpop.f32.mrb[0].mxu0
      %1728 = vdwg.mxu0
      %v1729 = vpack.c.bf16 %v1726, %v1723
      %v1730 = vld [vmem:[%s11] sm:$0xf]
      %v1731 = vld [vmem:[%s11 + $0x4] sm:$0xf]
      %v1732 = vld [vmem:[%s11 + $0x8] sm:$0xf]
      %v1733 = vld [vmem:[%s11 + $0xc] sm:$0xf]
      %v1738 = vunpack.c.l.b16 %v1730
      %v1739 = vunpack.c.l.b16 %v1731
      %v1740 = vunpack.c.l.b16 %v1732
      %v1741 = vunpack.c.l.b16 %v1733
      %v1742 = vpack.c.b16 %v1739, %v1738
      %v1743 = vpack.c.b16 %v1741, %v1740
      %v1747 = vsel %vm770, %v1729, 0
      %1749 = vmatprep.subr.bf16.mxu0 0
      %1750 = vmatpush1.bf16.msra.mxu0 %v1742
      %1751 = vmatprep.subr.bf16.mxu0 0
      %1752 = vmatpush1.bf16.msra.mxu0 %v1743
      %1753 = vmatprep.subr.bf16.mxu0 0
      %1754 = vmatpush1.bf16.msra.mxu0 0
      %1755 = vmatprep.subr.bf16.mxu0 0
      %1756 = vmatpush1.bf16.msra.mxu0 0
      %1757 = vmatprep.subr.bf16.mxu0 0
      %1758 = vmatpush1.bf16.msra.mxu0 0
      %1759 = vmatprep.subr.bf16.mxu0 0
      %1760 = vmatpush1.bf16.msra.mxu0 0
      %1761 = vmatprep.subr.bf16.mxu0 0
      %1762 = vmatpush1.bf16.msra.mxu0 0
      %1763 = vmatprep.subr.bf16.mxu0 0
      %1764 = vmatpush1.bf16.msra.mxu0 0
      %1765 = vmatprep.subr.bf16.mxu0 0
      %1766 = vmatpush1.bf16.msra.mxu0 0
      %1767 = vmatprep.subr.bf16.mxu0 0
      %1768 = vmatpush1.bf16.msra.mxu0 0
      %1769 = vmatprep.subr.bf16.mxu0 0
      %1770 = vmatpush1.bf16.msra.mxu0 0
      %1771 = vmatprep.subr.bf16.mxu0 0
      %1772 = vmatpush1.bf16.msra.mxu0 0
      %1773 = vmatprep.subr.bf16.mxu0 0
      %1774 = vmatpush1.bf16.msra.mxu0 0
      %1775 = vmatprep.subr.bf16.mxu0 0
      %1776 = vmatpush1.bf16.msra.mxu0 0
      %1777 = vmatprep.subr.bf16.mxu0 0
      %1778 = vmatpush1.bf16.msra.mxu0 0
      %1779 = vmatprep.subr.bf16.mxu0 0
      %1780 = vmatpush1.bf16.msra.mxu0 0
      %1781 = vmatprep.mubr.bf16.mxu0 0
      %1782 = vmatmul.mubr.bf16.gmra.mrb[0].mxu0 %v1747
      %v1783 = vpop.f32.mrb[0].mxu0
      %v1784 = vadd.f32 0.0, %v1783
      %v1785 = vpop.f32.mrb[0].mxu0
      %v1786 = vpop.f32.mrb[0].mxu0
      %v1787 = vadd.f32 0.0, %v1786
      %v1788 = vpop.f32.mrb[0].mxu0
      %1789 = vdwg.mxu0
      %v1790 = vadd.f32 %v1404, %v1784
      %v1791 = vadd.f32 %v1405, %v1787
      %v1792 = vld [vmem:[%s12] sm:$0x1]
      %v1794 = vlaneseq
      %v1795 = vshrl.u32 %v1794, 7
      %v1796 = vsub.s32 0, %v1795
      %v1797 = vrot.slane %v1792, %v1796
      %v1799 = vadd.f32 %v1790, %v1797
      %v1800 = vadd.f32 %v1791, %v1797
      %v1801 = vsel %vm770, %v1799, 0.0
      %1802 = vadd.xlane.f32.xlu0 %v1801
      %v1803 = vpop.xlane.xlu0 %1802
      %v1804 = vsel %vm770, %v1800, 0.0
      %1805 = vadd.xlane.f32.xlu0 %v1804
      %v1806 = vpop.xlane.xlu0 %1805
      %v1807 = vmul.f32 %v1803, %v777
      %v1808 = vmul.f32 %v1806, %v777
      %v1809 = vsub.f32 %v1799, %v1807
      %v1810 = vsub.f32 %v1800, %v1808
      %v1811 = vmul.f32 %v1809, %v1809
      %v1812 = vmul.f32 %v1810, %v1810
      %v1813 = vsel %vm770, %v1811, 0.0
      %1814 = vadd.xlane.f32.xlu0 %v1813
      %v1815 = vpop.xlane.xlu0 %1814
      %v1816 = vsel %vm770, %v1812, 0.0
      %1817 = vadd.xlane.f32.xlu0 %v1816
      %v1818 = vpop.xlane.xlu0 %1817
      %v1819 = vmul.f32 %v1815, %v777
      %v1820 = vmul.f32 %v1818, %v777
      %v1821 = vadd.f32 %v1819, 1e-05
      %v1822 = vadd.f32 %v1820, 1e-05
      %v1823 = vrsqrt.pop %v1821
      %v1824 = vrsqrt.pop %v1822
      %v1825 = vmul.f32 %v1809, %v1823
      %v1826 = vmul.f32 %v1810, %v1824
      %v1827 = vld [vmem:[%s13] sm:$0x1]
      %v1829 = vlaneseq
      %v1830 = vshrl.u32 %v1829, 7
      %v1831 = vsub.s32 0, %v1830
      %v1832 = vrot.slane %v1827, %v1831
      %v1834 = vmul.f32 %v1825, %v1832
      %v1835 = vmul.f32 %v1826, %v1832
      %v1836 = vld [vmem:[%s14] sm:$0x1]
      %v1838 = vlaneseq
      %v1839 = vshrl.u32 %v1838, 7
      %v1840 = vsub.s32 0, %v1839
      %v1841 = vrot.slane %v1836, %v1840
      %v1843 = vadd.f32 %v1834, %v1841
      %v1844 = vadd.f32 %v1835, %v1841
      %v1845 = vpack.c.bf16 %v1844, %v1843
      %v1846 = vld [vmem:[%s15] sm:$0xf]
      %v1847 = vld [vmem:[%s15 + $0x4] sm:$0xf]
      %v1848 = vld [vmem:[%s15 + $0x8] sm:$0xf]
      %v1849 = vld [vmem:[%s15 + $0xc] sm:$0xf]
      %v1850 = vld [vmem:[%s16] sm:$0x1]
      %v1852 = vlaneseq
      %v1853 = vshrl.u32 %v1852, 7
      %v1854 = vsub.s32 0, %v1853
      %v1855 = vrot.slane %v1850, %v1854
      %v1861 = vunpack.c.l.b16 %v1846
      %v1862 = vunpack.c.l.b16 %v1847
      %v1863 = vunpack.c.l.b16 %v1848
      %v1864 = vunpack.c.l.b16 %v1849
      %v1865 = vpack.c.b16 %v1862, %v1861
      %v1866 = vpack.c.b16 %v1864, %v1863
      %v1870 = vsel %vm770, %v1845, 0
      %1872 = vmatprep.subr.bf16.mxu0 0
      %1873 = vmatpush1.bf16.msra.mxu0 %v1865
      %1874 = vmatprep.subr.bf16.mxu0 0
      %1875 = vmatpush1.bf16.msra.mxu0 %v1866
      %1876 = vmatprep.subr.bf16.mxu0 0
      %1877 = vmatpush1.bf16.msra.mxu0 0
      %1878 = vmatprep.subr.bf16.mxu0 0
      %1879 = vmatpush1.bf16.msra.mxu0 0
      %1880 = vmatprep.subr.bf16.mxu0 0
      %1881 = vmatpush1.bf16.msra.mxu0 0
      %1882 = vmatprep.subr.bf16.mxu0 0
      %1883 = vmatpush1.bf16.msra.mxu0 0
      %1884 = vmatprep.subr.bf16.mxu0 0
      %1885 = vmatpush1.bf16.msra.mxu0 0
      %1886 = vmatprep.subr.bf16.mxu0 0
      %1887 = vmatpush1.bf16.msra.mxu0 0
      %1888 = vmatprep.subr.bf16.mxu0 0
      %1889 = vmatpush1.bf16.msra.mxu0 0
      %1890 = vmatprep.subr.bf16.mxu0 0
      %1891 = vmatpush1.bf16.msra.mxu0 0
      %1892 = vmatprep.subr.bf16.mxu0 0
      %1893 = vmatpush1.bf16.msra.mxu0 0
      %1894 = vmatprep.subr.bf16.mxu0 0
      %1895 = vmatpush1.bf16.msra.mxu0 0
      %1896 = vmatprep.subr.bf16.mxu0 0
      %1897 = vmatpush1.bf16.msra.mxu0 0
      %1898 = vmatprep.subr.bf16.mxu0 0
      %1899 = vmatpush1.bf16.msra.mxu0 0
      %1900 = vmatprep.subr.bf16.mxu0 0
      %1901 = vmatpush1.bf16.msra.mxu0 0
      %1902 = vmatprep.subr.bf16.mxu0 0
      %1903 = vmatpush1.bf16.msra.mxu0 0
      %1904 = vmatprep.mubr.bf16.mxu0 0
      %1905 = vmatmul.mubr.bf16.gmra.mrb[0].mxu0 %v1870
      %v1906 = vpop.f32.mrb[0].mxu0
      %v1907 = vadd.f32 %v1855, %v1906
      %v1908 = vpop.f32.mrb[0].mxu0
      %v1909 = vpop.f32.mrb[0].mxu0
      %v1910 = vadd.f32 %v1855, %v1909
      %v1911 = vpop.f32.mrb[0].mxu0
      %1912 = vdwg.mxu0
      %v1913 = vld [vmem:[%s17] sm:$0xf]
      %v1914 = vld [vmem:[%s17 + $0x4] sm:$0xf]
      %v1915 = vld [vmem:[%s17 + $0x8] sm:$0xf]
      %v1916 = vld [vmem:[%s17 + $0xc] sm:$0xf]
      %v1917 = vld [vmem:[%s18] sm:$0x1]
      %v1919 = vlaneseq
      %v1920 = vshrl.u32 %v1919, 7
      %v1921 = vsub.s32 0, %v1920
      %v1922 = vrot.slane %v1917, %v1921
      %v1928 = vunpack.c.l.b16 %v1913
      %v1929 = vunpack.c.l.b16 %v1914
      %v1930 = vunpack.c.l.b16 %v1915
      %v1931 = vunpack.c.l.b16 %v1916
      %v1932 = vpack.c.b16 %v1929, %v1928
      %v1933 = vpack.c.b16 %v1931, %v1930
      %1936 = vmatprep.subr.bf16.mxu0 0
      %1937 = vmatpush1.bf16.msra.mxu0 %v1932
      %1938 = vmatprep.subr.bf16.mxu0 0
      %1939 = vmatpush1.bf16.msra.mxu0 %v1933
      %1940 = vmatprep.subr.bf16.mxu0 0
      %1941 = vmatpush1.bf16.msra.mxu0 0
      %1942 = vmatprep.subr.bf16.mxu0 0
      %1943 = vmatpush1.bf16.msra.mxu0 0
      %1944 = vmatprep.subr.bf16.mxu0 0
      %1945 = vmatpush1.bf16.msra.mxu0 0
      %1946 = vmatprep.subr.bf16.mxu0 0
      %1947 = vmatpush1.bf16.msra.mxu0 0
      %1948 = vmatprep.subr.bf16.mxu0 0
      %1949 = vmatpush1.bf16.msra.mxu0 0
      %1950 = vmatprep.subr.bf16.mxu0 0
      %1951 = vmatpush1.bf16.msra.mxu0 0
      %1952 = vmatprep.subr.bf16.mxu0 0
      %1953 = vmatpush1.bf16.msra.mxu0 0
      %1954 = vmatprep.subr.bf16.mxu0 0
      %1955 = vmatpush1.bf16.msra.mxu0 0
      %1956 = vmatprep.subr.bf16.mxu0 0
      %1957 = vmatpush1.bf16.msra.mxu0 0
      %1958 = vmatprep.subr.bf16.mxu0 0
      %1959 = vmatpush1.bf16.msra.mxu0 0
      %1960 = vmatprep.subr.bf16.mxu0 0
      %1961 = vmatpush1.bf16.msra.mxu0 0
      %1962 = vmatprep.subr.bf16.mxu0 0
      %1963 = vmatpush1.bf16.msra.mxu0 0
      %1964 = vmatprep.subr.bf16.mxu0 0
      %1965 = vmatpush1.bf16.msra.mxu0 0
      %1966 = vmatprep.subr.bf16.mxu0 0
      %1967 = vmatpush1.bf16.msra.mxu0 0
      %1968 = vmatprep.mubr.bf16.mxu0 0
      %1969 = vmatmul.mubr.bf16.gmra.mrb[0].mxu0 %v1870
      %v1970 = vpop.f32.mrb[0].mxu0
      %v1971 = vadd.f32 %v1922, %v1970
      %v1972 = vpop.f32.mrb[0].mxu0
      %v1973 = vpop.f32.mrb[0].mxu0
      %v1974 = vadd.f32 %v1922, %v1973
      %v1975 = vpop.f32.mrb[0].mxu0
      %1976 = vdwg.mxu0
      %v1977 = vmul.f32 %v1971, 0.5
      %v1978 = vmul.f32 %v1974, 0.5
      %v1979 = vmul.f32 %v1971, 0.70710677
      %v1980 = vmul.f32 %v1974, 0.70710677
      %v1981 = verf.f32.pop %v1979
      %v1982 = verf.f32.pop %v1980
      %v1983 = vadd.f32 %v1981, 1.0
      %v1984 = vadd.f32 %v1982, 1.0
      %v1985 = vmul.f32 %v1977, %v1983
      %v1986 = vmul.f32 %v1978, %v1984
      %v1987 = vmul.f32 %v1907, %v1985
      %v1988 = vmul.f32 %v1910, %v1986
      %v1989 = vpack.c.bf16 %v1988, %v1987
      %v1990 = vld [vmem:[%s19] sm:$0xf]
      %v1991 = vld [vmem:[%s19 + $0x4] sm:$0xf]
      %v1992 = vld [vmem:[%s19 + $0x8] sm:$0xf]
      %v1993 = vld [vmem:[%s19 + $0xc] sm:$0xf]
      %v1994 = vld [vmem:[%s19 + $0x10] sm:$0xf]
      %v1995 = vld [vmem:[%s19 + $0x14] sm:$0xf]
      %v1996 = vld [vmem:[%s19 + $0x18] sm:$0xf]
      %v1997 = vld [vmem:[%s19 + $0x1c] sm:$0xf]
      %v1998 = vld [vmem:[%s19 + $0x20] sm:$0xf]
      %v1999 = vld [vmem:[%s19 + $0x24] sm:$0xf]
      %v2000 = vld [vmem:[%s19 + $0x28] sm:$0xf]
      %v2001 = vld [vmem:[%s19 + $0x2c] sm:$0xf]
      %v2002 = vld [vmem:[%s19 + $0x30] sm:$0xf]
      %v2003 = vld [vmem:[%s19 + $0x34] sm:$0xf]
      %v2004 = vld [vmem:[%s19 + $0x38] sm:$0xf]
      %v2005 = vld [vmem:[%s19 + $0x3c] sm:$0xf]
      %v2022 = vunpack.c.l.b16 %v1990
      %v2023 = vunpack.c.l.b16 %v1991
      %v2024 = vunpack.c.l.b16 %v1992
      %v2025 = vunpack.c.l.b16 %v1993
      %v2026 = vunpack.c.l.b16 %v1994
      %v2027 = vunpack.c.l.b16 %v1995
      %v2028 = vunpack.c.l.b16 %v1996
      %v2029 = vunpack.c.l.b16 %v1997
      %v2030 = vunpack.c.l.b16 %v1998
      %v2031 = vunpack.c.l.b16 %v1999
      %v2032 = vunpack.c.l.b16 %v2000
      %v2033 = vunpack.c.l.b16 %v2001
      %v2034 = vunpack.c.l.b16 %v2002
      %v2035 = vunpack.c.l.b16 %v2003
      %v2036 = vunpack.c.l.b16 %v2004
      %v2037 = vunpack.c.l.b16 %v2005
      %v2038 = vpack.c.b16 %v2023, %v2022
      %v2039 = vpack.c.b16 %v2025, %v2024
      %v2040 = vpack.c.b16 %v2027, %v2026
      %v2041 = vpack.c.b16 %v2029, %v2028
      %v2042 = vpack.c.b16 %v2031, %v2030
      %v2043 = vpack.c.b16 %v2033, %v2032
      %v2044 = vpack.c.b16 %v2035, %v2034
      %v2045 = vpack.c.b16 %v2037, %v2036
      %2054 = vmatprep.subr.bf16.mxu0 0
      %2055 = vmatpush1.bf16.msra.mxu0 %v2038
      %2056 = vmatprep.subr.bf16.mxu0 0
      %2057 = vmatpush1.bf16.msra.mxu0 %v2039
      %2058 = vmatprep.subr.bf16.mxu0 0
      %2059 = vmatpush1.bf16.msra.mxu0 %v2040
      %2060 = vmatprep.subr.bf16.mxu0 0
      %2061 = vmatpush1.bf16.msra.mxu0 %v2041
      %2062 = vmatprep.subr.bf16.mxu0 0
      %2063 = vmatpush1.bf16.msra.mxu0 %v2042
      %2064 = vmatprep.subr.bf16.mxu0 0
      %2065 = vmatpush1.bf16.msra.mxu0 %v2043
      %2066 = vmatprep.subr.bf16.mxu0 0
      %2067 = vmatpush1.bf16.msra.mxu0 %v2044
      %2068 = vmatprep.subr.bf16.mxu0 0
      %2069 = vmatpush1.bf16.msra.mxu0 %v2045
      %2070 = vmatprep.subr.bf16.mxu0 0
      %2071 = vmatpush1.bf16.msra.mxu0 0
      %2072 = vmatprep.subr.bf16.mxu0 0
      %2073 = vmatpush1.bf16.msra.mxu0 0
      %2074 = vmatprep.subr.bf16.mxu0 0
      %2075 = vmatpush1.bf16.msra.mxu0 0
      %2076 = vmatprep.subr.bf16.mxu0 0
      %2077 = vmatpush1.bf16.msra.mxu0 0
      %2078 = vmatprep.subr.bf16.mxu0 0
      %2079 = vmatpush1.bf16.msra.mxu0 0
      %2080 = vmatprep.subr.bf16.mxu0 0
      %2081 = vmatpush1.bf16.msra.mxu0 0
      %2082 = vmatprep.subr.bf16.mxu0 0
      %2083 = vmatpush1.bf16.msra.mxu0 0
      %2084 = vmatprep.subr.bf16.mxu0 0
      %2085 = vmatpush1.bf16.msra.mxu0 0
      %2086 = vmatprep.mubr.bf16.mxu0 0
      %2087 = vmatmul.mubr.bf16.gmra.mrb[0].mxu0 %v1989
      %v2088 = vpop.f32.mrb[0].mxu0
      %v2089 = vadd.f32 0.0, %v2088
      %v2090 = vpop.f32.mrb[0].mxu0
      %v2091 = vpop.f32.mrb[0].mxu0
      %v2092 = vadd.f32 0.0, %v2091
      %v2093 = vpop.f32.mrb[0].mxu0
      %2094 = vdwg.mxu0
      %v2095 = vadd.f32 %v1799, %v2089
      %v2096 = vadd.f32 %v1800, %v2092
      %v2097 = vld [vmem:[%s20] sm:$0x1]
      %v2099 = vlaneseq
      %v2100 = vshrl.u32 %v2099, 7
      %v2101 = vsub.s32 0, %v2100
      %v2102 = vrot.slane %v2097, %v2101
      %v2104 = vadd.f32 %v2095, %v2102
      %v2105 = vadd.f32 %v2096, %v2102
      %2106 = vst.msk [vmem:[%s755] sm:$0xff] %vm770, %v2104
      %2107 = vst.msk [vmem:[%s755 + $0x8] sm:$0xff] %vm770, %v2105
      %s2108 = smul.u32 2, %s39
      %p2109 = scmp.lt.s32.totalorder %s38, 1
      %s2110 = scalar_select %p2109, %s38, 1
      %p2111 = scmp.lt.s32.totalorder %s2108, 1
      %s2112 = scalar_select %p2111, %s2108, 1
      %s2113 = smul.addr %s2110, 2
      %s2114 = sadd.s32 %s2112, %s2113
      %s2115 = smul.addr %s2114, 8
      %s2116 = scalar_lea.vmem %s21, %s2115
      %s2117 = smul.u32 2, %s39
      %p2118 = scmp.lt.s32.totalorder %s38, 1
      %s2119 = scalar_select %p2118, %s38, 1
      %p2120 = scmp.lt.s32.totalorder %s2117, 1
      %s2121 = scalar_select %p2120, %s2117, 1
      %s2122 = smul.addr %s2119, 2
      %s2123 = sadd.s32 %s2121, %s2122
      %s2124 = smul.addr %s2123, 8
      %s2125 = scalar_lea.vmem %s22, %s2124
      // Predicated region
      $region105: #{_lambda_.7} parent=103 // pred_check
        %p2126 = pneg %p519
      $region106: #{_lambda_.7} parent=103 // pred_check_branch
        %2128 = sbr.rel (%p2126) target = $region108
      $region107: #{_lambda_.7} parent=103 // pred_region
        %s2129 = smul.u32 2, %s39
      $region108: #{_lambda_.7} parent=103 // pred_fallthru
        _
      // Predicated region
      $region109: #{_lambda_.7} parent=103 // pred_check
        %p2130 = pneg %p547
      $region110: #{_lambda_.7} parent=103 // pred_check_branch
        %2132 = sbr.rel (%p2130) target = $region112
      $region111: #{_lambda_.7} parent=103 // pred_region
        %s2133 = smul.u32 2, %s39
      $region112: #{_lambda_.7} parent=103 // pred_fallthru
        _
    $region104: #{_lambda_.7} parent=5 // pred_fallthru
      _
    %p2134 = scmp.le.s32.totalorder 2, %s29
    // Predicated region
    $region113: #{_lambda_.7} parent=5 // pred_check
      %p2135 = pneg %p2134
    $region114: #{_lambda_.7} parent=5 // pred_check_branch
      %2137 = sbr.rel (%p2135) target = $region116
    $region115: #{_lambda_.7} parent=5 // pred_region
      %s2138 = ssub.s32 %s29, 2
      // Predicated region
      $region117: #{_lambda_.7} parent=115 // pred_check
        %p2139 = pneg %p525
      $region118: #{_lambda_.7} parent=115 // pred_check_branch
        %2141 = sbr.rel (%p2139) target = $region120
      $region119: #{_lambda_.7} parent=115 // pred_region
        %s2142 = smul.u32 2, %s41
        %p2143 = scmp.lt.s32.totalorder %s40, 1
        %s2144 = scalar_select %p2143, %s40, 1
        %p2145 = scmp.lt.s32.totalorder %s2142, 1
        %s2146 = scalar_select %p2145, %s2142, 1
        %s2147 = smul.addr %s2144, 2
        %s2148 = sadd.s32 %s2146, %s2147
        %s2149 = smul.addr %s2148, 8
        %s2150 = scalar_lea.vmem %s21, %s2149
      $region120: #{_lambda_.7} parent=115 // pred_fallthru
        _
      // Predicated region
      $region121: #{_lambda_.7} parent=115 // pred_check
        %p2151 = pneg %p553
      $region122: #{_lambda_.7} parent=115 // pred_check_branch
        %2153 = sbr.rel (%p2151) target = $region124
      $region123: #{_lambda_.7} parent=115 // pred_region
        %s2154 = smul.u32 2, %s41
        %p2155 = scmp.lt.s32.totalorder %s40, 1
        %s2156 = scalar_select %p2155, %s40, 1
        %p2157 = scmp.lt.s32.totalorder %s2154, 1
        %s2158 = scalar_select %p2157, %s2154, 1
        %s2159 = smul.addr %s2156, 2
        %s2160 = sadd.s32 %s2158, %s2159
        %s2161 = smul.addr %s2160, 8
        %s2162 = scalar_lea.vmem %s22, %s2161
      $region124: #{_lambda_.7} parent=115 // pred_fallthru
        _
    $region116: #{_lambda_.7} parent=5 // pred_fallthru
      _
  $region6: #{_lambda_.7} parent=0 // loop_footer
    %s33 = sadd.s32 1, %s29
  $region7: #{_lambda_.7} parent=0 // loop_footer_branch
    %28 = sbr.rel target = $region3
  $region8: #{_lambda_.7} parent=0 // loop_exit
    _

</llo_original>
